<compile_context>
chip_gen: v7x
topology: tpu7x:2x2x1
jax: 0.10.0
libtpu: 0.0.40
codegen_flags: <defaults>
</compile_context>

<pallas_src>
import functools
import math

import jax
import jax.numpy as jnp
from jax import lax
from jax.experimental import pallas as pl
from jax.experimental.pallas import tpu as pltpu


# ----------------------------------------------------------------------------
# Fused forward kernel (whole batch, all layers, one invocation, no grid)
# ----------------------------------------------------------------------------
def fused_forward_kernel(
        x_ref, mask_ref,
        wqkv_ref, bqkv_ref,
        w1_ref, b1_ref, w2_ref, b2_ref, g_ref, bln_ref,
        gw12_ref, gb_ref, gw0_ref,
        aw_ref, ab_ref,
        wf_ref, bf_ref,
        o_ref,
        *, n_heads, n_iter):
    x0 = x_ref[...]                      # (B, L, D)  original input embeddings
    mask = mask_ref[...]                 # (B, L)     1.0 = real token, 0.0 = pad
    B, L, D = x0.shape
    BL = B * L
    H = n_heads
    hd = D // H
    n_layers = wqkv_ref.shape[0]
    scale = 1.0 / math.sqrt(D)           # torch: attention_matrix / sqrt(self.dim)

    # Additive key-mask bias, computed once; replicated head-major over the
    # merged (H*B) attention-batch axis and shared by all layers.
    mbias = jnp.where(mask == 0.0, jnp.float32(-1e30),
                      jnp.float32(0.0)).reshape(B, 1, L)          # (B, 1, L)
    mbias_hb = jnp.concatenate([mbias] * H, axis=0)               # (H*B, 1, L)

    X = x0.reshape(BL, D)                # flattened activations (free: L == 8)

    # ---------------- encoder layers ----------------
    for l in range(n_layers):
        # Single fused QKV projection: one (BL, D) x (D, 3D) matmul.
        qkv = (jnp.dot(X, wqkv_ref[l], preferred_element_type=jnp.float32)
               + bqkv_ref[l])                                      # (BL, 3D)
        qkv3 = qkv.reshape(B, L, 3 * D)

        def head_batch(base, qkv3=qkv3):
            # Fold heads into the leading batch axis: (H*B, L, hd), idx = h*B + b.
            return jnp.concatenate(
                [qkv3[:, :, base + h * hd: base + (h + 1) * hd] for h in range(H)],
                axis=0)

        qh = head_batch(0) * scale       # scale folded into Q once
        kh = head_batch(D)
        vh = head_batch(2 * D)

        # One batched score / softmax / PV stream for all B*H head-batches.
        s = jnp.einsum("bqd,bkd->bqk", qh, kh,
                       preferred_element_type=jnp.float32)         # (HB, L, L)
        s = s + mbias_hb
        s = s - jnp.max(s, axis=-1, keepdims=True)
        e = jnp.exp(s)
        p = e * pl.reciprocal(jnp.sum(e, axis=-1, keepdims=True), approx=True)
        oh = jnp.einsum("bqk,bkd->bqd", p, vh,
                        preferred_element_type=jnp.float32)        # (HB, L, hd)

        # Un-fold heads: head h occupies lanes [h*hd, (h+1)*hd).
        y = jnp.concatenate([oh[h * B:(h + 1) * B] for h in range(H)],
                            axis=-1).reshape(BL, D)                # (BL, D)

        x1 = X + y                                                 # residual 1
        # Note: the reference module feeds the ATTENTION OUTPUT y (not x1) to the FFN.
        h1 = jnp.maximum(jnp.dot(y, w1_ref[l], preferred_element_type=jnp.float32)
                         + b1_ref[l], 0.0)
        f = jnp.dot(h1, w2_ref[l], preferred_element_type=jnp.float32) + b2_ref[l]
        x2 = x1 + f                                                # residual 2

        mu = jnp.mean(x2, axis=-1, keepdims=True)                  # ffn_norm (LayerNorm)
        var = jnp.mean((x2 - mu) * (x2 - mu), axis=-1, keepdims=True)
        X = (x2 - mu) * lax.rsqrt(var + 1e-5) * g_ref[l] + bln_ref[l]

    # ---------------- global attention + entmax-bisect ----------------
    X3 = X.reshape(B, L, D)
    m_s = X3[:, L - 1, :]                 # session_s      (B, D)
    Lm1 = L - 1

    # get_alpha(flag=1): sigmoid(alpha_w(m_s)) + 1   (per-batch entmax alpha,
    # kept as an exact divide: 2 elements, precision feeds the entmax exponent)
    z = jnp.sum(m_s * aw_ref[...], axis=-1, keepdims=True) + ab_ref[...]   # (B, 1)
    a_g = 1.0 / (1.0 + jnp.exp(-z)) + 1.0                                  # in (1, 2)

    # relu(Q w2 + K w1 + bias) w0^T ;  w1|w2 fused into one (D, 2D) matmul.
    G = jnp.dot(X, gw12_ref[...],
                preferred_element_type=jnp.float32).reshape(B, L, 2 * D)
    Kp = G[:, :Lm1, 0:D]                                     # session_x @ atten_w1
    Qp = G[:, L - 1, D:2 * D]                                # m_s       @ atten_w2
    act = jnp.maximum(Qp.reshape(B, 1, D) + Kp + gb_ref[...], 0.0)         # (B, Lm1, D)
    s_g = jnp.sum(act * gw0_ref[...], axis=-1)                             # (B, Lm1)
    s_g = jnp.where(mask[:, :Lm1] == 0.0, jnp.float32(-1e30), s_g)

    # entmax_bisect (ensure_sum_one=True), vectorized over the batch.
    am1 = a_g - 1.0                                  # (B, 1)
    inv = 1.0 / am1
    Xe = s_g * am1                                   # (B, Lm1)
    max_val = jnp.max(Xe, axis=-1, keepdims=True)
    tau_lo = max_val - 1.0                           # 1 ** (alpha-1)
    tau_hi = max_val - jnp.exp(am1 * math.log(1.0 / Lm1))   # (1/d) ** (alpha-1)

    def pfun(tau):
        t = jnp.maximum(Xe - tau, 0.0)
        safe = jnp.where(t > 0.0, t, 1.0)
        return jnp.where(t > 0.0, jnp.exp(inv * jnp.log(safe)), 0.0)  # t ** (1/(alpha-1))

    f_lo = jnp.sum(pfun(tau_lo), axis=-1, keepdims=True) - 1.0

    def bisect_body(_, carry):
        tau_lo_c, dm_c, _p = carry
        dm_c = dm_c * 0.5
        tau_m = tau_lo_c + dm_c
        p_m = pfun(tau_m)
        f_m = jnp.sum(p_m, axis=-1, keepdims=True) - 1.0
        tau_lo_c = jnp.where(f_m * f_lo >= 0.0, tau_m, tau_lo_c)
        return (tau_lo_c, dm_c, p_m)

    _, _, p_m = lax.fori_loop(0, n_iter, bisect_body,
                              (tau_lo, tau_hi - tau_lo, pfun(tau_hi)),
                              unroll=True)
    p_ent = p_m * pl.reciprocal(jnp.sum(p_m, axis=-1, keepdims=True), approx=True)

    # c = p_ent @ x_s  (values are the ORIGINAL input embeddings, per the module)
    x_s = x0[:, :Lm1, :]
    c = jnp.einsum("bqk,bkd->bqd", p_ent.reshape(B, 1, Lm1), x_s,
                   preferred_element_type=jnp.float32).reshape(B, D)

    # ---------------- final projection: selu(w_f([c ; m_s])) / ||.|| ----------------
    cm = jnp.concatenate([c, m_s], axis=-1)                                # (B, 2D)
    t = jnp.dot(cm, wf_ref[...], preferred_element_type=jnp.float32) + bf_ref[...]
    selu_alpha = 1.6732632423543772
    selu_scale = 1.0507009873554805
    t = selu_scale * jnp.where(t > 0.0, t, selu_alpha * (jnp.exp(t) - 1.0))
    # L2 normalize via EUP rsqrt (no eps — matches torch.norm semantics).
    o_ref[...] = t * lax.rsqrt(jnp.sum(t * t, axis=-1, keepdims=True))


# ----------------------------------------------------------------------------
# pallas_call plumbing (no grid: one invocation, whole arrays VMEM-resident)
# ----------------------------------------------------------------------------
@functools.partial(jax.jit, static_argnames=("n_heads", "n_iter"))
def mh_sparse_transformer_forward(params, x_ids, pos_ids, *, n_heads, n_iter=30):
    B, L = x_ids.shape
    # Invariant: L multiple of 8 so (B,L,D)<->(B*L,D) reshapes are layout-free.
    assert L % 8 == 0, "sequence length must be a multiple of 8 (pad if needed)"

    x_emb = jnp.take(params["emb"], x_ids, axis=0)             # (B, L, item_dim)
    p_emb = jnp.take(params["pos_emb"], pos_ids, axis=0)       # (B, L, pos_dim)
    mask = (x_ids != 0).astype(jnp.float32)                    # (B, L)
    input_embed = jnp.concatenate([x_emb, p_emb], axis=2)      # (B, L, dim)
    item_dim = params["wf"].shape[1]

    args = (input_embed, mask,
            params["wqkv"], params["bqkv"],
            params["w1"], params["b1"], params["w2"], params["b2"],
            params["ln_g"], params["ln_b"],
            params["gw12"], params["atten_bias"], params["atten_w0"],
            params["alpha_w_W"], params["alpha_w_b"],
            params["wf"], params["wf_b"])

    result = pl.pallas_call(
        functools.partial(fused_forward_kernel, n_heads=n_heads, n_iter=n_iter),
        out_shape=jax.ShapeDtypeStruct((B, item_dim), jnp.float32),
        in_specs=[pl.BlockSpec(memory_space=pltpu.MemorySpace.VMEM) for _ in args],
        out_specs=pl.BlockSpec(memory_space=pltpu.MemorySpace.VMEM),
    )(*args)

    # Item-table row normalization (one-off table op, kept as plain JAX glue).
    items_w = params["emb"][1:-1]
    items_embeddings = items_w / jnp.linalg.norm(items_w, axis=-1, keepdims=True)
    return result, items_embeddings


# ----------------------------------------------------------------------------
# Deterministic parameter init (synthetic; shapes from the module __init__).
# QKV / atten_w1|w2 / w_f are pre-fused host-side per the performance review.
# ----------------------------------------------------------------------------
def init_params(key, n_layers, n_heads, item_dim, pos_dim, n_items, n_pos):
    dim = item_dim + pos_dim
    ffn_dim = dim
    keys = jax.random.split(key, 8 + n_layers)

    def nrm(k, shape, std=0.05):
        return std * jax.random.normal(k, shape, jnp.float32)

    params = {}
    # small std => row norms < 1.5, so PyTorch's lazy max_norm=1.5 renorm is a no-op
    params["emb"] = nrm(keys[0], (n_items + 1, item_dim), std=0.1).at[0].set(0.0)  # padding_idx=0
    params["pos_emb"] = nrm(keys[1], (n_pos, pos_dim), std=0.1).at[0].set(0.0)
    params["alpha_w_W"] = nrm(keys[2], (1, dim))                 # nn.Linear(dim,1).weight layout
    params["alpha_w_b"] = jnp.zeros((1, 1), jnp.float32)
    params["atten_w0"] = nrm(keys[3], (1, dim))
    atten_w1 = nrm(keys[4], (dim, dim))
    atten_w2 = nrm(keys[5], (dim, dim))
    params["gw12"] = jnp.concatenate([atten_w1, atten_w2], axis=1)   # (dim, 2*dim) fused
    params["atten_bias"] = jnp.zeros((1, dim), jnp.float32)          # init.constant_(0)
    params["wf"] = nrm(keys[6], (2 * dim, item_dim))                 # un-split: [c ; m_s] @ wf
    params["wf_b"] = nrm(keys[7], (1, item_dim), std=0.01)

    wqkv, bqkv, w1, b1, w2, b2, g, b_ln = [], [], [], [], [], [], [], []
    for l in range(n_layers):
        lk = jax.random.split(keys[8 + l], 10)
        wq = nrm(lk[0], (dim, dim)); bq = nrm(lk[1], (1, dim), std=0.01)
        wk = nrm(lk[2], (dim, dim)); bk = nrm(lk[3], (1, dim), std=0.01)
        wv = nrm(lk[4], (dim, dim)); bv = nrm(lk[5], (1, dim), std=0.01)
        wqkv.append(jnp.concatenate([wq, wk, wv], axis=1))           # (dim, 3*dim) fused
        bqkv.append(jnp.concatenate([bq, bk, bv], axis=1))           # (1, 3*dim)
        w1.append(nrm(lk[6], (dim, ffn_dim))); b1.append(nrm(lk[7], (1, ffn_dim), std=0.01))
        w2.append(nrm(lk[8], (ffn_dim, dim))); b2.append(nrm(lk[9], (1, dim), std=0.01))
        g.append(jnp.ones((1, dim), jnp.float32))                    # LayerNorm default init
        b_ln.append(jnp.zeros((1, dim), jnp.float32))
    for name, lst in (("wqkv", wqkv), ("bqkv", bqkv), ("w1", w1), ("b1", b1),
                      ("w2", w2), ("b2", b2), ("ln_g", g), ("ln_b", b_ln)):
        params[name] = jnp.stack(lst, axis=0)                        # (n_layers, ...)
    return params


# ----------------------------------------------------------------------------
if __name__ == "__main__":
    n_layers, n_heads = 2, 2
    item_dim, pos_dim = 24, 8          # dim = 32
    n_items, n_pos = 20, 16
    B, L = 2, 8

    params = init_params(jax.random.PRNGKey(0),
                         n_layers, n_heads, item_dim, pos_dim, n_items, n_pos)

    kx, _ = jax.random.split(jax.random.PRNGKey(0))
    x_ids = jax.random.randint(kx, (B, L), 1, n_items + 1)    # item ids in [1, n_items]
    x_ids = x_ids.at[0, 2].set(0)                             # one padding token -> exercises masking
    pos_ids = jnp.broadcast_to(jnp.arange(1, L + 1, dtype=jnp.int32), (B, L))

    result, items_embeddings = mh_sparse_transformer_forward(
        params, x_ids, pos_ids, n_heads=n_heads)
    jax.block_until_ready((result, items_embeddings))

    assert result.shape == (B, item_dim)
    assert items_embeddings.shape == (n_items - 1, item_dim)
    assert bool(jnp.isfinite(result).all())
    assert bool(jnp.isfinite(items_embeddings).all())
    print("KERNEL_OK")
</pallas_src>

<mosaic_0001>
module attributes {stable_mosaic.version = 11 : i64} {
  func.func @fused_forward_kernel(%arg0: memref<2x8x32xf32, #tpu.memory_space<vmem>>, %arg1: memref<2x8xf32, #tpu.memory_space<vmem>>, %arg2: memref<2x32x96xf32, #tpu.memory_space<vmem>>, %arg3: memref<2x1x96xf32, #tpu.memory_space<vmem>>, %arg4: memref<2x32x32xf32, #tpu.memory_space<vmem>>, %arg5: memref<2x1x32xf32, #tpu.memory_space<vmem>>, %arg6: memref<2x32x32xf32, #tpu.memory_space<vmem>>, %arg7: memref<2x1x32xf32, #tpu.memory_space<vmem>>, %arg8: memref<2x1x32xf32, #tpu.memory_space<vmem>>, %arg9: memref<2x1x32xf32, #tpu.memory_space<vmem>>, %arg10: memref<32x64xf32, #tpu.memory_space<vmem>>, %arg11: memref<1x32xf32, #tpu.memory_space<vmem>>, %arg12: memref<1x32xf32, #tpu.memory_space<vmem>>, %arg13: memref<1x32xf32, #tpu.memory_space<vmem>>, %arg14: memref<1x1xf32, #tpu.memory_space<vmem>>, %arg15: memref<64x24xf32, #tpu.memory_space<vmem>>, %arg16: memref<1x24xf32, #tpu.memory_space<vmem>>, %arg17: memref<2x24xf32, #tpu.memory_space<vmem>>) attributes {dimension_semantics = [], scalar_prefetch = 0 : i64, scratch_operands = 0 : i64, tpu.core_type = #tpu.core_type<tc>} {
    %c0 = arith.constant 0 : index
    %c0_0 = arith.constant 0 : index
    %c0_1 = arith.constant 0 : index
    %0 = vector.load %arg0[%c0, %c0_0, %c0_1] : memref<2x8x32xf32, #tpu.memory_space<vmem>>, vector<2x8x32xf32>
    %c0_2 = arith.constant 0 : index
    %c0_3 = arith.constant 0 : index
    %1 = vector.load %arg1[%c0_2, %c0_3] : memref<2x8xf32, #tpu.memory_space<vmem>>, vector<2x8xf32>
    %cst = arith.constant 0.000000e+00 : f32
    %2 = vector.broadcast %cst : f32 to vector<2x8xf32>
    %3 = arith.cmpf oeq, %1, %2 : vector<2x8xf32>
    %cst_4 = arith.constant -1.000000e+30 : f32
    %cst_5 = arith.constant 0.000000e+00 : f32
    %4 = vector.broadcast %cst_4 : f32 to vector<2x8xf32>
    %5 = vector.broadcast %cst_5 : f32 to vector<2x8xf32>
    %6 = arith.select %3, %4, %5 : vector<2x8xi1>, vector<2x8xf32>
    %7 = vector.shape_cast %6 : vector<2x8xf32> to vector<2x1x8xf32>
    %8 = tpu.concatenate %7, %7 in 0 : vector<2x1x8xf32>, vector<2x1x8xf32> -> vector<4x1x8xf32>
    %9 = vector.shape_cast %0 : vector<2x8x32xf32> to vector<16x32xf32>
    %c0_6 = arith.constant 0 : index
    %c0_7 = arith.constant 0 : index
    %c0_8 = arith.constant 0 : index
    %10 = vector.load %arg2[%c0_6, %c0_7, %c0_8] : memref<2x32x96xf32, #tpu.memory_space<vmem>>, vector<1x32x96xf32>
    %11 = vector.shape_cast %10 : vector<1x32x96xf32> to vector<32x96xf32>
    %cst_9 = arith.constant dense<0.000000e+00> : vector<16x96xf32>
    %12 = tpu.matmul %9, %11, %cst_9 {dimension_numbers = #tpu.dot_dimension_numbers<[1], [0], [0], [1], [0, 0, 1, 1], [], []>} : vector<16x32xf32>, vector<32x96xf32>, vector<16x96xf32> -> vector<16x96xf32>
    %c0_10 = arith.constant 0 : index
    %c0_11 = arith.constant 0 : index
    %c0_12 = arith.constant 0 : index
    %13 = vector.load %arg3[%c0_10, %c0_11, %c0_12] : memref<2x1x96xf32, #tpu.memory_space<vmem>>, vector<1x1x96xf32>
    %14 = vector.shape_cast %13 : vector<1x1x96xf32> to vector<1x96xf32>
    %15 = vector.broadcast %14 : vector<1x96xf32> to vector<16x96xf32>
    %16 = arith.addf %12, %15 : vector<16x96xf32>
    %17 = vector.shape_cast %16 : vector<16x96xf32> to vector<2x8x96xf32>
    %18 = vector.extract_strided_slice %17 {offsets = [0, 0, 0], sizes = [2, 8, 16], strides = [1, 1, 1]} : vector<2x8x96xf32> to vector<2x8x16xf32>
    %19 = vector.extract_strided_slice %17 {offsets = [0, 0, 16], sizes = [2, 8, 16], strides = [1, 1, 1]} : vector<2x8x96xf32> to vector<2x8x16xf32>
    %20 = tpu.concatenate %18, %19 in 0 : vector<2x8x16xf32>, vector<2x8x16xf32> -> vector<4x8x16xf32>
    %cst_13 = arith.constant 0.176776692 : f32
    %21 = vector.broadcast %cst_13 : f32 to vector<4x8x16xf32>
    %22 = arith.mulf %20, %21 : vector<4x8x16xf32>
    %23 = vector.extract_strided_slice %17 {offsets = [0, 0, 32], sizes = [2, 8, 16], strides = [1, 1, 1]} : vector<2x8x96xf32> to vector<2x8x16xf32>
    %24 = vector.extract_strided_slice %17 {offsets = [0, 0, 48], sizes = [2, 8, 16], strides = [1, 1, 1]} : vector<2x8x96xf32> to vector<2x8x16xf32>
    %25 = tpu.concatenate %23, %24 in 0 : vector<2x8x16xf32>, vector<2x8x16xf32> -> vector<4x8x16xf32>
    %26 = vector.extract_strided_slice %17 {offsets = [0, 0, 64], sizes = [2, 8, 16], strides = [1, 1, 1]} : vector<2x8x96xf32> to vector<2x8x16xf32>
    %27 = vector.extract_strided_slice %17 {offsets = [0, 0, 80], sizes = [2, 8, 16], strides = [1, 1, 1]} : vector<2x8x96xf32> to vector<2x8x16xf32>
    %28 = tpu.concatenate %26, %27 in 0 : vector<2x8x16xf32>, vector<2x8x16xf32> -> vector<4x8x16xf32>
    "tpu.trace_start"() <{level = 10 : i32, message = "bqd,bkd->bqk"}> : () -> ()
    %cst_14 = arith.constant dense<0.000000e+00> : vector<4x8x8xf32>
    %29 = tpu.matmul %22, %25, %cst_14 {dimension_numbers = #tpu.dot_dimension_numbers<[2], [2], [1], [1], [0, 0, 0, 1, 1, 1], [0], [0]>} : vector<4x8x16xf32>, vector<4x8x16xf32>, vector<4x8x8xf32> -> vector<4x8x8xf32>
    "tpu.trace_stop"() : () -> ()
    %30 = vector.broadcast %8 : vector<4x1x8xf32> to vector<4x8x8xf32>
    %31 = arith.addf %29, %30 : vector<4x8x8xf32>
    %cst_15 = arith.constant dense<0xFF800000> : vector<4x8xf32>
    %32 = vector.multi_reduction <maximumf>, %31, %cst_15 [2] : vector<4x8x8xf32> to vector<4x8xf32>
    %33 = vector.shape_cast %32 : vector<4x8xf32> to vector<4x8x1xf32>
    %34 = vector.broadcast %33 : vector<4x8x1xf32> to vector<4x8x8xf32>
    %35 = arith.subf %31, %34 : vector<4x8x8xf32>
    %36 = math.exp %35 : vector<4x8x8xf32>
    %cst_16 = arith.constant dense<0.000000e+00> : vector<4x8xf32>
    %37 = vector.multi_reduction <add>, %36, %cst_16 [2] : vector<4x8x8xf32> to vector<4x8xf32>
    %38 = vector.shape_cast %37 : vector<4x8xf32> to vector<4x8x1xf32>
    %39 = tpu.reciprocal %38 {approx = true} : vector<4x8x1xf32> -> vector<4x8x1xf32>
    %40 = vector.broadcast %39 : vector<4x8x1xf32> to vector<4x8x8xf32>
    %41 = arith.mulf %36, %40 : vector<4x8x8xf32>
    "tpu.trace_start"() <{level = 10 : i32, message = "bqk,bkd->bqd"}> : () -> ()
    %cst_17 = arith.constant dense<0.000000e+00> : vector<4x8x16xf32>
    %42 = tpu.matmul %41, %28, %cst_17 {dimension_numbers = #tpu.dot_dimension_numbers<[2], [1], [1], [2], [0, 0, 0, 1, 1, 2], [0], [0]>} : vector<4x8x8xf32>, vector<4x8x16xf32>, vector<4x8x16xf32> -> vector<4x8x16xf32>
    "tpu.trace_stop"() : () -> ()
    %43 = vector.extract_strided_slice %42 {offsets = [0, 0, 0], sizes = [2, 8, 16], strides = [1, 1, 1]} : vector<4x8x16xf32> to vector<2x8x16xf32>
    %44 = vector.extract_strided_slice %42 {offsets = [2, 0, 0], sizes = [2, 8, 16], strides = [1, 1, 1]} : vector<4x8x16xf32> to vector<2x8x16xf32>
    %45 = tpu.concatenate %43, %44 in 2 : vector<2x8x16xf32>, vector<2x8x16xf32> -> vector<2x8x32xf32>
    %46 = vector.shape_cast %45 : vector<2x8x32xf32> to vector<16x32xf32>
    %47 = arith.addf %9, %46 : vector<16x32xf32>
    %c0_18 = arith.constant 0 : index
    %c0_19 = arith.constant 0 : index
    %c0_20 = arith.constant 0 : index
    %48 = vector.load %arg4[%c0_18, %c0_19, %c0_20] : memref<2x32x32xf32, #tpu.memory_space<vmem>>, vector<1x32x32xf32>
    %49 = vector.shape_cast %48 : vector<1x32x32xf32> to vector<32x32xf32>
    %cst_21 = arith.constant dense<0.000000e+00> : vector<16x32xf32>
    %50 = tpu.matmul %46, %49, %cst_21 {dimension_numbers = #tpu.dot_dimension_numbers<[1], [0], [0], [1], [0, 0, 1, 1], [], []>} : vector<16x32xf32>, vector<32x32xf32>, vector<16x32xf32> -> vector<16x32xf32>
    %c0_22 = arith.constant 0 : index
    %c0_23 = arith.constant 0 : index
    %c0_24 = arith.constant 0 : index
    %51 = vector.load %arg5[%c0_22, %c0_23, %c0_24] : memref<2x1x32xf32, #tpu.memory_space<vmem>>, vector<1x1x32xf32>
    %52 = vector.shape_cast %51 : vector<1x1x32xf32> to vector<1x32xf32>
    %53 = vector.broadcast %52 : vector<1x32xf32> to vector<16x32xf32>
    %54 = arith.addf %50, %53 : vector<16x32xf32>
    %cst_25 = arith.constant 0.000000e+00 : f32
    %55 = vector.broadcast %cst_25 : f32 to vector<16x32xf32>
    %56 = arith.maximumf %54, %55 : vector<16x32xf32>
    %c0_26 = arith.constant 0 : index
    %c0_27 = arith.constant 0 : index
    %c0_28 = arith.constant 0 : index
    %57 = vector.load %arg6[%c0_26, %c0_27, %c0_28] : memref<2x32x32xf32, #tpu.memory_space<vmem>>, vector<1x32x32xf32>
    %58 = vector.shape_cast %57 : vector<1x32x32xf32> to vector<32x32xf32>
    %cst_29 = arith.constant dense<0.000000e+00> : vector<16x32xf32>
    %59 = tpu.matmul %56, %58, %cst_29 {dimension_numbers = #tpu.dot_dimension_numbers<[1], [0], [0], [1], [0, 0, 1, 1], [], []>} : vector<16x32xf32>, vector<32x32xf32>, vector<16x32xf32> -> vector<16x32xf32>
    %c0_30 = arith.constant 0 : index
    %c0_31 = arith.constant 0 : index
    %c0_32 = arith.constant 0 : index
    %60 = vector.load %arg7[%c0_30, %c0_31, %c0_32] : memref<2x1x32xf32, #tpu.memory_space<vmem>>, vector<1x1x32xf32>
    %61 = vector.shape_cast %60 : vector<1x1x32xf32> to vector<1x32xf32>
    %62 = vector.broadcast %61 : vector<1x32xf32> to vector<16x32xf32>
    %63 = arith.addf %59, %62 : vector<16x32xf32>
    %64 = arith.addf %47, %63 : vector<16x32xf32>
    %cst_33 = arith.constant dense<0.000000e+00> : vector<16xf32>
    %65 = vector.multi_reduction <add>, %64, %cst_33 [1] : vector<16x32xf32> to vector<16xf32>
    %66 = vector.shape_cast %65 : vector<16xf32> to vector<16x1xf32>
    %cst_34 = arith.constant 3.200000e+01 : f32
    %67 = vector.broadcast %cst_34 : f32 to vector<16x1xf32>
    %68 = arith.divf %66, %67 : vector<16x1xf32>
    %69 = vector.broadcast %68 : vector<16x1xf32> to vector<16x32xf32>
    %70 = arith.subf %64, %69 : vector<16x32xf32>
    %71 = vector.broadcast %68 : vector<16x1xf32> to vector<16x32xf32>
    %72 = arith.subf %64, %71 : vector<16x32xf32>
    %73 = arith.mulf %70, %72 : vector<16x32xf32>
    %cst_35 = arith.constant dense<0.000000e+00> : vector<16xf32>
    %74 = vector.multi_reduction <add>, %73, %cst_35 [1] : vector<16x32xf32> to vector<16xf32>
    %75 = vector.shape_cast %74 : vector<16xf32> to vector<16x1xf32>
    %cst_36 = arith.constant 3.200000e+01 : f32
    %76 = vector.broadcast %cst_36 : f32 to vector<16x1xf32>
    %77 = arith.divf %75, %76 : vector<16x1xf32>
    %78 = vector.broadcast %68 : vector<16x1xf32> to vector<16x32xf32>
    %79 = arith.subf %64, %78 : vector<16x32xf32>
    %cst_37 = arith.constant 9.99999974E-6 : f32
    %80 = vector.broadcast %cst_37 : f32 to vector<16x1xf32>
    %81 = arith.addf %77, %80 : vector<16x1xf32>
    %82 = math.rsqrt %81 : vector<16x1xf32>
    %83 = vector.broadcast %82 : vector<16x1xf32> to vector<16x32xf32>
    %84 = arith.mulf %79, %83 : vector<16x32xf32>
    %c0_38 = arith.constant 0 : index
    %c0_39 = arith.constant 0 : index
    %c0_40 = arith.constant 0 : index
    %85 = vector.load %arg8[%c0_38, %c0_39, %c0_40] : memref<2x1x32xf32, #tpu.memory_space<vmem>>, vector<1x1x32xf32>
    %86 = vector.shape_cast %85 : vector<1x1x32xf32> to vector<1x32xf32>
    %87 = vector.broadcast %86 : vector<1x32xf32> to vector<16x32xf32>
    %88 = arith.mulf %84, %87 : vector<16x32xf32>
    %c0_41 = arith.constant 0 : index
    %c0_42 = arith.constant 0 : index
    %c0_43 = arith.constant 0 : index
    %89 = vector.load %arg9[%c0_41, %c0_42, %c0_43] : memref<2x1x32xf32, #tpu.memory_space<vmem>>, vector<1x1x32xf32>
    %90 = vector.shape_cast %89 : vector<1x1x32xf32> to vector<1x32xf32>
    %91 = vector.broadcast %90 : vector<1x32xf32> to vector<16x32xf32>
    %92 = arith.addf %88, %91 : vector<16x32xf32>
    %c1 = arith.constant 1 : index
    %c0_44 = arith.constant 0 : index
    %c0_45 = arith.constant 0 : index
    %93 = vector.load %arg2[%c1, %c0_44, %c0_45] : memref<2x32x96xf32, #tpu.memory_space<vmem>>, vector<1x32x96xf32>
    %94 = vector.shape_cast %93 : vector<1x32x96xf32> to vector<32x96xf32>
    %cst_46 = arith.constant dense<0.000000e+00> : vector<16x96xf32>
    %95 = tpu.matmul %92, %94, %cst_46 {dimension_numbers = #tpu.dot_dimension_numbers<[1], [0], [0], [1], [0, 0, 1, 1], [], []>} : vector<16x32xf32>, vector<32x96xf32>, vector<16x96xf32> -> vector<16x96xf32>
    %c1_47 = arith.constant 1 : index
    %c0_48 = arith.constant 0 : index
    %c0_49 = arith.constant 0 : index
    %96 = vector.load %arg3[%c1_47, %c0_48, %c0_49] : memref<2x1x96xf32, #tpu.memory_space<vmem>>, vector<1x1x96xf32>
    %97 = vector.shape_cast %96 : vector<1x1x96xf32> to vector<1x96xf32>
    %98 = vector.broadcast %97 : vector<1x96xf32> to vector<16x96xf32>
    %99 = arith.addf %95, %98 : vector<16x96xf32>
    %100 = vector.shape_cast %99 : vector<16x96xf32> to vector<2x8x96xf32>
    %101 = vector.extract_strided_slice %100 {offsets = [0, 0, 0], sizes = [2, 8, 16], strides = [1, 1, 1]} : vector<2x8x96xf32> to vector<2x8x16xf32>
    %102 = vector.extract_strided_slice %100 {offsets = [0, 0, 16], sizes = [2, 8, 16], strides = [1, 1, 1]} : vector<2x8x96xf32> to vector<2x8x16xf32>
    %103 = tpu.concatenate %101, %102 in 0 : vector<2x8x16xf32>, vector<2x8x16xf32> -> vector<4x8x16xf32>
    %cst_50 = arith.constant 0.176776692 : f32
    %104 = vector.broadcast %cst_50 : f32 to vector<4x8x16xf32>
    %105 = arith.mulf %103, %104 : vector<4x8x16xf32>
    %106 = vector.extract_strided_slice %100 {offsets = [0, 0, 32], sizes = [2, 8, 16], strides = [1, 1, 1]} : vector<2x8x96xf32> to vector<2x8x16xf32>
    %107 = vector.extract_strided_slice %100 {offsets = [0, 0, 48], sizes = [2, 8, 16], strides = [1, 1, 1]} : vector<2x8x96xf32> to vector<2x8x16xf32>
    %108 = tpu.concatenate %106, %107 in 0 : vector<2x8x16xf32>, vector<2x8x16xf32> -> vector<4x8x16xf32>
    %109 = vector.extract_strided_slice %100 {offsets = [0, 0, 64], sizes = [2, 8, 16], strides = [1, 1, 1]} : vector<2x8x96xf32> to vector<2x8x16xf32>
    %110 = vector.extract_strided_slice %100 {offsets = [0, 0, 80], sizes = [2, 8, 16], strides = [1, 1, 1]} : vector<2x8x96xf32> to vector<2x8x16xf32>
    %111 = tpu.concatenate %109, %110 in 0 : vector<2x8x16xf32>, vector<2x8x16xf32> -> vector<4x8x16xf32>
    "tpu.trace_start"() <{level = 10 : i32, message = "bqd,bkd->bqk"}> : () -> ()
    %cst_51 = arith.constant dense<0.000000e+00> : vector<4x8x8xf32>
    %112 = tpu.matmul %105, %108, %cst_51 {dimension_numbers = #tpu.dot_dimension_numbers<[2], [2], [1], [1], [0, 0, 0, 1, 1, 1], [0], [0]>} : vector<4x8x16xf32>, vector<4x8x16xf32>, vector<4x8x8xf32> -> vector<4x8x8xf32>
    "tpu.trace_stop"() : () -> ()
    %113 = vector.broadcast %8 : vector<4x1x8xf32> to vector<4x8x8xf32>
    %114 = arith.addf %112, %113 : vector<4x8x8xf32>
    %cst_52 = arith.constant dense<0xFF800000> : vector<4x8xf32>
    %115 = vector.multi_reduction <maximumf>, %114, %cst_52 [2] : vector<4x8x8xf32> to vector<4x8xf32>
    %116 = vector.shape_cast %115 : vector<4x8xf32> to vector<4x8x1xf32>
    %117 = vector.broadcast %116 : vector<4x8x1xf32> to vector<4x8x8xf32>
    %118 = arith.subf %114, %117 : vector<4x8x8xf32>
    %119 = math.exp %118 : vector<4x8x8xf32>
    %cst_53 = arith.constant dense<0.000000e+00> : vector<4x8xf32>
    %120 = vector.multi_reduction <add>, %119, %cst_53 [2] : vector<4x8x8xf32> to vector<4x8xf32>
    %121 = vector.shape_cast %120 : vector<4x8xf32> to vector<4x8x1xf32>
    %122 = tpu.reciprocal %121 {approx = true} : vector<4x8x1xf32> -> vector<4x8x1xf32>
    %123 = vector.broadcast %122 : vector<4x8x1xf32> to vector<4x8x8xf32>
    %124 = arith.mulf %119, %123 : vector<4x8x8xf32>
    "tpu.trace_start"() <{level = 10 : i32, message = "bqk,bkd->bqd"}> : () -> ()
    %cst_54 = arith.constant dense<0.000000e+00> : vector<4x8x16xf32>
    %125 = tpu.matmul %124, %111, %cst_54 {dimension_numbers = #tpu.dot_dimension_numbers<[2], [1], [1], [2], [0, 0, 0, 1, 1, 2], [0], [0]>} : vector<4x8x8xf32>, vector<4x8x16xf32>, vector<4x8x16xf32> -> vector<4x8x16xf32>
    "tpu.trace_stop"() : () -> ()
    %126 = vector.extract_strided_slice %125 {offsets = [0, 0, 0], sizes = [2, 8, 16], strides = [1, 1, 1]} : vector<4x8x16xf32> to vector<2x8x16xf32>
    %127 = vector.extract_strided_slice %125 {offsets = [2, 0, 0], sizes = [2, 8, 16], strides = [1, 1, 1]} : vector<4x8x16xf32> to vector<2x8x16xf32>
    %128 = tpu.concatenate %126, %127 in 2 : vector<2x8x16xf32>, vector<2x8x16xf32> -> vector<2x8x32xf32>
    %129 = vector.shape_cast %128 : vector<2x8x32xf32> to vector<16x32xf32>
    %130 = arith.addf %92, %129 : vector<16x32xf32>
    %c1_55 = arith.constant 1 : index
    %c0_56 = arith.constant 0 : index
    %c0_57 = arith.constant 0 : index
    %131 = vector.load %arg4[%c1_55, %c0_56, %c0_57] : memref<2x32x32xf32, #tpu.memory_space<vmem>>, vector<1x32x32xf32>
    %132 = vector.shape_cast %131 : vector<1x32x32xf32> to vector<32x32xf32>
    %cst_58 = arith.constant dense<0.000000e+00> : vector<16x32xf32>
    %133 = tpu.matmul %129, %132, %cst_58 {dimension_numbers = #tpu.dot_dimension_numbers<[1], [0], [0], [1], [0, 0, 1, 1], [], []>} : vector<16x32xf32>, vector<32x32xf32>, vector<16x32xf32> -> vector<16x32xf32>
    %c1_59 = arith.constant 1 : index
    %c0_60 = arith.constant 0 : index
    %c0_61 = arith.constant 0 : index
    %134 = vector.load %arg5[%c1_59, %c0_60, %c0_61] : memref<2x1x32xf32, #tpu.memory_space<vmem>>, vector<1x1x32xf32>
    %135 = vector.shape_cast %134 : vector<1x1x32xf32> to vector<1x32xf32>
    %136 = vector.broadcast %135 : vector<1x32xf32> to vector<16x32xf32>
    %137 = arith.addf %133, %136 : vector<16x32xf32>
    %cst_62 = arith.constant 0.000000e+00 : f32
    %138 = vector.broadcast %cst_62 : f32 to vector<16x32xf32>
    %139 = arith.maximumf %137, %138 : vector<16x32xf32>
    %c1_63 = arith.constant 1 : index
    %c0_64 = arith.constant 0 : index
    %c0_65 = arith.constant 0 : index
    %140 = vector.load %arg6[%c1_63, %c0_64, %c0_65] : memref<2x32x32xf32, #tpu.memory_space<vmem>>, vector<1x32x32xf32>
    %141 = vector.shape_cast %140 : vector<1x32x32xf32> to vector<32x32xf32>
    %cst_66 = arith.constant dense<0.000000e+00> : vector<16x32xf32>
    %142 = tpu.matmul %139, %141, %cst_66 {dimension_numbers = #tpu.dot_dimension_numbers<[1], [0], [0], [1], [0, 0, 1, 1], [], []>} : vector<16x32xf32>, vector<32x32xf32>, vector<16x32xf32> -> vector<16x32xf32>
    %c1_67 = arith.constant 1 : index
    %c0_68 = arith.constant 0 : index
    %c0_69 = arith.constant 0 : index
    %143 = vector.load %arg7[%c1_67, %c0_68, %c0_69] : memref<2x1x32xf32, #tpu.memory_space<vmem>>, vector<1x1x32xf32>
    %144 = vector.shape_cast %143 : vector<1x1x32xf32> to vector<1x32xf32>
    %145 = vector.broadcast %144 : vector<1x32xf32> to vector<16x32xf32>
    %146 = arith.addf %142, %145 : vector<16x32xf32>
    %147 = arith.addf %130, %146 : vector<16x32xf32>
    %cst_70 = arith.constant dense<0.000000e+00> : vector<16xf32>
    %148 = vector.multi_reduction <add>, %147, %cst_70 [1] : vector<16x32xf32> to vector<16xf32>
    %149 = vector.shape_cast %148 : vector<16xf32> to vector<16x1xf32>
    %cst_71 = arith.constant 3.200000e+01 : f32
    %150 = vector.broadcast %cst_71 : f32 to vector<16x1xf32>
    %151 = arith.divf %149, %150 : vector<16x1xf32>
    %152 = vector.broadcast %151 : vector<16x1xf32> to vector<16x32xf32>
    %153 = arith.subf %147, %152 : vector<16x32xf32>
    %154 = vector.broadcast %151 : vector<16x1xf32> to vector<16x32xf32>
    %155 = arith.subf %147, %154 : vector<16x32xf32>
    %156 = arith.mulf %153, %155 : vector<16x32xf32>
    %cst_72 = arith.constant dense<0.000000e+00> : vector<16xf32>
    %157 = vector.multi_reduction <add>, %156, %cst_72 [1] : vector<16x32xf32> to vector<16xf32>
    %158 = vector.shape_cast %157 : vector<16xf32> to vector<16x1xf32>
    %cst_73 = arith.constant 3.200000e+01 : f32
    %159 = vector.broadcast %cst_73 : f32 to vector<16x1xf32>
    %160 = arith.divf %158, %159 : vector<16x1xf32>
    %161 = vector.broadcast %151 : vector<16x1xf32> to vector<16x32xf32>
    %162 = arith.subf %147, %161 : vector<16x32xf32>
    %cst_74 = arith.constant 9.99999974E-6 : f32
    %163 = vector.broadcast %cst_74 : f32 to vector<16x1xf32>
    %164 = arith.addf %160, %163 : vector<16x1xf32>
    %165 = math.rsqrt %164 : vector<16x1xf32>
    %166 = vector.broadcast %165 : vector<16x1xf32> to vector<16x32xf32>
    %167 = arith.mulf %162, %166 : vector<16x32xf32>
    %c1_75 = arith.constant 1 : index
    %c0_76 = arith.constant 0 : index
    %c0_77 = arith.constant 0 : index
    %168 = vector.load %arg8[%c1_75, %c0_76, %c0_77] : memref<2x1x32xf32, #tpu.memory_space<vmem>>, vector<1x1x32xf32>
    %169 = vector.shape_cast %168 : vector<1x1x32xf32> to vector<1x32xf32>
    %170 = vector.broadcast %169 : vector<1x32xf32> to vector<16x32xf32>
    %171 = arith.mulf %167, %170 : vector<16x32xf32>
    %c1_78 = arith.constant 1 : index
    %c0_79 = arith.constant 0 : index
    %c0_80 = arith.constant 0 : index
    %172 = vector.load %arg9[%c1_78, %c0_79, %c0_80] : memref<2x1x32xf32, #tpu.memory_space<vmem>>, vector<1x1x32xf32>
    %173 = vector.shape_cast %172 : vector<1x1x32xf32> to vector<1x32xf32>
    %174 = vector.broadcast %173 : vector<1x32xf32> to vector<16x32xf32>
    %175 = arith.addf %171, %174 : vector<16x32xf32>
    %176 = vector.shape_cast %175 : vector<16x32xf32> to vector<2x8x32xf32>
    %177 = vector.extract_strided_slice %176 {offsets = [0, 7, 0], sizes = [2, 1, 32], strides = [1, 1, 1]} : vector<2x8x32xf32> to vector<2x1x32xf32>
    %178 = vector.shape_cast %177 : vector<2x1x32xf32> to vector<2x32xf32>
    %c0_81 = arith.constant 0 : index
    %c0_82 = arith.constant 0 : index
    %179 = vector.load %arg13[%c0_81, %c0_82] : memref<1x32xf32, #tpu.memory_space<vmem>>, vector<1x32xf32>
    %180 = vector.broadcast %179 : vector<1x32xf32> to vector<2x32xf32>
    %181 = arith.mulf %178, %180 : vector<2x32xf32>
    %cst_83 = arith.constant dense<0.000000e+00> : vector<2xf32>
    %182 = vector.multi_reduction <add>, %181, %cst_83 [1] : vector<2x32xf32> to vector<2xf32>
    %183 = vector.shape_cast %182 : vector<2xf32> to vector<2x1xf32>
    %c0_84 = arith.constant 0 : index
    %c0_85 = arith.constant 0 : index
    %184 = vector.load %arg14[%c0_84, %c0_85] : memref<1x1xf32, #tpu.memory_space<vmem>>, vector<1x1xf32>
    %185 = vector.broadcast %184 : vector<1x1xf32> to vector<2x1xf32>
    %186 = arith.addf %183, %185 : vector<2x1xf32>
    %cst_86 = arith.constant 0.000000e+00 : f32
    %187 = vector.broadcast %cst_86 : f32 to vector<2x1xf32>
    %188 = arith.subf %187, %186 : vector<2x1xf32>
    %189 = math.exp %188 : vector<2x1xf32>
    %cst_87 = arith.constant 1.000000e+00 : f32
    %190 = vector.broadcast %cst_87 : f32 to vector<2x1xf32>
    %191 = arith.addf %190, %189 : vector<2x1xf32>
    %cst_88 = arith.constant 1.000000e+00 : f32
    %192 = vector.broadcast %cst_88 : f32 to vector<2x1xf32>
    %193 = arith.divf %192, %191 : vector<2x1xf32>
    %cst_89 = arith.constant 1.000000e+00 : f32
    %194 = vector.broadcast %cst_89 : f32 to vector<2x1xf32>
    %195 = arith.addf %193, %194 : vector<2x1xf32>
    %c0_90 = arith.constant 0 : index
    %c0_91 = arith.constant 0 : index
    %196 = vector.load %arg10[%c0_90, %c0_91] : memref<32x64xf32, #tpu.memory_space<vmem>>, vector<32x64xf32>
    %cst_92 = arith.constant dense<0.000000e+00> : vector<16x64xf32>
    %197 = tpu.matmul %175, %196, %cst_92 {dimension_numbers = #tpu.dot_dimension_numbers<[1], [0], [0], [1], [0, 0, 1, 1], [], []>} : vector<16x32xf32>, vector<32x64xf32>, vector<16x64xf32> -> vector<16x64xf32>
    %198 = vector.shape_cast %197 : vector<16x64xf32> to vector<2x8x64xf32>
    %199 = vector.extract_strided_slice %198 {offsets = [0, 0, 0], sizes = [2, 7, 32], strides = [1, 1, 1]} : vector<2x8x64xf32> to vector<2x7x32xf32>
    %200 = vector.extract_strided_slice %198 {offsets = [0, 7, 32], sizes = [2, 1, 32], strides = [1, 1, 1]} : vector<2x8x64xf32> to vector<2x1x32xf32>
    %201 = vector.shape_cast %200 : vector<2x1x32xf32> to vector<2x32xf32>
    %202 = vector.shape_cast %201 : vector<2x32xf32> to vector<2x1x32xf32>
    %203 = vector.broadcast %202 : vector<2x1x32xf32> to vector<2x7x32xf32>
    %204 = arith.addf %203, %199 : vector<2x7x32xf32>
    %c0_93 = arith.constant 0 : index
    %c0_94 = arith.constant 0 : index
    %205 = vector.load %arg11[%c0_93, %c0_94] : memref<1x32xf32, #tpu.memory_space<vmem>>, vector<1x32xf32>
    %206 = vector.shape_cast %205 : vector<1x32xf32> to vector<1x1x32xf32>
    %207 = vector.broadcast %206 : vector<1x1x32xf32> to vector<2x7x32xf32>
    %208 = arith.addf %204, %207 : vector<2x7x32xf32>
    %cst_95 = arith.constant 0.000000e+00 : f32
    %209 = vector.broadcast %cst_95 : f32 to vector<2x7x32xf32>
    %210 = arith.maximumf %208, %209 : vector<2x7x32xf32>
    %c0_96 = arith.constant 0 : index
    %c0_97 = arith.constant 0 : index
    %211 = vector.load %arg12[%c0_96, %c0_97] : memref<1x32xf32, #tpu.memory_space<vmem>>, vector<1x32xf32>
    %212 = vector.shape_cast %211 : vector<1x32xf32> to vector<1x1x32xf32>
    %213 = vector.broadcast %212 : vector<1x1x32xf32> to vector<2x7x32xf32>
    %214 = arith.mulf %210, %213 : vector<2x7x32xf32>
    %cst_98 = arith.constant dense<0.000000e+00> : vector<2x7xf32>
    %215 = vector.multi_reduction <add>, %214, %cst_98 [2] : vector<2x7x32xf32> to vector<2x7xf32>
    %216 = vector.extract_strided_slice %1 {offsets = [0, 0], sizes = [2, 7], strides = [1, 1]} : vector<2x8xf32> to vector<2x7xf32>
    %cst_99 = arith.constant 0.000000e+00 : f32
    %217 = vector.broadcast %cst_99 : f32 to vector<2x7xf32>
    %218 = arith.cmpf oeq, %216, %217 : vector<2x7xf32>
    %cst_100 = arith.constant -1.000000e+30 : f32
    %219 = vector.broadcast %cst_100 : f32 to vector<2x7xf32>
    %220 = arith.select %218, %219, %215 : vector<2x7xi1>, vector<2x7xf32>
    %cst_101 = arith.constant 1.000000e+00 : f32
    %221 = vector.broadcast %cst_101 : f32 to vector<2x1xf32>
    %222 = arith.subf %195, %221 : vector<2x1xf32>
    %cst_102 = arith.constant 1.000000e+00 : f32
    %223 = vector.broadcast %cst_102 : f32 to vector<2x1xf32>
    %224 = arith.divf %223, %222 : vector<2x1xf32>
    %225 = vector.broadcast %222 : vector<2x1xf32> to vector<2x7xf32>
    %226 = arith.mulf %220, %225 : vector<2x7xf32>
    %cst_103 = arith.constant dense<0xFF800000> : vector<2xf32>
    %227 = vector.multi_reduction <maximumf>, %226, %cst_103 [1] : vector<2x7xf32> to vector<2xf32>
    %228 = vector.shape_cast %227 : vector<2xf32> to vector<2x1xf32>
    %cst_104 = arith.constant 1.000000e+00 : f32
    %229 = vector.broadcast %cst_104 : f32 to vector<2x1xf32>
    %230 = arith.subf %228, %229 : vector<2x1xf32>
    %cst_105 = arith.constant -1.9459101 : f32
    %231 = vector.broadcast %cst_105 : f32 to vector<2x1xf32>
    %232 = arith.mulf %222, %231 : vector<2x1xf32>
    %233 = math.exp %232 : vector<2x1xf32>
    %234 = arith.subf %228, %233 : vector<2x1xf32>
    %235 = vector.broadcast %230 : vector<2x1xf32> to vector<2x7xf32>
    %236 = arith.subf %226, %235 : vector<2x7xf32>
    %cst_106 = arith.constant 0.000000e+00 : f32
    %237 = vector.broadcast %cst_106 : f32 to vector<2x7xf32>
    %238 = arith.maximumf %236, %237 : vector<2x7xf32>
    %cst_107 = arith.constant 0.000000e+00 : f32
    %239 = vector.broadcast %cst_107 : f32 to vector<2x7xf32>
    %240 = arith.cmpf ogt, %238, %239 : vector<2x7xf32>
    %cst_108 = arith.constant 1.000000e+00 : f32
    %241 = vector.broadcast %cst_108 : f32 to vector<2x7xf32>
    %242 = arith.select %240, %238, %241 : vector<2x7xi1>, vector<2x7xf32>
    %cst_109 = arith.constant 0.000000e+00 : f32
    %243 = vector.broadcast %cst_109 : f32 to vector<2x7xf32>
    %244 = arith.cmpf ogt, %238, %243 : vector<2x7xf32>
    %245 = math.log %242 : vector<2x7xf32>
    %246 = vector.broadcast %224 : vector<2x1xf32> to vector<2x7xf32>
    %247 = arith.mulf %246, %245 : vector<2x7xf32>
    %248 = math.exp %247 : vector<2x7xf32>
    %cst_110 = arith.constant 0.000000e+00 : f32
    %249 = vector.broadcast %cst_110 : f32 to vector<2x7xf32>
    %250 = arith.select %244, %248, %249 : vector<2x7xi1>, vector<2x7xf32>
    %cst_111 = arith.constant dense<0.000000e+00> : vector<2xf32>
    %251 = vector.multi_reduction <add>, %250, %cst_111 [1] : vector<2x7xf32> to vector<2xf32>
    %252 = vector.shape_cast %251 : vector<2xf32> to vector<2x1xf32>
    %cst_112 = arith.constant 1.000000e+00 : f32
    %253 = vector.broadcast %cst_112 : f32 to vector<2x1xf32>
    %254 = arith.subf %252, %253 : vector<2x1xf32>
    %255 = arith.subf %234, %230 : vector<2x1xf32>
    %256 = vector.broadcast %234 : vector<2x1xf32> to vector<2x7xf32>
    %257 = arith.subf %226, %256 : vector<2x7xf32>
    %cst_113 = arith.constant 0.000000e+00 : f32
    %258 = vector.broadcast %cst_113 : f32 to vector<2x7xf32>
    %259 = arith.maximumf %257, %258 : vector<2x7xf32>
    %cst_114 = arith.constant 0.000000e+00 : f32
    %260 = vector.broadcast %cst_114 : f32 to vector<2x7xf32>
    %261 = arith.cmpf ogt, %259, %260 : vector<2x7xf32>
    %cst_115 = arith.constant 1.000000e+00 : f32
    %262 = vector.broadcast %cst_115 : f32 to vector<2x7xf32>
    %263 = arith.select %261, %259, %262 : vector<2x7xi1>, vector<2x7xf32>
    %cst_116 = arith.constant 0.000000e+00 : f32
    %264 = vector.broadcast %cst_116 : f32 to vector<2x7xf32>
    %265 = arith.cmpf ogt, %259, %264 : vector<2x7xf32>
    %266 = math.log %263 : vector<2x7xf32>
    %267 = vector.broadcast %224 : vector<2x1xf32> to vector<2x7xf32>
    %268 = arith.mulf %267, %266 : vector<2x7xf32>
    %269 = math.exp %268 : vector<2x7xf32>
    %cst_117 = arith.constant 0.000000e+00 : f32
    %270 = vector.broadcast %cst_117 : f32 to vector<2x7xf32>
    %271 = arith.select %265, %269, %270 : vector<2x7xi1>, vector<2x7xf32>
    %c0_i32 = arith.constant 0 : i32
    %cst_118 = arith.constant 5.000000e-01 : f32
    %272 = vector.broadcast %cst_118 : f32 to vector<2x1xf32>
    %273 = arith.mulf %255, %272 : vector<2x1xf32>
    %274 = arith.addf %230, %273 : vector<2x1xf32>
    %275 = vector.broadcast %274 : vector<2x1xf32> to vector<2x7xf32>
    %276 = arith.subf %226, %275 : vector<2x7xf32>
    %cst_119 = arith.constant 0.000000e+00 : f32
    %277 = vector.broadcast %cst_119 : f32 to vector<2x7xf32>
    %278 = arith.maximumf %276, %277 : vector<2x7xf32>
    %cst_120 = arith.constant 0.000000e+00 : f32
    %279 = vector.broadcast %cst_120 : f32 to vector<2x7xf32>
    %280 = arith.cmpf ogt, %278, %279 : vector<2x7xf32>
    %cst_121 = arith.constant 1.000000e+00 : f32
    %281 = vector.broadcast %cst_121 : f32 to vector<2x7xf32>
    %282 = arith.select %280, %278, %281 : vector<2x7xi1>, vector<2x7xf32>
    %cst_122 = arith.constant 0.000000e+00 : f32
    %283 = vector.broadcast %cst_122 : f32 to vector<2x7xf32>
    %284 = arith.cmpf ogt, %278, %283 : vector<2x7xf32>
    %285 = math.log %282 : vector<2x7xf32>
    %286 = vector.broadcast %224 : vector<2x1xf32> to vector<2x7xf32>
    %287 = arith.mulf %286, %285 : vector<2x7xf32>
    %288 = math.exp %287 : vector<2x7xf32>
    %cst_123 = arith.constant 0.000000e+00 : f32
    %289 = vector.broadcast %cst_123 : f32 to vector<2x7xf32>
    %290 = arith.select %284, %288, %289 : vector<2x7xi1>, vector<2x7xf32>
    %cst_124 = arith.constant dense<0.000000e+00> : vector<2xf32>
    %291 = vector.multi_reduction <add>, %290, %cst_124 [1] : vector<2x7xf32> to vector<2xf32>
    %292 = vector.shape_cast %291 : vector<2xf32> to vector<2x1xf32>
    %cst_125 = arith.constant 1.000000e+00 : f32
    %293 = vector.broadcast %cst_125 : f32 to vector<2x1xf32>
    %294 = arith.subf %292, %293 : vector<2x1xf32>
    %295 = arith.mulf %294, %254 : vector<2x1xf32>
    %cst_126 = arith.constant 0.000000e+00 : f32
    %296 = vector.broadcast %cst_126 : f32 to vector<2x1xf32>
    %297 = arith.cmpf oge, %295, %296 : vector<2x1xf32>
    %298 = arith.select %297, %274, %230 : vector<2x1xi1>, vector<2x1xf32>
    %c1_i32 = arith.constant 1 : i32
    %cst_127 = arith.constant 5.000000e-01 : f32
    %299 = vector.broadcast %cst_127 : f32 to vector<2x1xf32>
    %300 = arith.mulf %273, %299 : vector<2x1xf32>
    %301 = arith.addf %298, %300 : vector<2x1xf32>
    %302 = vector.broadcast %301 : vector<2x1xf32> to vector<2x7xf32>
    %303 = arith.subf %226, %302 : vector<2x7xf32>
    %cst_128 = arith.constant 0.000000e+00 : f32
    %304 = vector.broadcast %cst_128 : f32 to vector<2x7xf32>
    %305 = arith.maximumf %303, %304 : vector<2x7xf32>
    %cst_129 = arith.constant 0.000000e+00 : f32
    %306 = vector.broadcast %cst_129 : f32 to vector<2x7xf32>
    %307 = arith.cmpf ogt, %305, %306 : vector<2x7xf32>
    %cst_130 = arith.constant 1.000000e+00 : f32
    %308 = vector.broadcast %cst_130 : f32 to vector<2x7xf32>
    %309 = arith.select %307, %305, %308 : vector<2x7xi1>, vector<2x7xf32>
    %cst_131 = arith.constant 0.000000e+00 : f32
    %310 = vector.broadcast %cst_131 : f32 to vector<2x7xf32>
    %311 = arith.cmpf ogt, %305, %310 : vector<2x7xf32>
    %312 = math.log %309 : vector<2x7xf32>
    %313 = vector.broadcast %224 : vector<2x1xf32> to vector<2x7xf32>
    %314 = arith.mulf %313, %312 : vector<2x7xf32>
    %315 = math.exp %314 : vector<2x7xf32>
    %cst_132 = arith.constant 0.000000e+00 : f32
    %316 = vector.broadcast %cst_132 : f32 to vector<2x7xf32>
    %317 = arith.select %311, %315, %316 : vector<2x7xi1>, vector<2x7xf32>
    %cst_133 = arith.constant dense<0.000000e+00> : vector<2xf32>
    %318 = vector.multi_reduction <add>, %317, %cst_133 [1] : vector<2x7xf32> to vector<2xf32>
    %319 = vector.shape_cast %318 : vector<2xf32> to vector<2x1xf32>
    %cst_134 = arith.constant 1.000000e+00 : f32
    %320 = vector.broadcast %cst_134 : f32 to vector<2x1xf32>
    %321 = arith.subf %319, %320 : vector<2x1xf32>
    %322 = arith.mulf %321, %254 : vector<2x1xf32>
    %cst_135 = arith.constant 0.000000e+00 : f32
    %323 = vector.broadcast %cst_135 : f32 to vector<2x1xf32>
    %324 = arith.cmpf oge, %322, %323 : vector<2x1xf32>
    %325 = arith.select %324, %301, %298 : vector<2x1xi1>, vector<2x1xf32>
    %c2_i32 = arith.constant 2 : i32
    %cst_136 = arith.constant 5.000000e-01 : f32
    %326 = vector.broadcast %cst_136 : f32 to vector<2x1xf32>
    %327 = arith.mulf %300, %326 : vector<2x1xf32>
    %328 = arith.addf %325, %327 : vector<2x1xf32>
    %329 = vector.broadcast %328 : vector<2x1xf32> to vector<2x7xf32>
    %330 = arith.subf %226, %329 : vector<2x7xf32>
    %cst_137 = arith.constant 0.000000e+00 : f32
    %331 = vector.broadcast %cst_137 : f32 to vector<2x7xf32>
    %332 = arith.maximumf %330, %331 : vector<2x7xf32>
    %cst_138 = arith.constant 0.000000e+00 : f32
    %333 = vector.broadcast %cst_138 : f32 to vector<2x7xf32>
    %334 = arith.cmpf ogt, %332, %333 : vector<2x7xf32>
    %cst_139 = arith.constant 1.000000e+00 : f32
    %335 = vector.broadcast %cst_139 : f32 to vector<2x7xf32>
    %336 = arith.select %334, %332, %335 : vector<2x7xi1>, vector<2x7xf32>
    %cst_140 = arith.constant 0.000000e+00 : f32
    %337 = vector.broadcast %cst_140 : f32 to vector<2x7xf32>
    %338 = arith.cmpf ogt, %332, %337 : vector<2x7xf32>
    %339 = math.log %336 : vector<2x7xf32>
    %340 = vector.broadcast %224 : vector<2x1xf32> to vector<2x7xf32>
    %341 = arith.mulf %340, %339 : vector<2x7xf32>
    %342 = math.exp %341 : vector<2x7xf32>
    %cst_141 = arith.constant 0.000000e+00 : f32
    %343 = vector.broadcast %cst_141 : f32 to vector<2x7xf32>
    %344 = arith.select %338, %342, %343 : vector<2x7xi1>, vector<2x7xf32>
    %cst_142 = arith.constant dense<0.000000e+00> : vector<2xf32>
    %345 = vector.multi_reduction <add>, %344, %cst_142 [1] : vector<2x7xf32> to vector<2xf32>
    %346 = vector.shape_cast %345 : vector<2xf32> to vector<2x1xf32>
    %cst_143 = arith.constant 1.000000e+00 : f32
    %347 = vector.broadcast %cst_143 : f32 to vector<2x1xf32>
    %348 = arith.subf %346, %347 : vector<2x1xf32>
    %349 = arith.mulf %348, %254 : vector<2x1xf32>
    %cst_144 = arith.constant 0.000000e+00 : f32
    %350 = vector.broadcast %cst_144 : f32 to vector<2x1xf32>
    %351 = arith.cmpf oge, %349, %350 : vector<2x1xf32>
    %352 = arith.select %351, %328, %325 : vector<2x1xi1>, vector<2x1xf32>
    %c3_i32 = arith.constant 3 : i32
    %cst_145 = arith.constant 5.000000e-01 : f32
    %353 = vector.broadcast %cst_145 : f32 to vector<2x1xf32>
    %354 = arith.mulf %327, %353 : vector<2x1xf32>
    %355 = arith.addf %352, %354 : vector<2x1xf32>
    %356 = vector.broadcast %355 : vector<2x1xf32> to vector<2x7xf32>
    %357 = arith.subf %226, %356 : vector<2x7xf32>
    %cst_146 = arith.constant 0.000000e+00 : f32
    %358 = vector.broadcast %cst_146 : f32 to vector<2x7xf32>
    %359 = arith.maximumf %357, %358 : vector<2x7xf32>
    %cst_147 = arith.constant 0.000000e+00 : f32
    %360 = vector.broadcast %cst_147 : f32 to vector<2x7xf32>
    %361 = arith.cmpf ogt, %359, %360 : vector<2x7xf32>
    %cst_148 = arith.constant 1.000000e+00 : f32
    %362 = vector.broadcast %cst_148 : f32 to vector<2x7xf32>
    %363 = arith.select %361, %359, %362 : vector<2x7xi1>, vector<2x7xf32>
    %cst_149 = arith.constant 0.000000e+00 : f32
    %364 = vector.broadcast %cst_149 : f32 to vector<2x7xf32>
    %365 = arith.cmpf ogt, %359, %364 : vector<2x7xf32>
    %366 = math.log %363 : vector<2x7xf32>
    %367 = vector.broadcast %224 : vector<2x1xf32> to vector<2x7xf32>
    %368 = arith.mulf %367, %366 : vector<2x7xf32>
    %369 = math.exp %368 : vector<2x7xf32>
    %cst_150 = arith.constant 0.000000e+00 : f32
    %370 = vector.broadcast %cst_150 : f32 to vector<2x7xf32>
    %371 = arith.select %365, %369, %370 : vector<2x7xi1>, vector<2x7xf32>
    %cst_151 = arith.constant dense<0.000000e+00> : vector<2xf32>
    %372 = vector.multi_reduction <add>, %371, %cst_151 [1] : vector<2x7xf32> to vector<2xf32>
    %373 = vector.shape_cast %372 : vector<2xf32> to vector<2x1xf32>
    %cst_152 = arith.constant 1.000000e+00 : f32
    %374 = vector.broadcast %cst_152 : f32 to vector<2x1xf32>
    %375 = arith.subf %373, %374 : vector<2x1xf32>
    %376 = arith.mulf %375, %254 : vector<2x1xf32>
    %cst_153 = arith.constant 0.000000e+00 : f32
    %377 = vector.broadcast %cst_153 : f32 to vector<2x1xf32>
    %378 = arith.cmpf oge, %376, %377 : vector<2x1xf32>
    %379 = arith.select %378, %355, %352 : vector<2x1xi1>, vector<2x1xf32>
    %c4_i32 = arith.constant 4 : i32
    %cst_154 = arith.constant 5.000000e-01 : f32
    %380 = vector.broadcast %cst_154 : f32 to vector<2x1xf32>
    %381 = arith.mulf %354, %380 : vector<2x1xf32>
    %382 = arith.addf %379, %381 : vector<2x1xf32>
    %383 = vector.broadcast %382 : vector<2x1xf32> to vector<2x7xf32>
    %384 = arith.subf %226, %383 : vector<2x7xf32>
    %cst_155 = arith.constant 0.000000e+00 : f32
    %385 = vector.broadcast %cst_155 : f32 to vector<2x7xf32>
    %386 = arith.maximumf %384, %385 : vector<2x7xf32>
    %cst_156 = arith.constant 0.000000e+00 : f32
    %387 = vector.broadcast %cst_156 : f32 to vector<2x7xf32>
    %388 = arith.cmpf ogt, %386, %387 : vector<2x7xf32>
    %cst_157 = arith.constant 1.000000e+00 : f32
    %389 = vector.broadcast %cst_157 : f32 to vector<2x7xf32>
    %390 = arith.select %388, %386, %389 : vector<2x7xi1>, vector<2x7xf32>
    %cst_158 = arith.constant 0.000000e+00 : f32
    %391 = vector.broadcast %cst_158 : f32 to vector<2x7xf32>
    %392 = arith.cmpf ogt, %386, %391 : vector<2x7xf32>
    %393 = math.log %390 : vector<2x7xf32>
    %394 = vector.broadcast %224 : vector<2x1xf32> to vector<2x7xf32>
    %395 = arith.mulf %394, %393 : vector<2x7xf32>
    %396 = math.exp %395 : vector<2x7xf32>
    %cst_159 = arith.constant 0.000000e+00 : f32
    %397 = vector.broadcast %cst_159 : f32 to vector<2x7xf32>
    %398 = arith.select %392, %396, %397 : vector<2x7xi1>, vector<2x7xf32>
    %cst_160 = arith.constant dense<0.000000e+00> : vector<2xf32>
    %399 = vector.multi_reduction <add>, %398, %cst_160 [1] : vector<2x7xf32> to vector<2xf32>
    %400 = vector.shape_cast %399 : vector<2xf32> to vector<2x1xf32>
    %cst_161 = arith.constant 1.000000e+00 : f32
    %401 = vector.broadcast %cst_161 : f32 to vector<2x1xf32>
    %402 = arith.subf %400, %401 : vector<2x1xf32>
    %403 = arith.mulf %402, %254 : vector<2x1xf32>
    %cst_162 = arith.constant 0.000000e+00 : f32
    %404 = vector.broadcast %cst_162 : f32 to vector<2x1xf32>
    %405 = arith.cmpf oge, %403, %404 : vector<2x1xf32>
    %406 = arith.select %405, %382, %379 : vector<2x1xi1>, vector<2x1xf32>
    %c5_i32 = arith.constant 5 : i32
    %cst_163 = arith.constant 5.000000e-01 : f32
    %407 = vector.broadcast %cst_163 : f32 to vector<2x1xf32>
    %408 = arith.mulf %381, %407 : vector<2x1xf32>
    %409 = arith.addf %406, %408 : vector<2x1xf32>
    %410 = vector.broadcast %409 : vector<2x1xf32> to vector<2x7xf32>
    %411 = arith.subf %226, %410 : vector<2x7xf32>
    %cst_164 = arith.constant 0.000000e+00 : f32
    %412 = vector.broadcast %cst_164 : f32 to vector<2x7xf32>
    %413 = arith.maximumf %411, %412 : vector<2x7xf32>
    %cst_165 = arith.constant 0.000000e+00 : f32
    %414 = vector.broadcast %cst_165 : f32 to vector<2x7xf32>
    %415 = arith.cmpf ogt, %413, %414 : vector<2x7xf32>
    %cst_166 = arith.constant 1.000000e+00 : f32
    %416 = vector.broadcast %cst_166 : f32 to vector<2x7xf32>
    %417 = arith.select %415, %413, %416 : vector<2x7xi1>, vector<2x7xf32>
    %cst_167 = arith.constant 0.000000e+00 : f32
    %418 = vector.broadcast %cst_167 : f32 to vector<2x7xf32>
    %419 = arith.cmpf ogt, %413, %418 : vector<2x7xf32>
    %420 = math.log %417 : vector<2x7xf32>
    %421 = vector.broadcast %224 : vector<2x1xf32> to vector<2x7xf32>
    %422 = arith.mulf %421, %420 : vector<2x7xf32>
    %423 = math.exp %422 : vector<2x7xf32>
    %cst_168 = arith.constant 0.000000e+00 : f32
    %424 = vector.broadcast %cst_168 : f32 to vector<2x7xf32>
    %425 = arith.select %419, %423, %424 : vector<2x7xi1>, vector<2x7xf32>
    %cst_169 = arith.constant dense<0.000000e+00> : vector<2xf32>
    %426 = vector.multi_reduction <add>, %425, %cst_169 [1] : vector<2x7xf32> to vector<2xf32>
    %427 = vector.shape_cast %426 : vector<2xf32> to vector<2x1xf32>
    %cst_170 = arith.constant 1.000000e+00 : f32
    %428 = vector.broadcast %cst_170 : f32 to vector<2x1xf32>
    %429 = arith.subf %427, %428 : vector<2x1xf32>
    %430 = arith.mulf %429, %254 : vector<2x1xf32>
    %cst_171 = arith.constant 0.000000e+00 : f32
    %431 = vector.broadcast %cst_171 : f32 to vector<2x1xf32>
    %432 = arith.cmpf oge, %430, %431 : vector<2x1xf32>
    %433 = arith.select %432, %409, %406 : vector<2x1xi1>, vector<2x1xf32>
    %c6_i32 = arith.constant 6 : i32
    %cst_172 = arith.constant 5.000000e-01 : f32
    %434 = vector.broadcast %cst_172 : f32 to vector<2x1xf32>
    %435 = arith.mulf %408, %434 : vector<2x1xf32>
    %436 = arith.addf %433, %435 : vector<2x1xf32>
    %437 = vector.broadcast %436 : vector<2x1xf32> to vector<2x7xf32>
    %438 = arith.subf %226, %437 : vector<2x7xf32>
    %cst_173 = arith.constant 0.000000e+00 : f32
    %439 = vector.broadcast %cst_173 : f32 to vector<2x7xf32>
    %440 = arith.maximumf %438, %439 : vector<2x7xf32>
    %cst_174 = arith.constant 0.000000e+00 : f32
    %441 = vector.broadcast %cst_174 : f32 to vector<2x7xf32>
    %442 = arith.cmpf ogt, %440, %441 : vector<2x7xf32>
    %cst_175 = arith.constant 1.000000e+00 : f32
    %443 = vector.broadcast %cst_175 : f32 to vector<2x7xf32>
    %444 = arith.select %442, %440, %443 : vector<2x7xi1>, vector<2x7xf32>
    %cst_176 = arith.constant 0.000000e+00 : f32
    %445 = vector.broadcast %cst_176 : f32 to vector<2x7xf32>
    %446 = arith.cmpf ogt, %440, %445 : vector<2x7xf32>
    %447 = math.log %444 : vector<2x7xf32>
    %448 = vector.broadcast %224 : vector<2x1xf32> to vector<2x7xf32>
    %449 = arith.mulf %448, %447 : vector<2x7xf32>
    %450 = math.exp %449 : vector<2x7xf32>
    %cst_177 = arith.constant 0.000000e+00 : f32
    %451 = vector.broadcast %cst_177 : f32 to vector<2x7xf32>
    %452 = arith.select %446, %450, %451 : vector<2x7xi1>, vector<2x7xf32>
    %cst_178 = arith.constant dense<0.000000e+00> : vector<2xf32>
    %453 = vector.multi_reduction <add>, %452, %cst_178 [1] : vector<2x7xf32> to vector<2xf32>
    %454 = vector.shape_cast %453 : vector<2xf32> to vector<2x1xf32>
    %cst_179 = arith.constant 1.000000e+00 : f32
    %455 = vector.broadcast %cst_179 : f32 to vector<2x1xf32>
    %456 = arith.subf %454, %455 : vector<2x1xf32>
    %457 = arith.mulf %456, %254 : vector<2x1xf32>
    %cst_180 = arith.constant 0.000000e+00 : f32
    %458 = vector.broadcast %cst_180 : f32 to vector<2x1xf32>
    %459 = arith.cmpf oge, %457, %458 : vector<2x1xf32>
    %460 = arith.select %459, %436, %433 : vector<2x1xi1>, vector<2x1xf32>
    %c7_i32 = arith.constant 7 : i32
    %cst_181 = arith.constant 5.000000e-01 : f32
    %461 = vector.broadcast %cst_181 : f32 to vector<2x1xf32>
    %462 = arith.mulf %435, %461 : vector<2x1xf32>
    %463 = arith.addf %460, %462 : vector<2x1xf32>
    %464 = vector.broadcast %463 : vector<2x1xf32> to vector<2x7xf32>
    %465 = arith.subf %226, %464 : vector<2x7xf32>
    %cst_182 = arith.constant 0.000000e+00 : f32
    %466 = vector.broadcast %cst_182 : f32 to vector<2x7xf32>
    %467 = arith.maximumf %465, %466 : vector<2x7xf32>
    %cst_183 = arith.constant 0.000000e+00 : f32
    %468 = vector.broadcast %cst_183 : f32 to vector<2x7xf32>
    %469 = arith.cmpf ogt, %467, %468 : vector<2x7xf32>
    %cst_184 = arith.constant 1.000000e+00 : f32
    %470 = vector.broadcast %cst_184 : f32 to vector<2x7xf32>
    %471 = arith.select %469, %467, %470 : vector<2x7xi1>, vector<2x7xf32>
    %cst_185 = arith.constant 0.000000e+00 : f32
    %472 = vector.broadcast %cst_185 : f32 to vector<2x7xf32>
    %473 = arith.cmpf ogt, %467, %472 : vector<2x7xf32>
    %474 = math.log %471 : vector<2x7xf32>
    %475 = vector.broadcast %224 : vector<2x1xf32> to vector<2x7xf32>
    %476 = arith.mulf %475, %474 : vector<2x7xf32>
    %477 = math.exp %476 : vector<2x7xf32>
    %cst_186 = arith.constant 0.000000e+00 : f32
    %478 = vector.broadcast %cst_186 : f32 to vector<2x7xf32>
    %479 = arith.select %473, %477, %478 : vector<2x7xi1>, vector<2x7xf32>
    %cst_187 = arith.constant dense<0.000000e+00> : vector<2xf32>
    %480 = vector.multi_reduction <add>, %479, %cst_187 [1] : vector<2x7xf32> to vector<2xf32>
    %481 = vector.shape_cast %480 : vector<2xf32> to vector<2x1xf32>
    %cst_188 = arith.constant 1.000000e+00 : f32
    %482 = vector.broadcast %cst_188 : f32 to vector<2x1xf32>
    %483 = arith.subf %481, %482 : vector<2x1xf32>
    %484 = arith.mulf %483, %254 : vector<2x1xf32>
    %cst_189 = arith.constant 0.000000e+00 : f32
    %485 = vector.broadcast %cst_189 : f32 to vector<2x1xf32>
    %486 = arith.cmpf oge, %484, %485 : vector<2x1xf32>
    %487 = arith.select %486, %463, %460 : vector<2x1xi1>, vector<2x1xf32>
    %c8_i32 = arith.constant 8 : i32
    %cst_190 = arith.constant 5.000000e-01 : f32
    %488 = vector.broadcast %cst_190 : f32 to vector<2x1xf32>
    %489 = arith.mulf %462, %488 : vector<2x1xf32>
    %490 = arith.addf %487, %489 : vector<2x1xf32>
    %491 = vector.broadcast %490 : vector<2x1xf32> to vector<2x7xf32>
    %492 = arith.subf %226, %491 : vector<2x7xf32>
    %cst_191 = arith.constant 0.000000e+00 : f32
    %493 = vector.broadcast %cst_191 : f32 to vector<2x7xf32>
    %494 = arith.maximumf %492, %493 : vector<2x7xf32>
    %cst_192 = arith.constant 0.000000e+00 : f32
    %495 = vector.broadcast %cst_192 : f32 to vector<2x7xf32>
    %496 = arith.cmpf ogt, %494, %495 : vector<2x7xf32>
    %cst_193 = arith.constant 1.000000e+00 : f32
    %497 = vector.broadcast %cst_193 : f32 to vector<2x7xf32>
    %498 = arith.select %496, %494, %497 : vector<2x7xi1>, vector<2x7xf32>
    %cst_194 = arith.constant 0.000000e+00 : f32
    %499 = vector.broadcast %cst_194 : f32 to vector<2x7xf32>
    %500 = arith.cmpf ogt, %494, %499 : vector<2x7xf32>
    %501 = math.log %498 : vector<2x7xf32>
    %502 = vector.broadcast %224 : vector<2x1xf32> to vector<2x7xf32>
    %503 = arith.mulf %502, %501 : vector<2x7xf32>
    %504 = math.exp %503 : vector<2x7xf32>
    %cst_195 = arith.constant 0.000000e+00 : f32
    %505 = vector.broadcast %cst_195 : f32 to vector<2x7xf32>
    %506 = arith.select %500, %504, %505 : vector<2x7xi1>, vector<2x7xf32>
    %cst_196 = arith.constant dense<0.000000e+00> : vector<2xf32>
    %507 = vector.multi_reduction <add>, %506, %cst_196 [1] : vector<2x7xf32> to vector<2xf32>
    %508 = vector.shape_cast %507 : vector<2xf32> to vector<2x1xf32>
    %cst_197 = arith.constant 1.000000e+00 : f32
    %509 = vector.broadcast %cst_197 : f32 to vector<2x1xf32>
    %510 = arith.subf %508, %509 : vector<2x1xf32>
    %511 = arith.mulf %510, %254 : vector<2x1xf32>
    %cst_198 = arith.constant 0.000000e+00 : f32
    %512 = vector.broadcast %cst_198 : f32 to vector<2x1xf32>
    %513 = arith.cmpf oge, %511, %512 : vector<2x1xf32>
    %514 = arith.select %513, %490, %487 : vector<2x1xi1>, vector<2x1xf32>
    %c9_i32 = arith.constant 9 : i32
    %cst_199 = arith.constant 5.000000e-01 : f32
    %515 = vector.broadcast %cst_199 : f32 to vector<2x1xf32>
    %516 = arith.mulf %489, %515 : vector<2x1xf32>
    %517 = arith.addf %514, %516 : vector<2x1xf32>
    %518 = vector.broadcast %517 : vector<2x1xf32> to vector<2x7xf32>
    %519 = arith.subf %226, %518 : vector<2x7xf32>
    %cst_200 = arith.constant 0.000000e+00 : f32
    %520 = vector.broadcast %cst_200 : f32 to vector<2x7xf32>
    %521 = arith.maximumf %519, %520 : vector<2x7xf32>
    %cst_201 = arith.constant 0.000000e+00 : f32
    %522 = vector.broadcast %cst_201 : f32 to vector<2x7xf32>
    %523 = arith.cmpf ogt, %521, %522 : vector<2x7xf32>
    %cst_202 = arith.constant 1.000000e+00 : f32
    %524 = vector.broadcast %cst_202 : f32 to vector<2x7xf32>
    %525 = arith.select %523, %521, %524 : vector<2x7xi1>, vector<2x7xf32>
    %cst_203 = arith.constant 0.000000e+00 : f32
    %526 = vector.broadcast %cst_203 : f32 to vector<2x7xf32>
    %527 = arith.cmpf ogt, %521, %526 : vector<2x7xf32>
    %528 = math.log %525 : vector<2x7xf32>
    %529 = vector.broadcast %224 : vector<2x1xf32> to vector<2x7xf32>
    %530 = arith.mulf %529, %528 : vector<2x7xf32>
    %531 = math.exp %530 : vector<2x7xf32>
    %cst_204 = arith.constant 0.000000e+00 : f32
    %532 = vector.broadcast %cst_204 : f32 to vector<2x7xf32>
    %533 = arith.select %527, %531, %532 : vector<2x7xi1>, vector<2x7xf32>
    %cst_205 = arith.constant dense<0.000000e+00> : vector<2xf32>
    %534 = vector.multi_reduction <add>, %533, %cst_205 [1] : vector<2x7xf32> to vector<2xf32>
    %535 = vector.shape_cast %534 : vector<2xf32> to vector<2x1xf32>
    %cst_206 = arith.constant 1.000000e+00 : f32
    %536 = vector.broadcast %cst_206 : f32 to vector<2x1xf32>
    %537 = arith.subf %535, %536 : vector<2x1xf32>
    %538 = arith.mulf %537, %254 : vector<2x1xf32>
    %cst_207 = arith.constant 0.000000e+00 : f32
    %539 = vector.broadcast %cst_207 : f32 to vector<2x1xf32>
    %540 = arith.cmpf oge, %538, %539 : vector<2x1xf32>
    %541 = arith.select %540, %517, %514 : vector<2x1xi1>, vector<2x1xf32>
    %c10_i32 = arith.constant 10 : i32
    %cst_208 = arith.constant 5.000000e-01 : f32
    %542 = vector.broadcast %cst_208 : f32 to vector<2x1xf32>
    %543 = arith.mulf %516, %542 : vector<2x1xf32>
    %544 = arith.addf %541, %543 : vector<2x1xf32>
    %545 = vector.broadcast %544 : vector<2x1xf32> to vector<2x7xf32>
    %546 = arith.subf %226, %545 : vector<2x7xf32>
    %cst_209 = arith.constant 0.000000e+00 : f32
    %547 = vector.broadcast %cst_209 : f32 to vector<2x7xf32>
    %548 = arith.maximumf %546, %547 : vector<2x7xf32>
    %cst_210 = arith.constant 0.000000e+00 : f32
    %549 = vector.broadcast %cst_210 : f32 to vector<2x7xf32>
    %550 = arith.cmpf ogt, %548, %549 : vector<2x7xf32>
    %cst_211 = arith.constant 1.000000e+00 : f32
    %551 = vector.broadcast %cst_211 : f32 to vector<2x7xf32>
    %552 = arith.select %550, %548, %551 : vector<2x7xi1>, vector<2x7xf32>
    %cst_212 = arith.constant 0.000000e+00 : f32
    %553 = vector.broadcast %cst_212 : f32 to vector<2x7xf32>
    %554 = arith.cmpf ogt, %548, %553 : vector<2x7xf32>
    %555 = math.log %552 : vector<2x7xf32>
    %556 = vector.broadcast %224 : vector<2x1xf32> to vector<2x7xf32>
    %557 = arith.mulf %556, %555 : vector<2x7xf32>
    %558 = math.exp %557 : vector<2x7xf32>
    %cst_213 = arith.constant 0.000000e+00 : f32
    %559 = vector.broadcast %cst_213 : f32 to vector<2x7xf32>
    %560 = arith.select %554, %558, %559 : vector<2x7xi1>, vector<2x7xf32>
    %cst_214 = arith.constant dense<0.000000e+00> : vector<2xf32>
    %561 = vector.multi_reduction <add>, %560, %cst_214 [1] : vector<2x7xf32> to vector<2xf32>
    %562 = vector.shape_cast %561 : vector<2xf32> to vector<2x1xf32>
    %cst_215 = arith.constant 1.000000e+00 : f32
    %563 = vector.broadcast %cst_215 : f32 to vector<2x1xf32>
    %564 = arith.subf %562, %563 : vector<2x1xf32>
    %565 = arith.mulf %564, %254 : vector<2x1xf32>
    %cst_216 = arith.constant 0.000000e+00 : f32
    %566 = vector.broadcast %cst_216 : f32 to vector<2x1xf32>
    %567 = arith.cmpf oge, %565, %566 : vector<2x1xf32>
    %568 = arith.select %567, %544, %541 : vector<2x1xi1>, vector<2x1xf32>
    %c11_i32 = arith.constant 11 : i32
    %cst_217 = arith.constant 5.000000e-01 : f32
    %569 = vector.broadcast %cst_217 : f32 to vector<2x1xf32>
    %570 = arith.mulf %543, %569 : vector<2x1xf32>
    %571 = arith.addf %568, %570 : vector<2x1xf32>
    %572 = vector.broadcast %571 : vector<2x1xf32> to vector<2x7xf32>
    %573 = arith.subf %226, %572 : vector<2x7xf32>
    %cst_218 = arith.constant 0.000000e+00 : f32
    %574 = vector.broadcast %cst_218 : f32 to vector<2x7xf32>
    %575 = arith.maximumf %573, %574 : vector<2x7xf32>
    %cst_219 = arith.constant 0.000000e+00 : f32
    %576 = vector.broadcast %cst_219 : f32 to vector<2x7xf32>
    %577 = arith.cmpf ogt, %575, %576 : vector<2x7xf32>
    %cst_220 = arith.constant 1.000000e+00 : f32
    %578 = vector.broadcast %cst_220 : f32 to vector<2x7xf32>
    %579 = arith.select %577, %575, %578 : vector<2x7xi1>, vector<2x7xf32>
    %cst_221 = arith.constant 0.000000e+00 : f32
    %580 = vector.broadcast %cst_221 : f32 to vector<2x7xf32>
    %581 = arith.cmpf ogt, %575, %580 : vector<2x7xf32>
    %582 = math.log %579 : vector<2x7xf32>
    %583 = vector.broadcast %224 : vector<2x1xf32> to vector<2x7xf32>
    %584 = arith.mulf %583, %582 : vector<2x7xf32>
    %585 = math.exp %584 : vector<2x7xf32>
    %cst_222 = arith.constant 0.000000e+00 : f32
    %586 = vector.broadcast %cst_222 : f32 to vector<2x7xf32>
    %587 = arith.select %581, %585, %586 : vector<2x7xi1>, vector<2x7xf32>
    %cst_223 = arith.constant dense<0.000000e+00> : vector<2xf32>
    %588 = vector.multi_reduction <add>, %587, %cst_223 [1] : vector<2x7xf32> to vector<2xf32>
    %589 = vector.shape_cast %588 : vector<2xf32> to vector<2x1xf32>
    %cst_224 = arith.constant 1.000000e+00 : f32
    %590 = vector.broadcast %cst_224 : f32 to vector<2x1xf32>
    %591 = arith.subf %589, %590 : vector<2x1xf32>
    %592 = arith.mulf %591, %254 : vector<2x1xf32>
    %cst_225 = arith.constant 0.000000e+00 : f32
    %593 = vector.broadcast %cst_225 : f32 to vector<2x1xf32>
    %594 = arith.cmpf oge, %592, %593 : vector<2x1xf32>
    %595 = arith.select %594, %571, %568 : vector<2x1xi1>, vector<2x1xf32>
    %c12_i32 = arith.constant 12 : i32
    %cst_226 = arith.constant 5.000000e-01 : f32
    %596 = vector.broadcast %cst_226 : f32 to vector<2x1xf32>
    %597 = arith.mulf %570, %596 : vector<2x1xf32>
    %598 = arith.addf %595, %597 : vector<2x1xf32>
    %599 = vector.broadcast %598 : vector<2x1xf32> to vector<2x7xf32>
    %600 = arith.subf %226, %599 : vector<2x7xf32>
    %cst_227 = arith.constant 0.000000e+00 : f32
    %601 = vector.broadcast %cst_227 : f32 to vector<2x7xf32>
    %602 = arith.maximumf %600, %601 : vector<2x7xf32>
    %cst_228 = arith.constant 0.000000e+00 : f32
    %603 = vector.broadcast %cst_228 : f32 to vector<2x7xf32>
    %604 = arith.cmpf ogt, %602, %603 : vector<2x7xf32>
    %cst_229 = arith.constant 1.000000e+00 : f32
    %605 = vector.broadcast %cst_229 : f32 to vector<2x7xf32>
    %606 = arith.select %604, %602, %605 : vector<2x7xi1>, vector<2x7xf32>
    %cst_230 = arith.constant 0.000000e+00 : f32
    %607 = vector.broadcast %cst_230 : f32 to vector<2x7xf32>
    %608 = arith.cmpf ogt, %602, %607 : vector<2x7xf32>
    %609 = math.log %606 : vector<2x7xf32>
    %610 = vector.broadcast %224 : vector<2x1xf32> to vector<2x7xf32>
    %611 = arith.mulf %610, %609 : vector<2x7xf32>
    %612 = math.exp %611 : vector<2x7xf32>
    %cst_231 = arith.constant 0.000000e+00 : f32
    %613 = vector.broadcast %cst_231 : f32 to vector<2x7xf32>
    %614 = arith.select %608, %612, %613 : vector<2x7xi1>, vector<2x7xf32>
    %cst_232 = arith.constant dense<0.000000e+00> : vector<2xf32>
    %615 = vector.multi_reduction <add>, %614, %cst_232 [1] : vector<2x7xf32> to vector<2xf32>
    %616 = vector.shape_cast %615 : vector<2xf32> to vector<2x1xf32>
    %cst_233 = arith.constant 1.000000e+00 : f32
    %617 = vector.broadcast %cst_233 : f32 to vector<2x1xf32>
    %618 = arith.subf %616, %617 : vector<2x1xf32>
    %619 = arith.mulf %618, %254 : vector<2x1xf32>
    %cst_234 = arith.constant 0.000000e+00 : f32
    %620 = vector.broadcast %cst_234 : f32 to vector<2x1xf32>
    %621 = arith.cmpf oge, %619, %620 : vector<2x1xf32>
    %622 = arith.select %621, %598, %595 : vector<2x1xi1>, vector<2x1xf32>
    %c13_i32 = arith.constant 13 : i32
    %cst_235 = arith.constant 5.000000e-01 : f32
    %623 = vector.broadcast %cst_235 : f32 to vector<2x1xf32>
    %624 = arith.mulf %597, %623 : vector<2x1xf32>
    %625 = arith.addf %622, %624 : vector<2x1xf32>
    %626 = vector.broadcast %625 : vector<2x1xf32> to vector<2x7xf32>
    %627 = arith.subf %226, %626 : vector<2x7xf32>
    %cst_236 = arith.constant 0.000000e+00 : f32
    %628 = vector.broadcast %cst_236 : f32 to vector<2x7xf32>
    %629 = arith.maximumf %627, %628 : vector<2x7xf32>
    %cst_237 = arith.constant 0.000000e+00 : f32
    %630 = vector.broadcast %cst_237 : f32 to vector<2x7xf32>
    %631 = arith.cmpf ogt, %629, %630 : vector<2x7xf32>
    %cst_238 = arith.constant 1.000000e+00 : f32
    %632 = vector.broadcast %cst_238 : f32 to vector<2x7xf32>
    %633 = arith.select %631, %629, %632 : vector<2x7xi1>, vector<2x7xf32>
    %cst_239 = arith.constant 0.000000e+00 : f32
    %634 = vector.broadcast %cst_239 : f32 to vector<2x7xf32>
    %635 = arith.cmpf ogt, %629, %634 : vector<2x7xf32>
    %636 = math.log %633 : vector<2x7xf32>
    %637 = vector.broadcast %224 : vector<2x1xf32> to vector<2x7xf32>
    %638 = arith.mulf %637, %636 : vector<2x7xf32>
    %639 = math.exp %638 : vector<2x7xf32>
    %cst_240 = arith.constant 0.000000e+00 : f32
    %640 = vector.broadcast %cst_240 : f32 to vector<2x7xf32>
    %641 = arith.select %635, %639, %640 : vector<2x7xi1>, vector<2x7xf32>
    %cst_241 = arith.constant dense<0.000000e+00> : vector<2xf32>
    %642 = vector.multi_reduction <add>, %641, %cst_241 [1] : vector<2x7xf32> to vector<2xf32>
    %643 = vector.shape_cast %642 : vector<2xf32> to vector<2x1xf32>
    %cst_242 = arith.constant 1.000000e+00 : f32
    %644 = vector.broadcast %cst_242 : f32 to vector<2x1xf32>
    %645 = arith.subf %643, %644 : vector<2x1xf32>
    %646 = arith.mulf %645, %254 : vector<2x1xf32>
    %cst_243 = arith.constant 0.000000e+00 : f32
    %647 = vector.broadcast %cst_243 : f32 to vector<2x1xf32>
    %648 = arith.cmpf oge, %646, %647 : vector<2x1xf32>
    %649 = arith.select %648, %625, %622 : vector<2x1xi1>, vector<2x1xf32>
    %c14_i32 = arith.constant 14 : i32
    %cst_244 = arith.constant 5.000000e-01 : f32
    %650 = vector.broadcast %cst_244 : f32 to vector<2x1xf32>
    %651 = arith.mulf %624, %650 : vector<2x1xf32>
    %652 = arith.addf %649, %651 : vector<2x1xf32>
    %653 = vector.broadcast %652 : vector<2x1xf32> to vector<2x7xf32>
    %654 = arith.subf %226, %653 : vector<2x7xf32>
    %cst_245 = arith.constant 0.000000e+00 : f32
    %655 = vector.broadcast %cst_245 : f32 to vector<2x7xf32>
    %656 = arith.maximumf %654, %655 : vector<2x7xf32>
    %cst_246 = arith.constant 0.000000e+00 : f32
    %657 = vector.broadcast %cst_246 : f32 to vector<2x7xf32>
    %658 = arith.cmpf ogt, %656, %657 : vector<2x7xf32>
    %cst_247 = arith.constant 1.000000e+00 : f32
    %659 = vector.broadcast %cst_247 : f32 to vector<2x7xf32>
    %660 = arith.select %658, %656, %659 : vector<2x7xi1>, vector<2x7xf32>
    %cst_248 = arith.constant 0.000000e+00 : f32
    %661 = vector.broadcast %cst_248 : f32 to vector<2x7xf32>
    %662 = arith.cmpf ogt, %656, %661 : vector<2x7xf32>
    %663 = math.log %660 : vector<2x7xf32>
    %664 = vector.broadcast %224 : vector<2x1xf32> to vector<2x7xf32>
    %665 = arith.mulf %664, %663 : vector<2x7xf32>
    %666 = math.exp %665 : vector<2x7xf32>
    %cst_249 = arith.constant 0.000000e+00 : f32
    %667 = vector.broadcast %cst_249 : f32 to vector<2x7xf32>
    %668 = arith.select %662, %666, %667 : vector<2x7xi1>, vector<2x7xf32>
    %cst_250 = arith.constant dense<0.000000e+00> : vector<2xf32>
    %669 = vector.multi_reduction <add>, %668, %cst_250 [1] : vector<2x7xf32> to vector<2xf32>
    %670 = vector.shape_cast %669 : vector<2xf32> to vector<2x1xf32>
    %cst_251 = arith.constant 1.000000e+00 : f32
    %671 = vector.broadcast %cst_251 : f32 to vector<2x1xf32>
    %672 = arith.subf %670, %671 : vector<2x1xf32>
    %673 = arith.mulf %672, %254 : vector<2x1xf32>
    %cst_252 = arith.constant 0.000000e+00 : f32
    %674 = vector.broadcast %cst_252 : f32 to vector<2x1xf32>
    %675 = arith.cmpf oge, %673, %674 : vector<2x1xf32>
    %676 = arith.select %675, %652, %649 : vector<2x1xi1>, vector<2x1xf32>
    %c15_i32 = arith.constant 15 : i32
    %cst_253 = arith.constant 5.000000e-01 : f32
    %677 = vector.broadcast %cst_253 : f32 to vector<2x1xf32>
    %678 = arith.mulf %651, %677 : vector<2x1xf32>
    %679 = arith.addf %676, %678 : vector<2x1xf32>
    %680 = vector.broadcast %679 : vector<2x1xf32> to vector<2x7xf32>
    %681 = arith.subf %226, %680 : vector<2x7xf32>
    %cst_254 = arith.constant 0.000000e+00 : f32
    %682 = vector.broadcast %cst_254 : f32 to vector<2x7xf32>
    %683 = arith.maximumf %681, %682 : vector<2x7xf32>
    %cst_255 = arith.constant 0.000000e+00 : f32
    %684 = vector.broadcast %cst_255 : f32 to vector<2x7xf32>
    %685 = arith.cmpf ogt, %683, %684 : vector<2x7xf32>
    %cst_256 = arith.constant 1.000000e+00 : f32
    %686 = vector.broadcast %cst_256 : f32 to vector<2x7xf32>
    %687 = arith.select %685, %683, %686 : vector<2x7xi1>, vector<2x7xf32>
    %cst_257 = arith.constant 0.000000e+00 : f32
    %688 = vector.broadcast %cst_257 : f32 to vector<2x7xf32>
    %689 = arith.cmpf ogt, %683, %688 : vector<2x7xf32>
    %690 = math.log %687 : vector<2x7xf32>
    %691 = vector.broadcast %224 : vector<2x1xf32> to vector<2x7xf32>
    %692 = arith.mulf %691, %690 : vector<2x7xf32>
    %693 = math.exp %692 : vector<2x7xf32>
    %cst_258 = arith.constant 0.000000e+00 : f32
    %694 = vector.broadcast %cst_258 : f32 to vector<2x7xf32>
    %695 = arith.select %689, %693, %694 : vector<2x7xi1>, vector<2x7xf32>
    %cst_259 = arith.constant dense<0.000000e+00> : vector<2xf32>
    %696 = vector.multi_reduction <add>, %695, %cst_259 [1] : vector<2x7xf32> to vector<2xf32>
    %697 = vector.shape_cast %696 : vector<2xf32> to vector<2x1xf32>
    %cst_260 = arith.constant 1.000000e+00 : f32
    %698 = vector.broadcast %cst_260 : f32 to vector<2x1xf32>
    %699 = arith.subf %697, %698 : vector<2x1xf32>
    %700 = arith.mulf %699, %254 : vector<2x1xf32>
    %cst_261 = arith.constant 0.000000e+00 : f32
    %701 = vector.broadcast %cst_261 : f32 to vector<2x1xf32>
    %702 = arith.cmpf oge, %700, %701 : vector<2x1xf32>
    %703 = arith.select %702, %679, %676 : vector<2x1xi1>, vector<2x1xf32>
    %c16_i32 = arith.constant 16 : i32
    %cst_262 = arith.constant 5.000000e-01 : f32
    %704 = vector.broadcast %cst_262 : f32 to vector<2x1xf32>
    %705 = arith.mulf %678, %704 : vector<2x1xf32>
    %706 = arith.addf %703, %705 : vector<2x1xf32>
    %707 = vector.broadcast %706 : vector<2x1xf32> to vector<2x7xf32>
    %708 = arith.subf %226, %707 : vector<2x7xf32>
    %cst_263 = arith.constant 0.000000e+00 : f32
    %709 = vector.broadcast %cst_263 : f32 to vector<2x7xf32>
    %710 = arith.maximumf %708, %709 : vector<2x7xf32>
    %cst_264 = arith.constant 0.000000e+00 : f32
    %711 = vector.broadcast %cst_264 : f32 to vector<2x7xf32>
    %712 = arith.cmpf ogt, %710, %711 : vector<2x7xf32>
    %cst_265 = arith.constant 1.000000e+00 : f32
    %713 = vector.broadcast %cst_265 : f32 to vector<2x7xf32>
    %714 = arith.select %712, %710, %713 : vector<2x7xi1>, vector<2x7xf32>
    %cst_266 = arith.constant 0.000000e+00 : f32
    %715 = vector.broadcast %cst_266 : f32 to vector<2x7xf32>
    %716 = arith.cmpf ogt, %710, %715 : vector<2x7xf32>
    %717 = math.log %714 : vector<2x7xf32>
    %718 = vector.broadcast %224 : vector<2x1xf32> to vector<2x7xf32>
    %719 = arith.mulf %718, %717 : vector<2x7xf32>
    %720 = math.exp %719 : vector<2x7xf32>
    %cst_267 = arith.constant 0.000000e+00 : f32
    %721 = vector.broadcast %cst_267 : f32 to vector<2x7xf32>
    %722 = arith.select %716, %720, %721 : vector<2x7xi1>, vector<2x7xf32>
    %cst_268 = arith.constant dense<0.000000e+00> : vector<2xf32>
    %723 = vector.multi_reduction <add>, %722, %cst_268 [1] : vector<2x7xf32> to vector<2xf32>
    %724 = vector.shape_cast %723 : vector<2xf32> to vector<2x1xf32>
    %cst_269 = arith.constant 1.000000e+00 : f32
    %725 = vector.broadcast %cst_269 : f32 to vector<2x1xf32>
    %726 = arith.subf %724, %725 : vector<2x1xf32>
    %727 = arith.mulf %726, %254 : vector<2x1xf32>
    %cst_270 = arith.constant 0.000000e+00 : f32
    %728 = vector.broadcast %cst_270 : f32 to vector<2x1xf32>
    %729 = arith.cmpf oge, %727, %728 : vector<2x1xf32>
    %730 = arith.select %729, %706, %703 : vector<2x1xi1>, vector<2x1xf32>
    %c17_i32 = arith.constant 17 : i32
    %cst_271 = arith.constant 5.000000e-01 : f32
    %731 = vector.broadcast %cst_271 : f32 to vector<2x1xf32>
    %732 = arith.mulf %705, %731 : vector<2x1xf32>
    %733 = arith.addf %730, %732 : vector<2x1xf32>
    %734 = vector.broadcast %733 : vector<2x1xf32> to vector<2x7xf32>
    %735 = arith.subf %226, %734 : vector<2x7xf32>
    %cst_272 = arith.constant 0.000000e+00 : f32
    %736 = vector.broadcast %cst_272 : f32 to vector<2x7xf32>
    %737 = arith.maximumf %735, %736 : vector<2x7xf32>
    %cst_273 = arith.constant 0.000000e+00 : f32
    %738 = vector.broadcast %cst_273 : f32 to vector<2x7xf32>
    %739 = arith.cmpf ogt, %737, %738 : vector<2x7xf32>
    %cst_274 = arith.constant 1.000000e+00 : f32
    %740 = vector.broadcast %cst_274 : f32 to vector<2x7xf32>
    %741 = arith.select %739, %737, %740 : vector<2x7xi1>, vector<2x7xf32>
    %cst_275 = arith.constant 0.000000e+00 : f32
    %742 = vector.broadcast %cst_275 : f32 to vector<2x7xf32>
    %743 = arith.cmpf ogt, %737, %742 : vector<2x7xf32>
    %744 = math.log %741 : vector<2x7xf32>
    %745 = vector.broadcast %224 : vector<2x1xf32> to vector<2x7xf32>
    %746 = arith.mulf %745, %744 : vector<2x7xf32>
    %747 = math.exp %746 : vector<2x7xf32>
    %cst_276 = arith.constant 0.000000e+00 : f32
    %748 = vector.broadcast %cst_276 : f32 to vector<2x7xf32>
    %749 = arith.select %743, %747, %748 : vector<2x7xi1>, vector<2x7xf32>
    %cst_277 = arith.constant dense<0.000000e+00> : vector<2xf32>
    %750 = vector.multi_reduction <add>, %749, %cst_277 [1] : vector<2x7xf32> to vector<2xf32>
    %751 = vector.shape_cast %750 : vector<2xf32> to vector<2x1xf32>
    %cst_278 = arith.constant 1.000000e+00 : f32
    %752 = vector.broadcast %cst_278 : f32 to vector<2x1xf32>
    %753 = arith.subf %751, %752 : vector<2x1xf32>
    %754 = arith.mulf %753, %254 : vector<2x1xf32>
    %cst_279 = arith.constant 0.000000e+00 : f32
    %755 = vector.broadcast %cst_279 : f32 to vector<2x1xf32>
    %756 = arith.cmpf oge, %754, %755 : vector<2x1xf32>
    %757 = arith.select %756, %733, %730 : vector<2x1xi1>, vector<2x1xf32>
    %c18_i32 = arith.constant 18 : i32
    %cst_280 = arith.constant 5.000000e-01 : f32
    %758 = vector.broadcast %cst_280 : f32 to vector<2x1xf32>
    %759 = arith.mulf %732, %758 : vector<2x1xf32>
    %760 = arith.addf %757, %759 : vector<2x1xf32>
    %761 = vector.broadcast %760 : vector<2x1xf32> to vector<2x7xf32>
    %762 = arith.subf %226, %761 : vector<2x7xf32>
    %cst_281 = arith.constant 0.000000e+00 : f32
    %763 = vector.broadcast %cst_281 : f32 to vector<2x7xf32>
    %764 = arith.maximumf %762, %763 : vector<2x7xf32>
    %cst_282 = arith.constant 0.000000e+00 : f32
    %765 = vector.broadcast %cst_282 : f32 to vector<2x7xf32>
    %766 = arith.cmpf ogt, %764, %765 : vector<2x7xf32>
    %cst_283 = arith.constant 1.000000e+00 : f32
    %767 = vector.broadcast %cst_283 : f32 to vector<2x7xf32>
    %768 = arith.select %766, %764, %767 : vector<2x7xi1>, vector<2x7xf32>
    %cst_284 = arith.constant 0.000000e+00 : f32
    %769 = vector.broadcast %cst_284 : f32 to vector<2x7xf32>
    %770 = arith.cmpf ogt, %764, %769 : vector<2x7xf32>
    %771 = math.log %768 : vector<2x7xf32>
    %772 = vector.broadcast %224 : vector<2x1xf32> to vector<2x7xf32>
    %773 = arith.mulf %772, %771 : vector<2x7xf32>
    %774 = math.exp %773 : vector<2x7xf32>
    %cst_285 = arith.constant 0.000000e+00 : f32
    %775 = vector.broadcast %cst_285 : f32 to vector<2x7xf32>
    %776 = arith.select %770, %774, %775 : vector<2x7xi1>, vector<2x7xf32>
    %cst_286 = arith.constant dense<0.000000e+00> : vector<2xf32>
    %777 = vector.multi_reduction <add>, %776, %cst_286 [1] : vector<2x7xf32> to vector<2xf32>
    %778 = vector.shape_cast %777 : vector<2xf32> to vector<2x1xf32>
    %cst_287 = arith.constant 1.000000e+00 : f32
    %779 = vector.broadcast %cst_287 : f32 to vector<2x1xf32>
    %780 = arith.subf %778, %779 : vector<2x1xf32>
    %781 = arith.mulf %780, %254 : vector<2x1xf32>
    %cst_288 = arith.constant 0.000000e+00 : f32
    %782 = vector.broadcast %cst_288 : f32 to vector<2x1xf32>
    %783 = arith.cmpf oge, %781, %782 : vector<2x1xf32>
    %784 = arith.select %783, %760, %757 : vector<2x1xi1>, vector<2x1xf32>
    %c19_i32 = arith.constant 19 : i32
    %cst_289 = arith.constant 5.000000e-01 : f32
    %785 = vector.broadcast %cst_289 : f32 to vector<2x1xf32>
    %786 = arith.mulf %759, %785 : vector<2x1xf32>
    %787 = arith.addf %784, %786 : vector<2x1xf32>
    %788 = vector.broadcast %787 : vector<2x1xf32> to vector<2x7xf32>
    %789 = arith.subf %226, %788 : vector<2x7xf32>
    %cst_290 = arith.constant 0.000000e+00 : f32
    %790 = vector.broadcast %cst_290 : f32 to vector<2x7xf32>
    %791 = arith.maximumf %789, %790 : vector<2x7xf32>
    %cst_291 = arith.constant 0.000000e+00 : f32
    %792 = vector.broadcast %cst_291 : f32 to vector<2x7xf32>
    %793 = arith.cmpf ogt, %791, %792 : vector<2x7xf32>
    %cst_292 = arith.constant 1.000000e+00 : f32
    %794 = vector.broadcast %cst_292 : f32 to vector<2x7xf32>
    %795 = arith.select %793, %791, %794 : vector<2x7xi1>, vector<2x7xf32>
    %cst_293 = arith.constant 0.000000e+00 : f32
    %796 = vector.broadcast %cst_293 : f32 to vector<2x7xf32>
    %797 = arith.cmpf ogt, %791, %796 : vector<2x7xf32>
    %798 = math.log %795 : vector<2x7xf32>
    %799 = vector.broadcast %224 : vector<2x1xf32> to vector<2x7xf32>
    %800 = arith.mulf %799, %798 : vector<2x7xf32>
    %801 = math.exp %800 : vector<2x7xf32>
    %cst_294 = arith.constant 0.000000e+00 : f32
    %802 = vector.broadcast %cst_294 : f32 to vector<2x7xf32>
    %803 = arith.select %797, %801, %802 : vector<2x7xi1>, vector<2x7xf32>
    %cst_295 = arith.constant dense<0.000000e+00> : vector<2xf32>
    %804 = vector.multi_reduction <add>, %803, %cst_295 [1] : vector<2x7xf32> to vector<2xf32>
    %805 = vector.shape_cast %804 : vector<2xf32> to vector<2x1xf32>
    %cst_296 = arith.constant 1.000000e+00 : f32
    %806 = vector.broadcast %cst_296 : f32 to vector<2x1xf32>
    %807 = arith.subf %805, %806 : vector<2x1xf32>
    %808 = arith.mulf %807, %254 : vector<2x1xf32>
    %cst_297 = arith.constant 0.000000e+00 : f32
    %809 = vector.broadcast %cst_297 : f32 to vector<2x1xf32>
    %810 = arith.cmpf oge, %808, %809 : vector<2x1xf32>
    %811 = arith.select %810, %787, %784 : vector<2x1xi1>, vector<2x1xf32>
    %c20_i32 = arith.constant 20 : i32
    %cst_298 = arith.constant 5.000000e-01 : f32
    %812 = vector.broadcast %cst_298 : f32 to vector<2x1xf32>
    %813 = arith.mulf %786, %812 : vector<2x1xf32>
    %814 = arith.addf %811, %813 : vector<2x1xf32>
    %815 = vector.broadcast %814 : vector<2x1xf32> to vector<2x7xf32>
    %816 = arith.subf %226, %815 : vector<2x7xf32>
    %cst_299 = arith.constant 0.000000e+00 : f32
    %817 = vector.broadcast %cst_299 : f32 to vector<2x7xf32>
    %818 = arith.maximumf %816, %817 : vector<2x7xf32>
    %cst_300 = arith.constant 0.000000e+00 : f32
    %819 = vector.broadcast %cst_300 : f32 to vector<2x7xf32>
    %820 = arith.cmpf ogt, %818, %819 : vector<2x7xf32>
    %cst_301 = arith.constant 1.000000e+00 : f32
    %821 = vector.broadcast %cst_301 : f32 to vector<2x7xf32>
    %822 = arith.select %820, %818, %821 : vector<2x7xi1>, vector<2x7xf32>
    %cst_302 = arith.constant 0.000000e+00 : f32
    %823 = vector.broadcast %cst_302 : f32 to vector<2x7xf32>
    %824 = arith.cmpf ogt, %818, %823 : vector<2x7xf32>
    %825 = math.log %822 : vector<2x7xf32>
    %826 = vector.broadcast %224 : vector<2x1xf32> to vector<2x7xf32>
    %827 = arith.mulf %826, %825 : vector<2x7xf32>
    %828 = math.exp %827 : vector<2x7xf32>
    %cst_303 = arith.constant 0.000000e+00 : f32
    %829 = vector.broadcast %cst_303 : f32 to vector<2x7xf32>
    %830 = arith.select %824, %828, %829 : vector<2x7xi1>, vector<2x7xf32>
    %cst_304 = arith.constant dense<0.000000e+00> : vector<2xf32>
    %831 = vector.multi_reduction <add>, %830, %cst_304 [1] : vector<2x7xf32> to vector<2xf32>
    %832 = vector.shape_cast %831 : vector<2xf32> to vector<2x1xf32>
    %cst_305 = arith.constant 1.000000e+00 : f32
    %833 = vector.broadcast %cst_305 : f32 to vector<2x1xf32>
    %834 = arith.subf %832, %833 : vector<2x1xf32>
    %835 = arith.mulf %834, %254 : vector<2x1xf32>
    %cst_306 = arith.constant 0.000000e+00 : f32
    %836 = vector.broadcast %cst_306 : f32 to vector<2x1xf32>
    %837 = arith.cmpf oge, %835, %836 : vector<2x1xf32>
    %838 = arith.select %837, %814, %811 : vector<2x1xi1>, vector<2x1xf32>
    %c21_i32 = arith.constant 21 : i32
    %cst_307 = arith.constant 5.000000e-01 : f32
    %839 = vector.broadcast %cst_307 : f32 to vector<2x1xf32>
    %840 = arith.mulf %813, %839 : vector<2x1xf32>
    %841 = arith.addf %838, %840 : vector<2x1xf32>
    %842 = vector.broadcast %841 : vector<2x1xf32> to vector<2x7xf32>
    %843 = arith.subf %226, %842 : vector<2x7xf32>
    %cst_308 = arith.constant 0.000000e+00 : f32
    %844 = vector.broadcast %cst_308 : f32 to vector<2x7xf32>
    %845 = arith.maximumf %843, %844 : vector<2x7xf32>
    %cst_309 = arith.constant 0.000000e+00 : f32
    %846 = vector.broadcast %cst_309 : f32 to vector<2x7xf32>
    %847 = arith.cmpf ogt, %845, %846 : vector<2x7xf32>
    %cst_310 = arith.constant 1.000000e+00 : f32
    %848 = vector.broadcast %cst_310 : f32 to vector<2x7xf32>
    %849 = arith.select %847, %845, %848 : vector<2x7xi1>, vector<2x7xf32>
    %cst_311 = arith.constant 0.000000e+00 : f32
    %850 = vector.broadcast %cst_311 : f32 to vector<2x7xf32>
    %851 = arith.cmpf ogt, %845, %850 : vector<2x7xf32>
    %852 = math.log %849 : vector<2x7xf32>
    %853 = vector.broadcast %224 : vector<2x1xf32> to vector<2x7xf32>
    %854 = arith.mulf %853, %852 : vector<2x7xf32>
    %855 = math.exp %854 : vector<2x7xf32>
    %cst_312 = arith.constant 0.000000e+00 : f32
    %856 = vector.broadcast %cst_312 : f32 to vector<2x7xf32>
    %857 = arith.select %851, %855, %856 : vector<2x7xi1>, vector<2x7xf32>
    %cst_313 = arith.constant dense<0.000000e+00> : vector<2xf32>
    %858 = vector.multi_reduction <add>, %857, %cst_313 [1] : vector<2x7xf32> to vector<2xf32>
    %859 = vector.shape_cast %858 : vector<2xf32> to vector<2x1xf32>
    %cst_314 = arith.constant 1.000000e+00 : f32
    %860 = vector.broadcast %cst_314 : f32 to vector<2x1xf32>
    %861 = arith.subf %859, %860 : vector<2x1xf32>
    %862 = arith.mulf %861, %254 : vector<2x1xf32>
    %cst_315 = arith.constant 0.000000e+00 : f32
    %863 = vector.broadcast %cst_315 : f32 to vector<2x1xf32>
    %864 = arith.cmpf oge, %862, %863 : vector<2x1xf32>
    %865 = arith.select %864, %841, %838 : vector<2x1xi1>, vector<2x1xf32>
    %c22_i32 = arith.constant 22 : i32
    %cst_316 = arith.constant 5.000000e-01 : f32
    %866 = vector.broadcast %cst_316 : f32 to vector<2x1xf32>
    %867 = arith.mulf %840, %866 : vector<2x1xf32>
    %868 = arith.addf %865, %867 : vector<2x1xf32>
    %869 = vector.broadcast %868 : vector<2x1xf32> to vector<2x7xf32>
    %870 = arith.subf %226, %869 : vector<2x7xf32>
    %cst_317 = arith.constant 0.000000e+00 : f32
    %871 = vector.broadcast %cst_317 : f32 to vector<2x7xf32>
    %872 = arith.maximumf %870, %871 : vector<2x7xf32>
    %cst_318 = arith.constant 0.000000e+00 : f32
    %873 = vector.broadcast %cst_318 : f32 to vector<2x7xf32>
    %874 = arith.cmpf ogt, %872, %873 : vector<2x7xf32>
    %cst_319 = arith.constant 1.000000e+00 : f32
    %875 = vector.broadcast %cst_319 : f32 to vector<2x7xf32>
    %876 = arith.select %874, %872, %875 : vector<2x7xi1>, vector<2x7xf32>
    %cst_320 = arith.constant 0.000000e+00 : f32
    %877 = vector.broadcast %cst_320 : f32 to vector<2x7xf32>
    %878 = arith.cmpf ogt, %872, %877 : vector<2x7xf32>
    %879 = math.log %876 : vector<2x7xf32>
    %880 = vector.broadcast %224 : vector<2x1xf32> to vector<2x7xf32>
    %881 = arith.mulf %880, %879 : vector<2x7xf32>
    %882 = math.exp %881 : vector<2x7xf32>
    %cst_321 = arith.constant 0.000000e+00 : f32
    %883 = vector.broadcast %cst_321 : f32 to vector<2x7xf32>
    %884 = arith.select %878, %882, %883 : vector<2x7xi1>, vector<2x7xf32>
    %cst_322 = arith.constant dense<0.000000e+00> : vector<2xf32>
    %885 = vector.multi_reduction <add>, %884, %cst_322 [1] : vector<2x7xf32> to vector<2xf32>
    %886 = vector.shape_cast %885 : vector<2xf32> to vector<2x1xf32>
    %cst_323 = arith.constant 1.000000e+00 : f32
    %887 = vector.broadcast %cst_323 : f32 to vector<2x1xf32>
    %888 = arith.subf %886, %887 : vector<2x1xf32>
    %889 = arith.mulf %888, %254 : vector<2x1xf32>
    %cst_324 = arith.constant 0.000000e+00 : f32
    %890 = vector.broadcast %cst_324 : f32 to vector<2x1xf32>
    %891 = arith.cmpf oge, %889, %890 : vector<2x1xf32>
    %892 = arith.select %891, %868, %865 : vector<2x1xi1>, vector<2x1xf32>
    %c23_i32 = arith.constant 23 : i32
    %cst_325 = arith.constant 5.000000e-01 : f32
    %893 = vector.broadcast %cst_325 : f32 to vector<2x1xf32>
    %894 = arith.mulf %867, %893 : vector<2x1xf32>
    %895 = arith.addf %892, %894 : vector<2x1xf32>
    %896 = vector.broadcast %895 : vector<2x1xf32> to vector<2x7xf32>
    %897 = arith.subf %226, %896 : vector<2x7xf32>
    %cst_326 = arith.constant 0.000000e+00 : f32
    %898 = vector.broadcast %cst_326 : f32 to vector<2x7xf32>
    %899 = arith.maximumf %897, %898 : vector<2x7xf32>
    %cst_327 = arith.constant 0.000000e+00 : f32
    %900 = vector.broadcast %cst_327 : f32 to vector<2x7xf32>
    %901 = arith.cmpf ogt, %899, %900 : vector<2x7xf32>
    %cst_328 = arith.constant 1.000000e+00 : f32
    %902 = vector.broadcast %cst_328 : f32 to vector<2x7xf32>
    %903 = arith.select %901, %899, %902 : vector<2x7xi1>, vector<2x7xf32>
    %cst_329 = arith.constant 0.000000e+00 : f32
    %904 = vector.broadcast %cst_329 : f32 to vector<2x7xf32>
    %905 = arith.cmpf ogt, %899, %904 : vector<2x7xf32>
    %906 = math.log %903 : vector<2x7xf32>
    %907 = vector.broadcast %224 : vector<2x1xf32> to vector<2x7xf32>
    %908 = arith.mulf %907, %906 : vector<2x7xf32>
    %909 = math.exp %908 : vector<2x7xf32>
    %cst_330 = arith.constant 0.000000e+00 : f32
    %910 = vector.broadcast %cst_330 : f32 to vector<2x7xf32>
    %911 = arith.select %905, %909, %910 : vector<2x7xi1>, vector<2x7xf32>
    %cst_331 = arith.constant dense<0.000000e+00> : vector<2xf32>
    %912 = vector.multi_reduction <add>, %911, %cst_331 [1] : vector<2x7xf32> to vector<2xf32>
    %913 = vector.shape_cast %912 : vector<2xf32> to vector<2x1xf32>
    %cst_332 = arith.constant 1.000000e+00 : f32
    %914 = vector.broadcast %cst_332 : f32 to vector<2x1xf32>
    %915 = arith.subf %913, %914 : vector<2x1xf32>
    %916 = arith.mulf %915, %254 : vector<2x1xf32>
    %cst_333 = arith.constant 0.000000e+00 : f32
    %917 = vector.broadcast %cst_333 : f32 to vector<2x1xf32>
    %918 = arith.cmpf oge, %916, %917 : vector<2x1xf32>
    %919 = arith.select %918, %895, %892 : vector<2x1xi1>, vector<2x1xf32>
    %c24_i32 = arith.constant 24 : i32
    %cst_334 = arith.constant 5.000000e-01 : f32
    %920 = vector.broadcast %cst_334 : f32 to vector<2x1xf32>
    %921 = arith.mulf %894, %920 : vector<2x1xf32>
    %922 = arith.addf %919, %921 : vector<2x1xf32>
    %923 = vector.broadcast %922 : vector<2x1xf32> to vector<2x7xf32>
    %924 = arith.subf %226, %923 : vector<2x7xf32>
    %cst_335 = arith.constant 0.000000e+00 : f32
    %925 = vector.broadcast %cst_335 : f32 to vector<2x7xf32>
    %926 = arith.maximumf %924, %925 : vector<2x7xf32>
    %cst_336 = arith.constant 0.000000e+00 : f32
    %927 = vector.broadcast %cst_336 : f32 to vector<2x7xf32>
    %928 = arith.cmpf ogt, %926, %927 : vector<2x7xf32>
    %cst_337 = arith.constant 1.000000e+00 : f32
    %929 = vector.broadcast %cst_337 : f32 to vector<2x7xf32>
    %930 = arith.select %928, %926, %929 : vector<2x7xi1>, vector<2x7xf32>
    %cst_338 = arith.constant 0.000000e+00 : f32
    %931 = vector.broadcast %cst_338 : f32 to vector<2x7xf32>
    %932 = arith.cmpf ogt, %926, %931 : vector<2x7xf32>
    %933 = math.log %930 : vector<2x7xf32>
    %934 = vector.broadcast %224 : vector<2x1xf32> to vector<2x7xf32>
    %935 = arith.mulf %934, %933 : vector<2x7xf32>
    %936 = math.exp %935 : vector<2x7xf32>
    %cst_339 = arith.constant 0.000000e+00 : f32
    %937 = vector.broadcast %cst_339 : f32 to vector<2x7xf32>
    %938 = arith.select %932, %936, %937 : vector<2x7xi1>, vector<2x7xf32>
    %cst_340 = arith.constant dense<0.000000e+00> : vector<2xf32>
    %939 = vector.multi_reduction <add>, %938, %cst_340 [1] : vector<2x7xf32> to vector<2xf32>
    %940 = vector.shape_cast %939 : vector<2xf32> to vector<2x1xf32>
    %cst_341 = arith.constant 1.000000e+00 : f32
    %941 = vector.broadcast %cst_341 : f32 to vector<2x1xf32>
    %942 = arith.subf %940, %941 : vector<2x1xf32>
    %943 = arith.mulf %942, %254 : vector<2x1xf32>
    %cst_342 = arith.constant 0.000000e+00 : f32
    %944 = vector.broadcast %cst_342 : f32 to vector<2x1xf32>
    %945 = arith.cmpf oge, %943, %944 : vector<2x1xf32>
    %946 = arith.select %945, %922, %919 : vector<2x1xi1>, vector<2x1xf32>
    %c25_i32 = arith.constant 25 : i32
    %cst_343 = arith.constant 5.000000e-01 : f32
    %947 = vector.broadcast %cst_343 : f32 to vector<2x1xf32>
    %948 = arith.mulf %921, %947 : vector<2x1xf32>
    %949 = arith.addf %946, %948 : vector<2x1xf32>
    %950 = vector.broadcast %949 : vector<2x1xf32> to vector<2x7xf32>
    %951 = arith.subf %226, %950 : vector<2x7xf32>
    %cst_344 = arith.constant 0.000000e+00 : f32
    %952 = vector.broadcast %cst_344 : f32 to vector<2x7xf32>
    %953 = arith.maximumf %951, %952 : vector<2x7xf32>
    %cst_345 = arith.constant 0.000000e+00 : f32
    %954 = vector.broadcast %cst_345 : f32 to vector<2x7xf32>
    %955 = arith.cmpf ogt, %953, %954 : vector<2x7xf32>
    %cst_346 = arith.constant 1.000000e+00 : f32
    %956 = vector.broadcast %cst_346 : f32 to vector<2x7xf32>
    %957 = arith.select %955, %953, %956 : vector<2x7xi1>, vector<2x7xf32>
    %cst_347 = arith.constant 0.000000e+00 : f32
    %958 = vector.broadcast %cst_347 : f32 to vector<2x7xf32>
    %959 = arith.cmpf ogt, %953, %958 : vector<2x7xf32>
    %960 = math.log %957 : vector<2x7xf32>
    %961 = vector.broadcast %224 : vector<2x1xf32> to vector<2x7xf32>
    %962 = arith.mulf %961, %960 : vector<2x7xf32>
    %963 = math.exp %962 : vector<2x7xf32>
    %cst_348 = arith.constant 0.000000e+00 : f32
    %964 = vector.broadcast %cst_348 : f32 to vector<2x7xf32>
    %965 = arith.select %959, %963, %964 : vector<2x7xi1>, vector<2x7xf32>
    %cst_349 = arith.constant dense<0.000000e+00> : vector<2xf32>
    %966 = vector.multi_reduction <add>, %965, %cst_349 [1] : vector<2x7xf32> to vector<2xf32>
    %967 = vector.shape_cast %966 : vector<2xf32> to vector<2x1xf32>
    %cst_350 = arith.constant 1.000000e+00 : f32
    %968 = vector.broadcast %cst_350 : f32 to vector<2x1xf32>
    %969 = arith.subf %967, %968 : vector<2x1xf32>
    %970 = arith.mulf %969, %254 : vector<2x1xf32>
    %cst_351 = arith.constant 0.000000e+00 : f32
    %971 = vector.broadcast %cst_351 : f32 to vector<2x1xf32>
    %972 = arith.cmpf oge, %970, %971 : vector<2x1xf32>
    %973 = arith.select %972, %949, %946 : vector<2x1xi1>, vector<2x1xf32>
    %c26_i32 = arith.constant 26 : i32
    %cst_352 = arith.constant 5.000000e-01 : f32
    %974 = vector.broadcast %cst_352 : f32 to vector<2x1xf32>
    %975 = arith.mulf %948, %974 : vector<2x1xf32>
    %976 = arith.addf %973, %975 : vector<2x1xf32>
    %977 = vector.broadcast %976 : vector<2x1xf32> to vector<2x7xf32>
    %978 = arith.subf %226, %977 : vector<2x7xf32>
    %cst_353 = arith.constant 0.000000e+00 : f32
    %979 = vector.broadcast %cst_353 : f32 to vector<2x7xf32>
    %980 = arith.maximumf %978, %979 : vector<2x7xf32>
    %cst_354 = arith.constant 0.000000e+00 : f32
    %981 = vector.broadcast %cst_354 : f32 to vector<2x7xf32>
    %982 = arith.cmpf ogt, %980, %981 : vector<2x7xf32>
    %cst_355 = arith.constant 1.000000e+00 : f32
    %983 = vector.broadcast %cst_355 : f32 to vector<2x7xf32>
    %984 = arith.select %982, %980, %983 : vector<2x7xi1>, vector<2x7xf32>
    %cst_356 = arith.constant 0.000000e+00 : f32
    %985 = vector.broadcast %cst_356 : f32 to vector<2x7xf32>
    %986 = arith.cmpf ogt, %980, %985 : vector<2x7xf32>
    %987 = math.log %984 : vector<2x7xf32>
    %988 = vector.broadcast %224 : vector<2x1xf32> to vector<2x7xf32>
    %989 = arith.mulf %988, %987 : vector<2x7xf32>
    %990 = math.exp %989 : vector<2x7xf32>
    %cst_357 = arith.constant 0.000000e+00 : f32
    %991 = vector.broadcast %cst_357 : f32 to vector<2x7xf32>
    %992 = arith.select %986, %990, %991 : vector<2x7xi1>, vector<2x7xf32>
    %cst_358 = arith.constant dense<0.000000e+00> : vector<2xf32>
    %993 = vector.multi_reduction <add>, %992, %cst_358 [1] : vector<2x7xf32> to vector<2xf32>
    %994 = vector.shape_cast %993 : vector<2xf32> to vector<2x1xf32>
    %cst_359 = arith.constant 1.000000e+00 : f32
    %995 = vector.broadcast %cst_359 : f32 to vector<2x1xf32>
    %996 = arith.subf %994, %995 : vector<2x1xf32>
    %997 = arith.mulf %996, %254 : vector<2x1xf32>
    %cst_360 = arith.constant 0.000000e+00 : f32
    %998 = vector.broadcast %cst_360 : f32 to vector<2x1xf32>
    %999 = arith.cmpf oge, %997, %998 : vector<2x1xf32>
    %1000 = arith.select %999, %976, %973 : vector<2x1xi1>, vector<2x1xf32>
    %c27_i32 = arith.constant 27 : i32
    %cst_361 = arith.constant 5.000000e-01 : f32
    %1001 = vector.broadcast %cst_361 : f32 to vector<2x1xf32>
    %1002 = arith.mulf %975, %1001 : vector<2x1xf32>
    %1003 = arith.addf %1000, %1002 : vector<2x1xf32>
    %1004 = vector.broadcast %1003 : vector<2x1xf32> to vector<2x7xf32>
    %1005 = arith.subf %226, %1004 : vector<2x7xf32>
    %cst_362 = arith.constant 0.000000e+00 : f32
    %1006 = vector.broadcast %cst_362 : f32 to vector<2x7xf32>
    %1007 = arith.maximumf %1005, %1006 : vector<2x7xf32>
    %cst_363 = arith.constant 0.000000e+00 : f32
    %1008 = vector.broadcast %cst_363 : f32 to vector<2x7xf32>
    %1009 = arith.cmpf ogt, %1007, %1008 : vector<2x7xf32>
    %cst_364 = arith.constant 1.000000e+00 : f32
    %1010 = vector.broadcast %cst_364 : f32 to vector<2x7xf32>
    %1011 = arith.select %1009, %1007, %1010 : vector<2x7xi1>, vector<2x7xf32>
    %cst_365 = arith.constant 0.000000e+00 : f32
    %1012 = vector.broadcast %cst_365 : f32 to vector<2x7xf32>
    %1013 = arith.cmpf ogt, %1007, %1012 : vector<2x7xf32>
    %1014 = math.log %1011 : vector<2x7xf32>
    %1015 = vector.broadcast %224 : vector<2x1xf32> to vector<2x7xf32>
    %1016 = arith.mulf %1015, %1014 : vector<2x7xf32>
    %1017 = math.exp %1016 : vector<2x7xf32>
    %cst_366 = arith.constant 0.000000e+00 : f32
    %1018 = vector.broadcast %cst_366 : f32 to vector<2x7xf32>
    %1019 = arith.select %1013, %1017, %1018 : vector<2x7xi1>, vector<2x7xf32>
    %cst_367 = arith.constant dense<0.000000e+00> : vector<2xf32>
    %1020 = vector.multi_reduction <add>, %1019, %cst_367 [1] : vector<2x7xf32> to vector<2xf32>
    %1021 = vector.shape_cast %1020 : vector<2xf32> to vector<2x1xf32>
    %cst_368 = arith.constant 1.000000e+00 : f32
    %1022 = vector.broadcast %cst_368 : f32 to vector<2x1xf32>
    %1023 = arith.subf %1021, %1022 : vector<2x1xf32>
    %1024 = arith.mulf %1023, %254 : vector<2x1xf32>
    %cst_369 = arith.constant 0.000000e+00 : f32
    %1025 = vector.broadcast %cst_369 : f32 to vector<2x1xf32>
    %1026 = arith.cmpf oge, %1024, %1025 : vector<2x1xf32>
    %1027 = arith.select %1026, %1003, %1000 : vector<2x1xi1>, vector<2x1xf32>
    %c28_i32 = arith.constant 28 : i32
    %cst_370 = arith.constant 5.000000e-01 : f32
    %1028 = vector.broadcast %cst_370 : f32 to vector<2x1xf32>
    %1029 = arith.mulf %1002, %1028 : vector<2x1xf32>
    %1030 = arith.addf %1027, %1029 : vector<2x1xf32>
    %1031 = vector.broadcast %1030 : vector<2x1xf32> to vector<2x7xf32>
    %1032 = arith.subf %226, %1031 : vector<2x7xf32>
    %cst_371 = arith.constant 0.000000e+00 : f32
    %1033 = vector.broadcast %cst_371 : f32 to vector<2x7xf32>
    %1034 = arith.maximumf %1032, %1033 : vector<2x7xf32>
    %cst_372 = arith.constant 0.000000e+00 : f32
    %1035 = vector.broadcast %cst_372 : f32 to vector<2x7xf32>
    %1036 = arith.cmpf ogt, %1034, %1035 : vector<2x7xf32>
    %cst_373 = arith.constant 1.000000e+00 : f32
    %1037 = vector.broadcast %cst_373 : f32 to vector<2x7xf32>
    %1038 = arith.select %1036, %1034, %1037 : vector<2x7xi1>, vector<2x7xf32>
    %cst_374 = arith.constant 0.000000e+00 : f32
    %1039 = vector.broadcast %cst_374 : f32 to vector<2x7xf32>
    %1040 = arith.cmpf ogt, %1034, %1039 : vector<2x7xf32>
    %1041 = math.log %1038 : vector<2x7xf32>
    %1042 = vector.broadcast %224 : vector<2x1xf32> to vector<2x7xf32>
    %1043 = arith.mulf %1042, %1041 : vector<2x7xf32>
    %1044 = math.exp %1043 : vector<2x7xf32>
    %cst_375 = arith.constant 0.000000e+00 : f32
    %1045 = vector.broadcast %cst_375 : f32 to vector<2x7xf32>
    %1046 = arith.select %1040, %1044, %1045 : vector<2x7xi1>, vector<2x7xf32>
    %cst_376 = arith.constant dense<0.000000e+00> : vector<2xf32>
    %1047 = vector.multi_reduction <add>, %1046, %cst_376 [1] : vector<2x7xf32> to vector<2xf32>
    %1048 = vector.shape_cast %1047 : vector<2xf32> to vector<2x1xf32>
    %cst_377 = arith.constant 1.000000e+00 : f32
    %1049 = vector.broadcast %cst_377 : f32 to vector<2x1xf32>
    %1050 = arith.subf %1048, %1049 : vector<2x1xf32>
    %1051 = arith.mulf %1050, %254 : vector<2x1xf32>
    %cst_378 = arith.constant 0.000000e+00 : f32
    %1052 = vector.broadcast %cst_378 : f32 to vector<2x1xf32>
    %1053 = arith.cmpf oge, %1051, %1052 : vector<2x1xf32>
    %1054 = arith.select %1053, %1030, %1027 : vector<2x1xi1>, vector<2x1xf32>
    %c29_i32 = arith.constant 29 : i32
    %cst_379 = arith.constant 5.000000e-01 : f32
    %1055 = vector.broadcast %cst_379 : f32 to vector<2x1xf32>
    %1056 = arith.mulf %1029, %1055 : vector<2x1xf32>
    %1057 = arith.addf %1054, %1056 : vector<2x1xf32>
    %1058 = vector.broadcast %1057 : vector<2x1xf32> to vector<2x7xf32>
    %1059 = arith.subf %226, %1058 : vector<2x7xf32>
    %cst_380 = arith.constant 0.000000e+00 : f32
    %1060 = vector.broadcast %cst_380 : f32 to vector<2x7xf32>
    %1061 = arith.maximumf %1059, %1060 : vector<2x7xf32>
    %cst_381 = arith.constant 0.000000e+00 : f32
    %1062 = vector.broadcast %cst_381 : f32 to vector<2x7xf32>
    %1063 = arith.cmpf ogt, %1061, %1062 : vector<2x7xf32>
    %cst_382 = arith.constant 1.000000e+00 : f32
    %1064 = vector.broadcast %cst_382 : f32 to vector<2x7xf32>
    %1065 = arith.select %1063, %1061, %1064 : vector<2x7xi1>, vector<2x7xf32>
    %cst_383 = arith.constant 0.000000e+00 : f32
    %1066 = vector.broadcast %cst_383 : f32 to vector<2x7xf32>
    %1067 = arith.cmpf ogt, %1061, %1066 : vector<2x7xf32>
    %1068 = math.log %1065 : vector<2x7xf32>
    %1069 = vector.broadcast %224 : vector<2x1xf32> to vector<2x7xf32>
    %1070 = arith.mulf %1069, %1068 : vector<2x7xf32>
    %1071 = math.exp %1070 : vector<2x7xf32>
    %cst_384 = arith.constant 0.000000e+00 : f32
    %1072 = vector.broadcast %cst_384 : f32 to vector<2x7xf32>
    %1073 = arith.select %1067, %1071, %1072 : vector<2x7xi1>, vector<2x7xf32>
    %cst_385 = arith.constant dense<0.000000e+00> : vector<2xf32>
    %1074 = vector.multi_reduction <add>, %1073, %cst_385 [1] : vector<2x7xf32> to vector<2xf32>
    %1075 = vector.shape_cast %1074 : vector<2xf32> to vector<2x1xf32>
    %cst_386 = arith.constant 1.000000e+00 : f32
    %1076 = vector.broadcast %cst_386 : f32 to vector<2x1xf32>
    %1077 = arith.subf %1075, %1076 : vector<2x1xf32>
    %1078 = arith.mulf %1077, %254 : vector<2x1xf32>
    %cst_387 = arith.constant 0.000000e+00 : f32
    %1079 = vector.broadcast %cst_387 : f32 to vector<2x1xf32>
    %1080 = arith.cmpf oge, %1078, %1079 : vector<2x1xf32>
    %1081 = arith.select %1080, %1057, %1054 : vector<2x1xi1>, vector<2x1xf32>
    %cst_388 = arith.constant dense<0.000000e+00> : vector<2xf32>
    %1082 = vector.multi_reduction <add>, %1073, %cst_388 [1] : vector<2x7xf32> to vector<2xf32>
    %1083 = vector.shape_cast %1082 : vector<2xf32> to vector<2x1xf32>
    %1084 = tpu.reciprocal %1083 {approx = true} : vector<2x1xf32> -> vector<2x1xf32>
    %1085 = vector.broadcast %1084 : vector<2x1xf32> to vector<2x7xf32>
    %1086 = arith.mulf %1073, %1085 : vector<2x7xf32>
    %1087 = vector.extract_strided_slice %0 {offsets = [0, 0, 0], sizes = [2, 7, 32], strides = [1, 1, 1]} : vector<2x8x32xf32> to vector<2x7x32xf32>
    %1088 = vector.shape_cast %1086 : vector<2x7xf32> to vector<2x1x7xf32>
    "tpu.trace_start"() <{level = 10 : i32, message = "bqk,bkd->bqd"}> : () -> ()
    %cst_389 = arith.constant dense<0.000000e+00> : vector<2x1x32xf32>
    %1089 = tpu.matmul %1088, %1087, %cst_389 {dimension_numbers = #tpu.dot_dimension_numbers<[2], [1], [1], [2], [0, 0, 0, 1, 1, 2], [0], [0]>} : vector<2x1x7xf32>, vector<2x7x32xf32>, vector<2x1x32xf32> -> vector<2x1x32xf32>
    "tpu.trace_stop"() : () -> ()
    %1090 = vector.shape_cast %1089 : vector<2x1x32xf32> to vector<2x32xf32>
    %1091 = tpu.concatenate %1090, %178 in 1 : vector<2x32xf32>, vector<2x32xf32> -> vector<2x64xf32>
    %c0_390 = arith.constant 0 : index
    %c0_391 = arith.constant 0 : index
    %1092 = vector.load %arg15[%c0_390, %c0_391] : memref<64x24xf32, #tpu.memory_space<vmem>>, vector<64x24xf32>
    %cst_392 = arith.constant dense<0.000000e+00> : vector<2x24xf32>
    %1093 = tpu.matmul %1091, %1092, %cst_392 {dimension_numbers = #tpu.dot_dimension_numbers<[1], [0], [0], [1], [0, 0, 1, 1], [], []>} : vector<2x64xf32>, vector<64x24xf32>, vector<2x24xf32> -> vector<2x24xf32>
    %c0_393 = arith.constant 0 : index
    %c0_394 = arith.constant 0 : index
    %1094 = vector.load %arg16[%c0_393, %c0_394] : memref<1x24xf32, #tpu.memory_space<vmem>>, vector<1x24xf32>
    %1095 = vector.broadcast %1094 : vector<1x24xf32> to vector<2x24xf32>
    %1096 = arith.addf %1093, %1095 : vector<2x24xf32>
    %cst_395 = arith.constant 0.000000e+00 : f32
    %1097 = vector.broadcast %cst_395 : f32 to vector<2x24xf32>
    %1098 = arith.cmpf ogt, %1096, %1097 : vector<2x24xf32>
    %1099 = math.exp %1096 : vector<2x24xf32>
    %cst_396 = arith.constant 1.000000e+00 : f32
    %1100 = vector.broadcast %cst_396 : f32 to vector<2x24xf32>
    %1101 = arith.subf %1099, %1100 : vector<2x24xf32>
    %cst_397 = arith.constant 1.67326319 : f32
    %1102 = vector.broadcast %cst_397 : f32 to vector<2x24xf32>
    %1103 = arith.mulf %1102, %1101 : vector<2x24xf32>
    %1104 = arith.select %1098, %1096, %1103 : vector<2x24xi1>, vector<2x24xf32>
    %cst_398 = arith.constant 1.05070102 : f32
    %1105 = vector.broadcast %cst_398 : f32 to vector<2x24xf32>
    %1106 = arith.mulf %1105, %1104 : vector<2x24xf32>
    %1107 = arith.mulf %1106, %1106 : vector<2x24xf32>
    %cst_399 = arith.constant dense<0.000000e+00> : vector<2xf32>
    %1108 = vector.multi_reduction <add>, %1107, %cst_399 [1] : vector<2x24xf32> to vector<2xf32>
    %1109 = vector.shape_cast %1108 : vector<2xf32> to vector<2x1xf32>
    %1110 = math.rsqrt %1109 : vector<2x1xf32>
    %1111 = vector.broadcast %1110 : vector<2x1xf32> to vector<2x24xf32>
    %1112 = arith.mulf %1106, %1111 : vector<2x24xf32>
    %c0_400 = arith.constant 0 : index
    %c0_401 = arith.constant 0 : index
    %1113 = vector.load %arg17[%c0_400, %c0_401] : memref<2x24xf32, #tpu.memory_space<vmem>>, vector<2x24xf32>
    tpu.vector_store %arg17[%c0_400, %c0_401], %1112 {strides = array<i32>} : memref<2x24xf32, #tpu.memory_space<vmem>>, vector<2x24xf32>,
    return
  }
}

</mosaic_0001>

<llo_original>
// kernel: mh_sparse_transformer_forward.1
$region0: #{mh_sparse_transformer_forward.1}
  #allocation0 [shape = 'u32[]', space=smem, size = 0x4, offset = 0x4, fixed_abs, tag = 'smem constant byte address 0x4 - core index']
  #allocation1 [shape = 'u32[144,128]{1,0:T(1,128)}', space=vmem, size = 0x12000, scoped, tag = 'internal scratch']
  #allocation2 [shape = 'f32[1,1]{1,0:T(1,128)S(1)}', space=vmem, size = 0x200, scoped, tag = 'scoped memory for mh_sparse_transformer_forward.1']
  %s0 = inlined_call_operand.vmem [shape: f32[2,8,32], index: 0, kind: input, shape index: {}]
  %s1 = inlined_call_operand.vmem [shape: f32[2,8], index: 1, kind: input, shape index: {}]
  %s2 = inlined_call_operand.vmem [shape: f32[2,32,96], index: 2, kind: input, shape index: {}]
  %s3 = inlined_call_operand.vmem [shape: f32[2,1,96], index: 3, kind: input, shape index: {}]
  %s4 = inlined_call_operand.vmem [shape: f32[2,32,32], index: 4, kind: input, shape index: {}]
  %s5 = inlined_call_operand.vmem [shape: f32[2,1,32], index: 5, kind: input, shape index: {}]
  %s6 = inlined_call_operand.vmem [shape: f32[2,32,32], index: 6, kind: input, shape index: {}]
  %s7 = inlined_call_operand.vmem [shape: f32[2,1,32], index: 7, kind: input, shape index: {}]
  %s8 = inlined_call_operand.vmem [shape: f32[2,1,32], index: 8, kind: input, shape index: {}]
  %s9 = inlined_call_operand.vmem [shape: f32[2,1,32], index: 9, kind: input, shape index: {}]
  %s10 = inlined_call_operand.vmem [shape: f32[32,64], index: 10, kind: input, shape index: {}]
  %s11 = inlined_call_operand.vmem [shape: f32[1,32], index: 11, kind: input, shape index: {}]
  %s12 = inlined_call_operand.vmem [shape: f32[1,32], index: 12, kind: input, shape index: {}]
  %s13 = inlined_call_operand.vmem [shape: f32[1,32], index: 13, kind: input, shape index: {}]
  %s14 = inlined_call_operand.<no memory space> [shape: f32[1,1], index: 14, kind: input, shape index: {}]
  %s15 = inlined_call_operand.vmem [shape: f32[64,24], index: 15, kind: input, shape index: {}]
  %s16 = inlined_call_operand.vmem [shape: f32[1,24], index: 16, kind: input, shape index: {}]
  %s17 = inlined_call_operand.hbm [shape: f32[2,24], index: 17, kind: output, shape index: {}]
  %s18 = sld [smem:[#allocation0]]
  $region78: #{mh_sparse_transformer_forward.1} parent=0
    _
  %s20 = ssub.s32 1, %s18
  %s21 = scalar_select 0, %s20, %s18
  %v22 = vstv %s14
  %23 = vst [vmem:[#allocation2] sm:$0x1] %v22
  $region1: #{mh_sparse_transformer_forward.1} parent=0
    #allocation3 [shape = 'u8[1024]{0}', space=vmem, size = 0x400, scoped, tag = 'output window, operand 0, single buffered']
    #allocation4 [shape = 's32[1]{0}', space=sflag, size = 0x4, scoped, tag = 'scoped memory for mh_sparse_transformer_forward.1']
    %24 = vsyncpa [#allocation4], 0
    // Predicated region
    $region2: #{mh_sparse_transformer_forward.1} parent=1 // pred_check
      _
    $region3: #{mh_sparse_transformer_forward.1} parent=1 // pred_check_branch
      %26 = sbr.rel (0) target = $region5
    $region4: #{mh_sparse_transformer_forward.1} parent=1 // pred_region
      _
    $region5: #{mh_sparse_transformer_forward.1} parent=1 // pred_fallthru
      _
    // Predicated region
    $region6: #{mh_sparse_transformer_forward.1} parent=1 // pred_check
      _
    $region7: #{mh_sparse_transformer_forward.1} parent=1 // pred_check_branch
      %28 = sbr.rel (0) target = $region9
    $region8: #{mh_sparse_transformer_forward.1} parent=1 // pred_region
      _
    $region9: #{mh_sparse_transformer_forward.1} parent=1 // pred_fallthru
      _
    // Predicated region
    $region10: #{mh_sparse_transformer_forward.1} parent=1 // pred_check
      _
    $region11: #{mh_sparse_transformer_forward.1} parent=1 // pred_check_branch
      %30 = sbr.rel (0) target = $region13
    $region12: #{mh_sparse_transformer_forward.1} parent=1 // pred_region
      _
    $region13: #{mh_sparse_transformer_forward.1} parent=1 // pred_fallthru
      _
    // Predicated region
    $region14: #{mh_sparse_transformer_forward.1} parent=1 // pred_check
      _
    $region15: #{mh_sparse_transformer_forward.1} parent=1 // pred_check_branch
      %32 = sbr.rel (0) target = $region17
    $region16: #{mh_sparse_transformer_forward.1} parent=1 // pred_region
      _
    $region17: #{mh_sparse_transformer_forward.1} parent=1 // pred_fallthru
      _
    // Predicated region
    $region18: #{mh_sparse_transformer_forward.1} parent=1 // pred_check
      _
    $region19: #{mh_sparse_transformer_forward.1} parent=1 // pred_check_branch
      %34 = sbr.rel (0) target = $region21
    $region20: #{mh_sparse_transformer_forward.1} parent=1 // pred_region
      _
    $region21: #{mh_sparse_transformer_forward.1} parent=1 // pred_fallthru
      _
    // Predicated region
    $region22: #{mh_sparse_transformer_forward.1} parent=1 // pred_check
      _
    $region23: #{mh_sparse_transformer_forward.1} parent=1 // pred_check_branch
      %36 = sbr.rel (0) target = $region25
    $region24: #{mh_sparse_transformer_forward.1} parent=1 // pred_region
      _
    $region25: #{mh_sparse_transformer_forward.1} parent=1 // pred_fallthru
      _
    // Predicated region
    $region26: #{mh_sparse_transformer_forward.1} parent=1 // pred_check
      _
    $region27: #{mh_sparse_transformer_forward.1} parent=1 // pred_check_branch
      %38 = sbr.rel (0) target = $region29
    $region28: #{mh_sparse_transformer_forward.1} parent=1 // pred_region
      _
    $region29: #{mh_sparse_transformer_forward.1} parent=1 // pred_fallthru
      _
    // Predicated region
    $region30: #{mh_sparse_transformer_forward.1} parent=1 // pred_check
      _
    $region31: #{mh_sparse_transformer_forward.1} parent=1 // pred_check_branch
      %40 = sbr.rel (0) target = $region33
    $region32: #{mh_sparse_transformer_forward.1} parent=1 // pred_region
      _
    $region33: #{mh_sparse_transformer_forward.1} parent=1 // pred_fallthru
      _
    // Predicated region
    $region34: #{mh_sparse_transformer_forward.1} parent=1 // pred_check
      _
    $region35: #{mh_sparse_transformer_forward.1} parent=1 // pred_check_branch
      %42 = sbr.rel (0) target = $region37
    $region36: #{mh_sparse_transformer_forward.1} parent=1 // pred_region
      _
    $region37: #{mh_sparse_transformer_forward.1} parent=1 // pred_fallthru
      _
    // Predicated region
    $region38: #{mh_sparse_transformer_forward.1} parent=1 // pred_check
      _
    $region39: #{mh_sparse_transformer_forward.1} parent=1 // pred_check_branch
      %44 = sbr.rel (0) target = $region41
    $region40: #{mh_sparse_transformer_forward.1} parent=1 // pred_region
      _
    $region41: #{mh_sparse_transformer_forward.1} parent=1 // pred_fallthru
      _
    // Predicated region
    $region42: #{mh_sparse_transformer_forward.1} parent=1 // pred_check
      _
    $region43: #{mh_sparse_transformer_forward.1} parent=1 // pred_check_branch
      %46 = sbr.rel (0) target = $region45
    $region44: #{mh_sparse_transformer_forward.1} parent=1 // pred_region
      _
    $region45: #{mh_sparse_transformer_forward.1} parent=1 // pred_fallthru
      _
    // Predicated region
    $region46: #{mh_sparse_transformer_forward.1} parent=1 // pred_check
      _
    $region47: #{mh_sparse_transformer_forward.1} parent=1 // pred_check_branch
      %48 = sbr.rel (0) target = $region49
    $region48: #{mh_sparse_transformer_forward.1} parent=1 // pred_region
      _
    $region49: #{mh_sparse_transformer_forward.1} parent=1 // pred_fallthru
      _
    // Predicated region
    $region50: #{mh_sparse_transformer_forward.1} parent=1 // pred_check
      _
    $region51: #{mh_sparse_transformer_forward.1} parent=1 // pred_check_branch
      %50 = sbr.rel (0) target = $region53
    $region52: #{mh_sparse_transformer_forward.1} parent=1 // pred_region
      _
    $region53: #{mh_sparse_transformer_forward.1} parent=1 // pred_fallthru
      _
    // Predicated region
    $region54: #{mh_sparse_transformer_forward.1} parent=1 // pred_check
      _
    $region55: #{mh_sparse_transformer_forward.1} parent=1 // pred_check_branch
      %52 = sbr.rel (0) target = $region57
    $region56: #{mh_sparse_transformer_forward.1} parent=1 // pred_region
      _
    $region57: #{mh_sparse_transformer_forward.1} parent=1 // pred_fallthru
      _
    // Predicated region
    $region58: #{mh_sparse_transformer_forward.1} parent=1 // pred_check
      _
    $region59: #{mh_sparse_transformer_forward.1} parent=1 // pred_check_branch
      %54 = sbr.rel (0) target = $region61
    $region60: #{mh_sparse_transformer_forward.1} parent=1 // pred_region
      _
    $region61: #{mh_sparse_transformer_forward.1} parent=1 // pred_fallthru
      _
    // Predicated region
    $region62: #{mh_sparse_transformer_forward.1} parent=1 // pred_check
      _
    $region63: #{mh_sparse_transformer_forward.1} parent=1 // pred_check_branch
      %56 = sbr.rel (0) target = $region65
    $region64: #{mh_sparse_transformer_forward.1} parent=1 // pred_region
      _
    $region65: #{mh_sparse_transformer_forward.1} parent=1 // pred_fallthru
      _
    // Predicated region
    $region66: #{mh_sparse_transformer_forward.1} parent=1 // pred_check
      _
    $region67: #{mh_sparse_transformer_forward.1} parent=1 // pred_check_branch
      %58 = sbr.rel (0) target = $region69
    $region68: #{mh_sparse_transformer_forward.1} parent=1 // pred_region
      _
    $region69: #{mh_sparse_transformer_forward.1} parent=1 // pred_fallthru
      _
    %v59 = vld [vmem:[%s0] sm:$0xff]
    %v60 = vld [vmem:[%s0 + $0x8] sm:$0xff]
    %v61 = vld [vmem:[%s1] sm:$0x3]
    %vm62 = vcmp.eq.f32.partialorder %v61, 0.0
    %v63 = vsel %vm62, -1e+30, 0.0
    %v66 = vunpack.c.l.s4 1966171168
    %v67 = vunpack.c.0.s8 %v66
    %v68 = vlaneseq
    %v69 = vshrl.u32 %v68, 7
    %v70 = vsub.s32 %v67, %v69
    %v71 = vrot.slane %v63, %v70
    %v72 = vcombine.high %v71, %v71
    %v74 = vunpack.c.l.s4 1966171168
    %v75 = vunpack.c.0.s8 %v74
    %v76 = vlaneseq
    %v77 = vshrl.u32 %v76, 7
    %v78 = vsub.s32 %v75, %v77
    %v79 = vrot.slane %v71, %v78
    %v81 = vunpack.c.l.s4 1966171168
    %v82 = vunpack.c.0.s8 %v81
    %v83 = vlaneseq
    %v84 = vshrl.u32 %v83, 7
    %v85 = vsub.s32 %v82, %v84
    %v86 = vrot.slane %v72, %v85
    %v87 = vld [vmem:[%s2] sm:$0xff]
    %v88 = vld [vmem:[%s2 + $0x8] sm:$0xff]
    %v89 = vld [vmem:[%s2 + $0x10] sm:$0xff]
    %v90 = vld [vmem:[%s2 + $0x18] sm:$0xff]
    %v91 = vld [vmem:[%s3] sm:$0x1]
    %v93 = vlaneseq
    %v94 = vshrl.u32 %v93, 7
    %v95 = vsub.s32 0, %v94
    %v96 = vrot.slane %v91, %v95
    %vm98 = vcmask 261120
    %v100 = vsel %vm98, %v59, 0
    %v103 = vsel %vm98, %v60, 0
    %105 = vmatprep.subr.mxu0 0.0
    %106 = vmatpush1.msra.mxu0 %v87
    %107 = vmatprep.subr.mxu0 0.0
    %108 = vmatpush1.msra.mxu0 %v88
    %109 = vmatprep.subr.mxu0 0.0
    %110 = vmatpush1.msra.mxu0 %v89
    %111 = vmatprep.subr.mxu0 0.0
    %112 = vmatpush1.msra.mxu0 %v90
    %113 = vmatprep.subr.mxu0 0.0
    %114 = vmatpush1.msra.mxu0 0.0
    %115 = vmatprep.subr.mxu0 0.0
    %116 = vmatpush1.msra.mxu0 0.0
    %117 = vmatprep.subr.mxu0 0.0
    %118 = vmatpush1.msra.mxu0 0.0
    %119 = vmatprep.subr.mxu0 0.0
    %120 = vmatpush1.msra.mxu0 0.0
    %121 = vmatprep.subr.mxu0 0.0
    %122 = vmatpush1.msra.mxu0 0.0
    %123 = vmatprep.subr.mxu0 0.0
    %124 = vmatpush1.msra.mxu0 0.0
    %125 = vmatprep.subr.mxu0 0.0
    %126 = vmatpush1.msra.mxu0 0.0
    %127 = vmatprep.subr.mxu0 0.0
    %128 = vmatpush1.msra.mxu0 0.0
    %129 = vmatprep.subr.mxu0 0.0
    %130 = vmatpush1.msra.mxu0 0.0
    %131 = vmatprep.subr.mxu0 0.0
    %132 = vmatpush1.msra.mxu0 0.0
    %133 = vmatprep.subr.mxu0 0.0
    %134 = vmatpush1.msra.mxu0 0.0
    %135 = vmatprep.subr.mxu0 0.0
    %136 = vmatpush1.msra.mxu0 0.0
    %137 = vmatprep.subr.mxu0 0.0
    %138 = vmatpush1.msra.mxu0 0.0
    %139 = vmatprep.subr.mxu0 0.0
    %140 = vmatpush1.msra.mxu0 0.0
    %141 = vmatprep.subr.mxu0 0.0
    %142 = vmatpush1.msra.mxu0 0.0
    %143 = vmatprep.subr.mxu0 0.0
    %144 = vmatpush1.msra.mxu0 0.0
    %145 = vmatprep.subr.mxu0 0.0
    %146 = vmatpush1.msra.mxu0 0.0
    %147 = vmatprep.subr.mxu0 0.0
    %148 = vmatpush1.msra.mxu0 0.0
    %149 = vmatprep.subr.mxu0 0.0
    %150 = vmatpush1.msra.mxu0 0.0
    %151 = vmatprep.subr.mxu0 0.0
    %152 = vmatpush1.msra.mxu0 0.0
    %153 = vmatprep.subr.mxu0 0.0
    %154 = vmatpush1.msra.mxu0 0.0
    %155 = vmatprep.subr.mxu0 0.0
    %156 = vmatpush1.msra.mxu0 0.0
    %157 = vmatprep.subr.mxu0 0.0
    %158 = vmatpush1.msra.mxu0 0.0
    %159 = vmatprep.subr.mxu0 0.0
    %160 = vmatpush1.msra.mxu0 0.0
    %161 = vmatprep.subr.mxu0 0.0
    %162 = vmatpush1.msra.mxu0 0.0
    %163 = vmatprep.subr.mxu0 0.0
    %164 = vmatpush1.msra.mxu0 0.0
    %165 = vmatprep.subr.mxu0 0.0
    %166 = vmatpush1.msra.mxu0 0.0
    %167 = vmatprep.subr.mxu0 0.0
    %168 = vmatpush1.msra.mxu0 0.0
    %169 = vmatprep.mubr.f32.mxu0 0.0
    %170 = vmatmul.mubr.f32.gmra.mrb[0].mxu0 %v100
    %v171 = vpop.f32.mrb[0].mxu0
    %v172 = vadd.f32 %v96, %v171
    %v173 = vpop.f32.mrb[0].mxu0
    %174 = vmatprep.mubr.f32.mxu0 0.0
    %175 = vmatmul.mubr.f32.gmra.mrb[0].mxu0 %v103
    %v176 = vpop.f32.mrb[0].mxu0
    %v177 = vadd.f32 %v96, %v176
    %v178 = vpop.f32.mrb[0].mxu0
    %179 = vdwg.mxu0
    %182 = vrot.lane.b32.xlu0 %v172, 112
    %v183 = vpop.permute.xlu0 %182
    %184 = vrot.lane.b32.xlu0 %v177, 112
    %v185 = vpop.permute.xlu0 %184
    %v188 = vmul.f32 %v172, 0.17677669
    %v189 = vmul.f32 %v177, 0.17677669
    %v190 = vmul.f32 %v183, 0.17677669
    %v191 = vmul.f32 %v185, 0.17677669
    %v192 = vlaneseq
    %v193 = vshrl.u32 %v192, 7
    %v194 = vsub.s32 0, %v193
    %v195 = vrot.slane %v79, %v194
    %v196 = vlaneseq
    %v197 = vshrl.u32 %v196, 7
    %v198 = vsub.s32 0, %v197
    %v199 = vrot.slane %v86, %v198
    %202 = vrot.lane.b32.xlu0 %v172, 96
    %v203 = vpop.permute.xlu0 %202
    %vm204 = vcmask 130048
    %v206 = vsel %vm204, %v188, 0
    %v208 = vsel %vm204, %v203, 0
    %210 = vmatprep.subr.mxu0 0.0
    %211 = vmatpush1.xpose.msra.mxu0 %v208
    %212 = vmatprep.subr.mxu0 0.0
    %213 = vmatpush1.xpose.msra.mxu0 0.0
    %214 = vmatprep.subr.mxu0 0.0
    %215 = vmatpush1.xpose.msra.mxu0 0.0
    %216 = vmatprep.subr.mxu0 0.0
    %217 = vmatpush1.xpose.msra.mxu0 0.0
    %218 = vmatprep.subr.mxu0 0.0
    %219 = vmatpush1.xpose.msra.mxu0 0.0
    %220 = vmatprep.subr.mxu0 0.0
    %221 = vmatpush1.xpose.msra.mxu0 0.0
    %222 = vmatprep.subr.mxu0 0.0
    %223 = vmatpush1.xpose.msra.mxu0 0.0
    %224 = vmatprep.subr.mxu0 0.0
    %225 = vmatpush1.xpose.msra.mxu0 0.0
    %226 = vmatprep.subr.mxu0 0.0
    %227 = vmatpush1.xpose.msra.mxu0 0.0
    %228 = vmatprep.subr.mxu0 0.0
    %229 = vmatpush1.xpose.msra.mxu0 0.0
    %230 = vmatprep.subr.mxu0 0.0
    %231 = vmatpush1.xpose.msra.mxu0 0.0
    %232 = vmatprep.subr.mxu0 0.0
    %233 = vmatpush1.xpose.msra.mxu0 0.0
    %234 = vmatprep.subr.mxu0 0.0
    %235 = vmatpush1.xpose.msra.mxu0 0.0
    %236 = vmatprep.subr.mxu0 0.0
    %237 = vmatpush1.xpose.msra.mxu0 0.0
    %238 = vmatprep.subr.mxu0 0.0
    %239 = vmatpush1.xpose.msra.mxu0 0.0
    %240 = vmatprep.subr.mxu0 0.0
    %241 = vmatpush1.xpose.msra.mxu0 0.0
    %242 = vmatprep.subr.mxu0 0.0
    %243 = vmatpush1.xpose.msra.mxu0 0.0
    %244 = vmatprep.subr.mxu0 0.0
    %245 = vmatpush1.xpose.msra.mxu0 0.0
    %246 = vmatprep.subr.mxu0 0.0
    %247 = vmatpush1.xpose.msra.mxu0 0.0
    %248 = vmatprep.subr.mxu0 0.0
    %249 = vmatpush1.xpose.msra.mxu0 0.0
    %250 = vmatprep.subr.mxu0 0.0
    %251 = vmatpush1.xpose.msra.mxu0 0.0
    %252 = vmatprep.subr.mxu0 0.0
    %253 = vmatpush1.xpose.msra.mxu0 0.0
    %254 = vmatprep.subr.mxu0 0.0
    %255 = vmatpush1.xpose.msra.mxu0 0.0
    %256 = vmatprep.subr.mxu0 0.0
    %257 = vmatpush1.xpose.msra.mxu0 0.0
    %258 = vmatprep.subr.mxu0 0.0
    %259 = vmatpush1.xpose.msra.mxu0 0.0
    %260 = vmatprep.subr.mxu0 0.0
    %261 = vmatpush1.xpose.msra.mxu0 0.0
    %262 = vmatprep.subr.mxu0 0.0
    %263 = vmatpush1.xpose.msra.mxu0 0.0
    %264 = vmatprep.subr.mxu0 0.0
    %265 = vmatpush1.xpose.msra.mxu0 0.0
    %266 = vmatprep.subr.mxu0 0.0
    %267 = vmatpush1.xpose.msra.mxu0 0.0
    %268 = vmatprep.subr.mxu0 0.0
    %269 = vmatpush1.xpose.msra.mxu0 0.0
    %270 = vmatprep.subr.mxu0 0.0
    %271 = vmatpush1.xpose.msra.mxu0 0.0
    %272 = vmatprep.subr.mxu0 0.0
    %273 = vmatpush1.xpose.msra.mxu0 0.0
    %274 = vmatprep.mubr.f32.mxu0 0.0
    %275 = vmatmul.mubr.f32.gmra.mrb[0].mxu0 %v206
    %v276 = vpop.f32.mrb[0].mxu0
    %v277 = vadd.f32 %v195, %v276
    %v278 = vpop.f32.mrb[0].mxu0
    %279 = vdwg.mxu0
    %280 = vrot.lane.b32.xlu0 %v177, 96
    %v281 = vpop.permute.xlu0 %280
    %v283 = vsel %vm204, %v189, 0
    %v285 = vsel %vm204, %v281, 0
    %287 = vmatprep.subr.mxu0 0.0
    %288 = vmatpush1.xpose.msra.mxu0 %v285
    %289 = vmatprep.subr.mxu0 0.0
    %290 = vmatpush1.xpose.msra.mxu0 0.0
    %291 = vmatprep.subr.mxu0 0.0
    %292 = vmatpush1.xpose.msra.mxu0 0.0
    %293 = vmatprep.subr.mxu0 0.0
    %294 = vmatpush1.xpose.msra.mxu0 0.0
    %295 = vmatprep.subr.mxu0 0.0
    %296 = vmatpush1.xpose.msra.mxu0 0.0
    %297 = vmatprep.subr.mxu0 0.0
    %298 = vmatpush1.xpose.msra.mxu0 0.0
    %299 = vmatprep.subr.mxu0 0.0
    %300 = vmatpush1.xpose.msra.mxu0 0.0
    %301 = vmatprep.subr.mxu0 0.0
    %302 = vmatpush1.xpose.msra.mxu0 0.0
    %303 = vmatprep.subr.mxu0 0.0
    %304 = vmatpush1.xpose.msra.mxu0 0.0
    %305 = vmatprep.subr.mxu0 0.0
    %306 = vmatpush1.xpose.msra.mxu0 0.0
    %307 = vmatprep.subr.mxu0 0.0
    %308 = vmatpush1.xpose.msra.mxu0 0.0
    %309 = vmatprep.subr.mxu0 0.0
    %310 = vmatpush1.xpose.msra.mxu0 0.0
    %311 = vmatprep.subr.mxu0 0.0
    %312 = vmatpush1.xpose.msra.mxu0 0.0
    %313 = vmatprep.subr.mxu0 0.0
    %314 = vmatpush1.xpose.msra.mxu0 0.0
    %315 = vmatprep.subr.mxu0 0.0
    %316 = vmatpush1.xpose.msra.mxu0 0.0
    %317 = vmatprep.subr.mxu0 0.0
    %318 = vmatpush1.xpose.msra.mxu0 0.0
    %319 = vmatprep.subr.mxu0 0.0
    %320 = vmatpush1.xpose.msra.mxu0 0.0
    %321 = vmatprep.subr.mxu0 0.0
    %322 = vmatpush1.xpose.msra.mxu0 0.0
    %323 = vmatprep.subr.mxu0 0.0
    %324 = vmatpush1.xpose.msra.mxu0 0.0
    %325 = vmatprep.subr.mxu0 0.0
    %326 = vmatpush1.xpose.msra.mxu0 0.0
    %327 = vmatprep.subr.mxu0 0.0
    %328 = vmatpush1.xpose.msra.mxu0 0.0
    %329 = vmatprep.subr.mxu0 0.0
    %330 = vmatpush1.xpose.msra.mxu0 0.0
    %331 = vmatprep.subr.mxu0 0.0
    %332 = vmatpush1.xpose.msra.mxu0 0.0
    %333 = vmatprep.subr.mxu0 0.0
    %334 = vmatpush1.xpose.msra.mxu0 0.0
    %335 = vmatprep.subr.mxu0 0.0
    %336 = vmatpush1.xpose.msra.mxu0 0.0
    %337 = vmatprep.subr.mxu0 0.0
    %338 = vmatpush1.xpose.msra.mxu0 0.0
    %339 = vmatprep.subr.mxu0 0.0
    %340 = vmatpush1.xpose.msra.mxu0 0.0
    %341 = vmatprep.subr.mxu0 0.0
    %342 = vmatpush1.xpose.msra.mxu0 0.0
    %343 = vmatprep.subr.mxu0 0.0
    %344 = vmatpush1.xpose.msra.mxu0 0.0
    %345 = vmatprep.subr.mxu0 0.0
    %346 = vmatpush1.xpose.msra.mxu0 0.0
    %347 = vmatprep.subr.mxu0 0.0
    %348 = vmatpush1.xpose.msra.mxu0 0.0
    %349 = vmatprep.subr.mxu0 0.0
    %350 = vmatpush1.xpose.msra.mxu0 0.0
    %351 = vmatprep.mubr.f32.mxu0 0.0
    %352 = vmatmul.mubr.f32.gmra.mrb[0].mxu0 %v283
    %v353 = vpop.f32.mrb[0].mxu0
    %v354 = vadd.f32 %v199, %v353
    %v355 = vpop.f32.mrb[0].mxu0
    %356 = vdwg.mxu0
    %357 = vrot.lane.b32.xlu0 %v183, 96
    %v358 = vpop.permute.xlu0 %357
    %v360 = vsel %vm204, %v190, 0
    %v362 = vsel %vm204, %v358, 0
    %364 = vmatprep.subr.mxu0 0.0
    %365 = vmatpush1.xpose.msra.mxu0 %v362
    %366 = vmatprep.subr.mxu0 0.0
    %367 = vmatpush1.xpose.msra.mxu0 0.0
    %368 = vmatprep.subr.mxu0 0.0
    %369 = vmatpush1.xpose.msra.mxu0 0.0
    %370 = vmatprep.subr.mxu0 0.0
    %371 = vmatpush1.xpose.msra.mxu0 0.0
    %372 = vmatprep.subr.mxu0 0.0
    %373 = vmatpush1.xpose.msra.mxu0 0.0
    %374 = vmatprep.subr.mxu0 0.0
    %375 = vmatpush1.xpose.msra.mxu0 0.0
    %376 = vmatprep.subr.mxu0 0.0
    %377 = vmatpush1.xpose.msra.mxu0 0.0
    %378 = vmatprep.subr.mxu0 0.0
    %379 = vmatpush1.xpose.msra.mxu0 0.0
    %380 = vmatprep.subr.mxu0 0.0
    %381 = vmatpush1.xpose.msra.mxu0 0.0
    %382 = vmatprep.subr.mxu0 0.0
    %383 = vmatpush1.xpose.msra.mxu0 0.0
    %384 = vmatprep.subr.mxu0 0.0
    %385 = vmatpush1.xpose.msra.mxu0 0.0
    %386 = vmatprep.subr.mxu0 0.0
    %387 = vmatpush1.xpose.msra.mxu0 0.0
    %388 = vmatprep.subr.mxu0 0.0
    %389 = vmatpush1.xpose.msra.mxu0 0.0
    %390 = vmatprep.subr.mxu0 0.0
    %391 = vmatpush1.xpose.msra.mxu0 0.0
    %392 = vmatprep.subr.mxu0 0.0
    %393 = vmatpush1.xpose.msra.mxu0 0.0
    %394 = vmatprep.subr.mxu0 0.0
    %395 = vmatpush1.xpose.msra.mxu0 0.0
    %396 = vmatprep.subr.mxu0 0.0
    %397 = vmatpush1.xpose.msra.mxu0 0.0
    %398 = vmatprep.subr.mxu0 0.0
    %399 = vmatpush1.xpose.msra.mxu0 0.0
    %400 = vmatprep.subr.mxu0 0.0
    %401 = vmatpush1.xpose.msra.mxu0 0.0
    %402 = vmatprep.subr.mxu0 0.0
    %403 = vmatpush1.xpose.msra.mxu0 0.0
    %404 = vmatprep.subr.mxu0 0.0
    %405 = vmatpush1.xpose.msra.mxu0 0.0
    %406 = vmatprep.subr.mxu0 0.0
    %407 = vmatpush1.xpose.msra.mxu0 0.0
    %408 = vmatprep.subr.mxu0 0.0
    %409 = vmatpush1.xpose.msra.mxu0 0.0
    %410 = vmatprep.subr.mxu0 0.0
    %411 = vmatpush1.xpose.msra.mxu0 0.0
    %412 = vmatprep.subr.mxu0 0.0
    %413 = vmatpush1.xpose.msra.mxu0 0.0
    %414 = vmatprep.subr.mxu0 0.0
    %415 = vmatpush1.xpose.msra.mxu0 0.0
    %416 = vmatprep.subr.mxu0 0.0
    %417 = vmatpush1.xpose.msra.mxu0 0.0
    %418 = vmatprep.subr.mxu0 0.0
    %419 = vmatpush1.xpose.msra.mxu0 0.0
    %420 = vmatprep.subr.mxu0 0.0
    %421 = vmatpush1.xpose.msra.mxu0 0.0
    %422 = vmatprep.subr.mxu0 0.0
    %423 = vmatpush1.xpose.msra.mxu0 0.0
    %424 = vmatprep.subr.mxu0 0.0
    %425 = vmatpush1.xpose.msra.mxu0 0.0
    %426 = vmatprep.subr.mxu0 0.0
    %427 = vmatpush1.xpose.msra.mxu0 0.0
    %428 = vmatprep.mubr.f32.mxu0 0.0
    %429 = vmatmul.mubr.f32.gmra.mrb[0].mxu0 %v360
    %v430 = vpop.f32.mrb[0].mxu0
    %v431 = vadd.f32 %v195, %v430
    %v432 = vpop.f32.mrb[0].mxu0
    %433 = vdwg.mxu0
    %434 = vrot.lane.b32.xlu0 %v185, 96
    %v435 = vpop.permute.xlu0 %434
    %v437 = vsel %vm204, %v191, 0
    %v439 = vsel %vm204, %v435, 0
    %441 = vmatprep.subr.mxu0 0.0
    %442 = vmatpush1.xpose.msra.mxu0 %v439
    %443 = vmatprep.subr.mxu0 0.0
    %444 = vmatpush1.xpose.msra.mxu0 0.0
    %445 = vmatprep.subr.mxu0 0.0
    %446 = vmatpush1.xpose.msra.mxu0 0.0
    %447 = vmatprep.subr.mxu0 0.0
    %448 = vmatpush1.xpose.msra.mxu0 0.0
    %449 = vmatprep.subr.mxu0 0.0
    %450 = vmatpush1.xpose.msra.mxu0 0.0
    %451 = vmatprep.subr.mxu0 0.0
    %452 = vmatpush1.xpose.msra.mxu0 0.0
    %453 = vmatprep.subr.mxu0 0.0
    %454 = vmatpush1.xpose.msra.mxu0 0.0
    %455 = vmatprep.subr.mxu0 0.0
    %456 = vmatpush1.xpose.msra.mxu0 0.0
    %457 = vmatprep.subr.mxu0 0.0
    %458 = vmatpush1.xpose.msra.mxu0 0.0
    %459 = vmatprep.subr.mxu0 0.0
    %460 = vmatpush1.xpose.msra.mxu0 0.0
    %461 = vmatprep.subr.mxu0 0.0
    %462 = vmatpush1.xpose.msra.mxu0 0.0
    %463 = vmatprep.subr.mxu0 0.0
    %464 = vmatpush1.xpose.msra.mxu0 0.0
    %465 = vmatprep.subr.mxu0 0.0
    %466 = vmatpush1.xpose.msra.mxu0 0.0
    %467 = vmatprep.subr.mxu0 0.0
    %468 = vmatpush1.xpose.msra.mxu0 0.0
    %469 = vmatprep.subr.mxu0 0.0
    %470 = vmatpush1.xpose.msra.mxu0 0.0
    %471 = vmatprep.subr.mxu0 0.0
    %472 = vmatpush1.xpose.msra.mxu0 0.0
    %473 = vmatprep.subr.mxu0 0.0
    %474 = vmatpush1.xpose.msra.mxu0 0.0
    %475 = vmatprep.subr.mxu0 0.0
    %476 = vmatpush1.xpose.msra.mxu0 0.0
    %477 = vmatprep.subr.mxu0 0.0
    %478 = vmatpush1.xpose.msra.mxu0 0.0
    %479 = vmatprep.subr.mxu0 0.0
    %480 = vmatpush1.xpose.msra.mxu0 0.0
    %481 = vmatprep.subr.mxu0 0.0
    %482 = vmatpush1.xpose.msra.mxu0 0.0
    %483 = vmatprep.subr.mxu0 0.0
    %484 = vmatpush1.xpose.msra.mxu0 0.0
    %485 = vmatprep.subr.mxu0 0.0
    %486 = vmatpush1.xpose.msra.mxu0 0.0
    %487 = vmatprep.subr.mxu0 0.0
    %488 = vmatpush1.xpose.msra.mxu0 0.0
    %489 = vmatprep.subr.mxu0 0.0
    %490 = vmatpush1.xpose.msra.mxu0 0.0
    %491 = vmatprep.subr.mxu0 0.0
    %492 = vmatpush1.xpose.msra.mxu0 0.0
    %493 = vmatprep.subr.mxu0 0.0
    %494 = vmatpush1.xpose.msra.mxu0 0.0
    %495 = vmatprep.subr.mxu0 0.0
    %496 = vmatpush1.xpose.msra.mxu0 0.0
    %497 = vmatprep.subr.mxu0 0.0
    %498 = vmatpush1.xpose.msra.mxu0 0.0
    %499 = vmatprep.subr.mxu0 0.0
    %500 = vmatpush1.xpose.msra.mxu0 0.0
    %501 = vmatprep.subr.mxu0 0.0
    %502 = vmatpush1.xpose.msra.mxu0 0.0
    %503 = vmatprep.subr.mxu0 0.0
    %504 = vmatpush1.xpose.msra.mxu0 0.0
    %505 = vmatprep.mubr.f32.mxu0 0.0
    %506 = vmatmul.mubr.f32.gmra.mrb[0].mxu0 %v437
    %v507 = vpop.f32.mrb[0].mxu0
    %v508 = vadd.f32 %v199, %v507
    %v509 = vpop.f32.mrb[0].mxu0
    %510 = vdwg.mxu0
    %vm511 = vcmask 64512
    %v512 = vsel %vm511, %v277, -inf
    %513 = vmax.xlane.f32.xlu0 %v512
    %v514 = vpop.xlane.xlu0 %513
    %v515 = vsel %vm511, %v354, -inf
    %516 = vmax.xlane.f32.xlu0 %v515
    %v517 = vpop.xlane.xlu0 %516
    %v518 = vsel %vm511, %v431, -inf
    %519 = vmax.xlane.f32.xlu0 %v518
    %v520 = vpop.xlane.xlu0 %519
    %v521 = vsel %vm511, %v508, -inf
    %522 = vmax.xlane.f32.xlu0 %v521
    %v523 = vpop.xlane.xlu0 %522
    %v524 = vsub.f32 %v277, %v514
    %v525 = vsub.f32 %v354, %v517
    %v526 = vsub.f32 %v431, %v520
    %v527 = vsub.f32 %v508, %v523
    %v528 = vmul.f32 %v524, 1.442695
    %v529 = vpow.pop %v528
    %v530 = vmul.f32 %v525, 1.442695
    %v531 = vpow.pop %v530
    %v532 = vmul.f32 %v526, 1.442695
    %v533 = vpow.pop %v532
    %v534 = vmul.f32 %v527, 1.442695
    %v535 = vpow.pop %v534
    %v536 = vsel %vm511, %v529, 0.0
    %537 = vadd.xlane.f32.xlu0 %v536
    %v538 = vpop.xlane.xlu0 %537
    %v539 = vsel %vm511, %v531, 0.0
    %540 = vadd.xlane.f32.xlu0 %v539
    %v541 = vpop.xlane.xlu0 %540
    %v542 = vsel %vm511, %v533, 0.0
    %543 = vadd.xlane.f32.xlu0 %v542
    %v544 = vpop.xlane.xlu0 %543
    %v545 = vsel %vm511, %v535, 0.0
    %546 = vadd.xlane.f32.xlu0 %v545
    %v547 = vpop.xlane.xlu0 %546
    %v548 = vrcp.pop %v538
    %v549 = vrcp.pop %v541
    %v550 = vrcp.pop %v544
    %v551 = vrcp.pop %v547
    %v552 = vmul.f32 %v529, %v548
    %v553 = vmul.f32 %v531, %v549
    %v554 = vmul.f32 %v533, %v550
    %v555 = vmul.f32 %v535, %v551
    %556 = vrot.lane.b32.xlu0 %v172, 64
    %v557 = vpop.permute.xlu0 %556
    %v560 = vsel %vm511, %v552, 0
    %562 = vmatprep.subr.mxu0 0.0
    %563 = vmatpush1.msra.mxu0 %v557
    %564 = vmatprep.subr.mxu0 0.0
    %565 = vmatpush1.msra.mxu0 0.0
    %566 = vmatprep.subr.mxu0 0.0
    %567 = vmatpush1.msra.mxu0 0.0
    %568 = vmatprep.subr.mxu0 0.0
    %569 = vmatpush1.msra.mxu0 0.0
    %570 = vmatprep.subr.mxu0 0.0
    %571 = vmatpush1.msra.mxu0 0.0
    %572 = vmatprep.subr.mxu0 0.0
    %573 = vmatpush1.msra.mxu0 0.0
    %574 = vmatprep.subr.mxu0 0.0
    %575 = vmatpush1.msra.mxu0 0.0
    %576 = vmatprep.subr.mxu0 0.0
    %577 = vmatpush1.msra.mxu0 0.0
    %578 = vmatprep.subr.mxu0 0.0
    %579 = vmatpush1.msra.mxu0 0.0
    %580 = vmatprep.subr.mxu0 0.0
    %581 = vmatpush1.msra.mxu0 0.0
    %582 = vmatprep.subr.mxu0 0.0
    %583 = vmatpush1.msra.mxu0 0.0
    %584 = vmatprep.subr.mxu0 0.0
    %585 = vmatpush1.msra.mxu0 0.0
    %586 = vmatprep.subr.mxu0 0.0
    %587 = vmatpush1.msra.mxu0 0.0
    %588 = vmatprep.subr.mxu0 0.0
    %589 = vmatpush1.msra.mxu0 0.0
    %590 = vmatprep.subr.mxu0 0.0
    %591 = vmatpush1.msra.mxu0 0.0
    %592 = vmatprep.subr.mxu0 0.0
    %593 = vmatpush1.msra.mxu0 0.0
    %594 = vmatprep.subr.mxu0 0.0
    %595 = vmatpush1.msra.mxu0 0.0
    %596 = vmatprep.subr.mxu0 0.0
    %597 = vmatpush1.msra.mxu0 0.0
    %598 = vmatprep.subr.mxu0 0.0
    %599 = vmatpush1.msra.mxu0 0.0
    %600 = vmatprep.subr.mxu0 0.0
    %601 = vmatpush1.msra.mxu0 0.0
    %602 = vmatprep.subr.mxu0 0.0
    %603 = vmatpush1.msra.mxu0 0.0
    %604 = vmatprep.subr.mxu0 0.0
    %605 = vmatpush1.msra.mxu0 0.0
    %606 = vmatprep.subr.mxu0 0.0
    %607 = vmatpush1.msra.mxu0 0.0
    %608 = vmatprep.subr.mxu0 0.0
    %609 = vmatpush1.msra.mxu0 0.0
    %610 = vmatprep.subr.mxu0 0.0
    %611 = vmatpush1.msra.mxu0 0.0
    %612 = vmatprep.subr.mxu0 0.0
    %613 = vmatpush1.msra.mxu0 0.0
    %614 = vmatprep.subr.mxu0 0.0
    %615 = vmatpush1.msra.mxu0 0.0
    %616 = vmatprep.subr.mxu0 0.0
    %617 = vmatpush1.msra.mxu0 0.0
    %618 = vmatprep.subr.mxu0 0.0
    %619 = vmatpush1.msra.mxu0 0.0
    %620 = vmatprep.subr.mxu0 0.0
    %621 = vmatpush1.msra.mxu0 0.0
    %622 = vmatprep.subr.mxu0 0.0
    %623 = vmatpush1.msra.mxu0 0.0
    %624 = vmatprep.subr.mxu0 0.0
    %625 = vmatpush1.msra.mxu0 0.0
    %626 = vmatprep.mubr.f32.mxu0 0.0
    %627 = vmatmul.mubr.f32.gmra.mrb[0].mxu0 %v560
    %v628 = vpop.f32.mrb[0].mxu0
    %v629 = vadd.f32 0.0, %v628
    %v630 = vpop.f32.mrb[0].mxu0
    %631 = vdwg.mxu0
    %632 = vrot.lane.b32.xlu0 %v177, 64
    %v633 = vpop.permute.xlu0 %632
    %v636 = vsel %vm511, %v553, 0
    %638 = vmatprep.subr.mxu0 0.0
    %639 = vmatpush1.msra.mxu0 %v633
    %640 = vmatprep.subr.mxu0 0.0
    %641 = vmatpush1.msra.mxu0 0.0
    %642 = vmatprep.subr.mxu0 0.0
    %643 = vmatpush1.msra.mxu0 0.0
    %644 = vmatprep.subr.mxu0 0.0
    %645 = vmatpush1.msra.mxu0 0.0
    %646 = vmatprep.subr.mxu0 0.0
    %647 = vmatpush1.msra.mxu0 0.0
    %648 = vmatprep.subr.mxu0 0.0
    %649 = vmatpush1.msra.mxu0 0.0
    %650 = vmatprep.subr.mxu0 0.0
    %651 = vmatpush1.msra.mxu0 0.0
    %652 = vmatprep.subr.mxu0 0.0
    %653 = vmatpush1.msra.mxu0 0.0
    %654 = vmatprep.subr.mxu0 0.0
    %655 = vmatpush1.msra.mxu0 0.0
    %656 = vmatprep.subr.mxu0 0.0
    %657 = vmatpush1.msra.mxu0 0.0
    %658 = vmatprep.subr.mxu0 0.0
    %659 = vmatpush1.msra.mxu0 0.0
    %660 = vmatprep.subr.mxu0 0.0
    %661 = vmatpush1.msra.mxu0 0.0
    %662 = vmatprep.subr.mxu0 0.0
    %663 = vmatpush1.msra.mxu0 0.0
    %664 = vmatprep.subr.mxu0 0.0
    %665 = vmatpush1.msra.mxu0 0.0
    %666 = vmatprep.subr.mxu0 0.0
    %667 = vmatpush1.msra.mxu0 0.0
    %668 = vmatprep.subr.mxu0 0.0
    %669 = vmatpush1.msra.mxu0 0.0
    %670 = vmatprep.subr.mxu0 0.0
    %671 = vmatpush1.msra.mxu0 0.0
    %672 = vmatprep.subr.mxu0 0.0
    %673 = vmatpush1.msra.mxu0 0.0
    %674 = vmatprep.subr.mxu0 0.0
    %675 = vmatpush1.msra.mxu0 0.0
    %676 = vmatprep.subr.mxu0 0.0
    %677 = vmatpush1.msra.mxu0 0.0
    %678 = vmatprep.subr.mxu0 0.0
    %679 = vmatpush1.msra.mxu0 0.0
    %680 = vmatprep.subr.mxu0 0.0
    %681 = vmatpush1.msra.mxu0 0.0
    %682 = vmatprep.subr.mxu0 0.0
    %683 = vmatpush1.msra.mxu0 0.0
    %684 = vmatprep.subr.mxu0 0.0
    %685 = vmatpush1.msra.mxu0 0.0
    %686 = vmatprep.subr.mxu0 0.0
    %687 = vmatpush1.msra.mxu0 0.0
    %688 = vmatprep.subr.mxu0 0.0
    %689 = vmatpush1.msra.mxu0 0.0
    %690 = vmatprep.subr.mxu0 0.0
    %691 = vmatpush1.msra.mxu0 0.0
    %692 = vmatprep.subr.mxu0 0.0
    %693 = vmatpush1.msra.mxu0 0.0
    %694 = vmatprep.subr.mxu0 0.0
    %695 = vmatpush1.msra.mxu0 0.0
    %696 = vmatprep.subr.mxu0 0.0
    %697 = vmatpush1.msra.mxu0 0.0
    %698 = vmatprep.subr.mxu0 0.0
    %699 = vmatpush1.msra.mxu0 0.0
    %700 = vmatprep.subr.mxu0 0.0
    %701 = vmatpush1.msra.mxu0 0.0
    %702 = vmatprep.mubr.f32.mxu0 0.0
    %703 = vmatmul.mubr.f32.gmra.mrb[0].mxu0 %v636
    %v704 = vpop.f32.mrb[0].mxu0
    %v705 = vadd.f32 0.0, %v704
    %v706 = vpop.f32.mrb[0].mxu0
    %707 = vdwg.mxu0
    %708 = vrot.lane.b32.xlu0 %v183, 64
    %v709 = vpop.permute.xlu0 %708
    %v712 = vsel %vm511, %v554, 0
    %714 = vmatprep.subr.mxu0 0.0
    %715 = vmatpush1.msra.mxu0 %v709
    %716 = vmatprep.subr.mxu0 0.0
    %717 = vmatpush1.msra.mxu0 0.0
    %718 = vmatprep.subr.mxu0 0.0
    %719 = vmatpush1.msra.mxu0 0.0
    %720 = vmatprep.subr.mxu0 0.0
    %721 = vmatpush1.msra.mxu0 0.0
    %722 = vmatprep.subr.mxu0 0.0
    %723 = vmatpush1.msra.mxu0 0.0
    %724 = vmatprep.subr.mxu0 0.0
    %725 = vmatpush1.msra.mxu0 0.0
    %726 = vmatprep.subr.mxu0 0.0
    %727 = vmatpush1.msra.mxu0 0.0
    %728 = vmatprep.subr.mxu0 0.0
    %729 = vmatpush1.msra.mxu0 0.0
    %730 = vmatprep.subr.mxu0 0.0
    %731 = vmatpush1.msra.mxu0 0.0
    %732 = vmatprep.subr.mxu0 0.0
    %733 = vmatpush1.msra.mxu0 0.0
    %734 = vmatprep.subr.mxu0 0.0
    %735 = vmatpush1.msra.mxu0 0.0
    %736 = vmatprep.subr.mxu0 0.0
    %737 = vmatpush1.msra.mxu0 0.0
    %738 = vmatprep.subr.mxu0 0.0
    %739 = vmatpush1.msra.mxu0 0.0
    %740 = vmatprep.subr.mxu0 0.0
    %741 = vmatpush1.msra.mxu0 0.0
    %742 = vmatprep.subr.mxu0 0.0
    %743 = vmatpush1.msra.mxu0 0.0
    %744 = vmatprep.subr.mxu0 0.0
    %745 = vmatpush1.msra.mxu0 0.0
    %746 = vmatprep.subr.mxu0 0.0
    %747 = vmatpush1.msra.mxu0 0.0
    %748 = vmatprep.subr.mxu0 0.0
    %749 = vmatpush1.msra.mxu0 0.0
    %750 = vmatprep.subr.mxu0 0.0
    %751 = vmatpush1.msra.mxu0 0.0
    %752 = vmatprep.subr.mxu0 0.0
    %753 = vmatpush1.msra.mxu0 0.0
    %754 = vmatprep.subr.mxu0 0.0
    %755 = vmatpush1.msra.mxu0 0.0
    %756 = vmatprep.subr.mxu0 0.0
    %757 = vmatpush1.msra.mxu0 0.0
    %758 = vmatprep.subr.mxu0 0.0
    %759 = vmatpush1.msra.mxu0 0.0
    %760 = vmatprep.subr.mxu0 0.0
    %761 = vmatpush1.msra.mxu0 0.0
    %762 = vmatprep.subr.mxu0 0.0
    %763 = vmatpush1.msra.mxu0 0.0
    %764 = vmatprep.subr.mxu0 0.0
    %765 = vmatpush1.msra.mxu0 0.0
    %766 = vmatprep.subr.mxu0 0.0
    %767 = vmatpush1.msra.mxu0 0.0
    %768 = vmatprep.subr.mxu0 0.0
    %769 = vmatpush1.msra.mxu0 0.0
    %770 = vmatprep.subr.mxu0 0.0
    %771 = vmatpush1.msra.mxu0 0.0
    %772 = vmatprep.subr.mxu0 0.0
    %773 = vmatpush1.msra.mxu0 0.0
    %774 = vmatprep.subr.mxu0 0.0
    %775 = vmatpush1.msra.mxu0 0.0
    %776 = vmatprep.subr.mxu0 0.0
    %777 = vmatpush1.msra.mxu0 0.0
    %778 = vmatprep.mubr.f32.mxu0 0.0
    %779 = vmatmul.mubr.f32.gmra.mrb[0].mxu0 %v712
    %v780 = vpop.f32.mrb[0].mxu0
    %v781 = vadd.f32 0.0, %v780
    %v782 = vpop.f32.mrb[0].mxu0
    %783 = vdwg.mxu0
    %784 = vrot.lane.b32.xlu0 %v185, 64
    %v785 = vpop.permute.xlu0 %784
    %v788 = vsel %vm511, %v555, 0
    %790 = vmatprep.subr.mxu0 0.0
    %791 = vmatpush1.msra.mxu0 %v785
    %792 = vmatprep.subr.mxu0 0.0
    %793 = vmatpush1.msra.mxu0 0.0
    %794 = vmatprep.subr.mxu0 0.0
    %795 = vmatpush1.msra.mxu0 0.0
    %796 = vmatprep.subr.mxu0 0.0
    %797 = vmatpush1.msra.mxu0 0.0
    %798 = vmatprep.subr.mxu0 0.0
    %799 = vmatpush1.msra.mxu0 0.0
    %800 = vmatprep.subr.mxu0 0.0
    %801 = vmatpush1.msra.mxu0 0.0
    %802 = vmatprep.subr.mxu0 0.0
    %803 = vmatpush1.msra.mxu0 0.0
    %804 = vmatprep.subr.mxu0 0.0
    %805 = vmatpush1.msra.mxu0 0.0
    %806 = vmatprep.subr.mxu0 0.0
    %807 = vmatpush1.msra.mxu0 0.0
    %808 = vmatprep.subr.mxu0 0.0
    %809 = vmatpush1.msra.mxu0 0.0
    %810 = vmatprep.subr.mxu0 0.0
    %811 = vmatpush1.msra.mxu0 0.0
    %812 = vmatprep.subr.mxu0 0.0
    %813 = vmatpush1.msra.mxu0 0.0
    %814 = vmatprep.subr.mxu0 0.0
    %815 = vmatpush1.msra.mxu0 0.0
    %816 = vmatprep.subr.mxu0 0.0
    %817 = vmatpush1.msra.mxu0 0.0
    %818 = vmatprep.subr.mxu0 0.0
    %819 = vmatpush1.msra.mxu0 0.0
    %820 = vmatprep.subr.mxu0 0.0
    %821 = vmatpush1.msra.mxu0 0.0
    %822 = vmatprep.subr.mxu0 0.0
    %823 = vmatpush1.msra.mxu0 0.0
    %824 = vmatprep.subr.mxu0 0.0
    %825 = vmatpush1.msra.mxu0 0.0
    %826 = vmatprep.subr.mxu0 0.0
    %827 = vmatpush1.msra.mxu0 0.0
    %828 = vmatprep.subr.mxu0 0.0
    %829 = vmatpush1.msra.mxu0 0.0
    %830 = vmatprep.subr.mxu0 0.0
    %831 = vmatpush1.msra.mxu0 0.0
    %832 = vmatprep.subr.mxu0 0.0
    %833 = vmatpush1.msra.mxu0 0.0
    %834 = vmatprep.subr.mxu0 0.0
    %835 = vmatpush1.msra.mxu0 0.0
    %836 = vmatprep.subr.mxu0 0.0
    %837 = vmatpush1.msra.mxu0 0.0
    %838 = vmatprep.subr.mxu0 0.0
    %839 = vmatpush1.msra.mxu0 0.0
    %840 = vmatprep.subr.mxu0 0.0
    %841 = vmatpush1.msra.mxu0 0.0
    %842 = vmatprep.subr.mxu0 0.0
    %843 = vmatpush1.msra.mxu0 0.0
    %844 = vmatprep.subr.mxu0 0.0
    %845 = vmatpush1.msra.mxu0 0.0
    %846 = vmatprep.subr.mxu0 0.0
    %847 = vmatpush1.msra.mxu0 0.0
    %848 = vmatprep.subr.mxu0 0.0
    %849 = vmatpush1.msra.mxu0 0.0
    %850 = vmatprep.subr.mxu0 0.0
    %851 = vmatpush1.msra.mxu0 0.0
    %852 = vmatprep.subr.mxu0 0.0
    %853 = vmatpush1.msra.mxu0 0.0
    %854 = vmatprep.mubr.f32.mxu0 0.0
    %855 = vmatmul.mubr.f32.gmra.mrb[0].mxu0 %v788
    %v856 = vpop.f32.mrb[0].mxu0
    %v857 = vadd.f32 0.0, %v856
    %v858 = vpop.f32.mrb[0].mxu0
    %859 = vdwg.mxu0
    %862 = vrot.lane.b32.xlu0 %v781, 16
    %v863 = vpop.permute.xlu0 %862
    %864 = vrot.lane.b32.xlu0 %v857, 16
    %v865 = vpop.permute.xlu0 %864
    %v868 = vsel %vm204, %v629, %v863
    %v869 = vsel %vm204, %v705, %v865
    %v870 = vadd.f32 %v59, %v868
    %v871 = vadd.f32 %v60, %v869
    %v872 = vld [vmem:[%s4] sm:$0xff]
    %v873 = vld [vmem:[%s4 + $0x8] sm:$0xff]
    %v874 = vld [vmem:[%s4 + $0x10] sm:$0xff]
    %v875 = vld [vmem:[%s4 + $0x18] sm:$0xff]
    %v876 = vld [vmem:[%s5] sm:$0x1]
    %v878 = vlaneseq
    %v879 = vshrl.u32 %v878, 7
    %v880 = vsub.s32 0, %v879
    %v881 = vrot.slane %v876, %v880
    %v884 = vsel %vm98, %v868, 0
    %v887 = vsel %vm98, %v869, 0
    %889 = vmatprep.subr.mxu0 0.0
    %890 = vmatpush1.msra.mxu0 %v872
    %891 = vmatprep.subr.mxu0 0.0
    %892 = vmatpush1.msra.mxu0 %v873
    %893 = vmatprep.subr.mxu0 0.0
    %894 = vmatpush1.msra.mxu0 %v874
    %895 = vmatprep.subr.mxu0 0.0
    %896 = vmatpush1.msra.mxu0 %v875
    %897 = vmatprep.subr.mxu0 0.0
    %898 = vmatpush1.msra.mxu0 0.0
    %899 = vmatprep.subr.mxu0 0.0
    %900 = vmatpush1.msra.mxu0 0.0
    %901 = vmatprep.subr.mxu0 0.0
    %902 = vmatpush1.msra.mxu0 0.0
    %903 = vmatprep.subr.mxu0 0.0
    %904 = vmatpush1.msra.mxu0 0.0
    %905 = vmatprep.subr.mxu0 0.0
    %906 = vmatpush1.msra.mxu0 0.0
    %907 = vmatprep.subr.mxu0 0.0
    %908 = vmatpush1.msra.mxu0 0.0
    %909 = vmatprep.subr.mxu0 0.0
    %910 = vmatpush1.msra.mxu0 0.0
    %911 = vmatprep.subr.mxu0 0.0
    %912 = vmatpush1.msra.mxu0 0.0
    %913 = vmatprep.subr.mxu0 0.0
    %914 = vmatpush1.msra.mxu0 0.0
    %915 = vmatprep.subr.mxu0 0.0
    %916 = vmatpush1.msra.mxu0 0.0
    %917 = vmatprep.subr.mxu0 0.0
    %918 = vmatpush1.msra.mxu0 0.0
    %919 = vmatprep.subr.mxu0 0.0
    %920 = vmatpush1.msra.mxu0 0.0
    %921 = vmatprep.subr.mxu0 0.0
    %922 = vmatpush1.msra.mxu0 0.0
    %923 = vmatprep.subr.mxu0 0.0
    %924 = vmatpush1.msra.mxu0 0.0
    %925 = vmatprep.subr.mxu0 0.0
    %926 = vmatpush1.msra.mxu0 0.0
    %927 = vmatprep.subr.mxu0 0.0
    %928 = vmatpush1.msra.mxu0 0.0
    %929 = vmatprep.subr.mxu0 0.0
    %930 = vmatpush1.msra.mxu0 0.0
    %931 = vmatprep.subr.mxu0 0.0
    %932 = vmatpush1.msra.mxu0 0.0
    %933 = vmatprep.subr.mxu0 0.0
    %934 = vmatpush1.msra.mxu0 0.0
    %935 = vmatprep.subr.mxu0 0.0
    %936 = vmatpush1.msra.mxu0 0.0
    %937 = vmatprep.subr.mxu0 0.0
    %938 = vmatpush1.msra.mxu0 0.0
    %939 = vmatprep.subr.mxu0 0.0
    %940 = vmatpush1.msra.mxu0 0.0
    %941 = vmatprep.subr.mxu0 0.0
    %942 = vmatpush1.msra.mxu0 0.0
    %943 = vmatprep.subr.mxu0 0.0
    %944 = vmatpush1.msra.mxu0 0.0
    %945 = vmatprep.subr.mxu0 0.0
    %946 = vmatpush1.msra.mxu0 0.0
    %947 = vmatprep.subr.mxu0 0.0
    %948 = vmatpush1.msra.mxu0 0.0
    %949 = vmatprep.subr.mxu0 0.0
    %950 = vmatpush1.msra.mxu0 0.0
    %951 = vmatprep.subr.mxu0 0.0
    %952 = vmatpush1.msra.mxu0 0.0
    %953 = vmatprep.mubr.f32.mxu0 0.0
    %954 = vmatmul.mubr.f32.gmra.mrb[0].mxu0 %v884
    %v955 = vpop.f32.mrb[0].mxu0
    %v956 = vadd.f32 %v881, %v955
    %v957 = vpop.f32.mrb[0].mxu0
    %958 = vmatprep.mubr.f32.mxu0 0.0
    %959 = vmatmul.mubr.f32.gmra.mrb[0].mxu0 %v887
    %v960 = vpop.f32.mrb[0].mxu0
    %v961 = vadd.f32 %v881, %v960
    %v962 = vpop.f32.mrb[0].mxu0
    %963 = vdwg.mxu0
    %v964 = vmax.f32 %v956, 0.0
    %v965 = vmax.f32 %v961, 0.0
    %v966 = vld [vmem:[%s6] sm:$0xff]
    %v967 = vld [vmem:[%s6 + $0x8] sm:$0xff]
    %v968 = vld [vmem:[%s6 + $0x10] sm:$0xff]
    %v969 = vld [vmem:[%s6 + $0x18] sm:$0xff]
    %v970 = vld [vmem:[%s7] sm:$0x1]
    %v972 = vlaneseq
    %v973 = vshrl.u32 %v972, 7
    %v974 = vsub.s32 0, %v973
    %v975 = vrot.slane %v970, %v974
    %v978 = vsel %vm98, %v964, 0
    %v981 = vsel %vm98, %v965, 0
    %983 = vmatprep.subr.mxu0 0.0
    %984 = vmatpush1.msra.mxu0 %v966
    %985 = vmatprep.subr.mxu0 0.0
    %986 = vmatpush1.msra.mxu0 %v967
    %987 = vmatprep.subr.mxu0 0.0
    %988 = vmatpush1.msra.mxu0 %v968
    %989 = vmatprep.subr.mxu0 0.0
    %990 = vmatpush1.msra.mxu0 %v969
    %991 = vmatprep.subr.mxu0 0.0
    %992 = vmatpush1.msra.mxu0 0.0
    %993 = vmatprep.subr.mxu0 0.0
    %994 = vmatpush1.msra.mxu0 0.0
    %995 = vmatprep.subr.mxu0 0.0
    %996 = vmatpush1.msra.mxu0 0.0
    %997 = vmatprep.subr.mxu0 0.0
    %998 = vmatpush1.msra.mxu0 0.0
    %999 = vmatprep.subr.mxu0 0.0
    %1000 = vmatpush1.msra.mxu0 0.0
    %1001 = vmatprep.subr.mxu0 0.0
    %1002 = vmatpush1.msra.mxu0 0.0
    %1003 = vmatprep.subr.mxu0 0.0
    %1004 = vmatpush1.msra.mxu0 0.0
    %1005 = vmatprep.subr.mxu0 0.0
    %1006 = vmatpush1.msra.mxu0 0.0
    %1007 = vmatprep.subr.mxu0 0.0
    %1008 = vmatpush1.msra.mxu0 0.0
    %1009 = vmatprep.subr.mxu0 0.0
    %1010 = vmatpush1.msra.mxu0 0.0
    %1011 = vmatprep.subr.mxu0 0.0
    %1012 = vmatpush1.msra.mxu0 0.0
    %1013 = vmatprep.subr.mxu0 0.0
    %1014 = vmatpush1.msra.mxu0 0.0
    %1015 = vmatprep.subr.mxu0 0.0
    %1016 = vmatpush1.msra.mxu0 0.0
    %1017 = vmatprep.subr.mxu0 0.0
    %1018 = vmatpush1.msra.mxu0 0.0
    %1019 = vmatprep.subr.mxu0 0.0
    %1020 = vmatpush1.msra.mxu0 0.0
    %1021 = vmatprep.subr.mxu0 0.0
    %1022 = vmatpush1.msra.mxu0 0.0
    %1023 = vmatprep.subr.mxu0 0.0
    %1024 = vmatpush1.msra.mxu0 0.0
    %1025 = vmatprep.subr.mxu0 0.0
    %1026 = vmatpush1.msra.mxu0 0.0
    %1027 = vmatprep.subr.mxu0 0.0
    %1028 = vmatpush1.msra.mxu0 0.0
    %1029 = vmatprep.subr.mxu0 0.0
    %1030 = vmatpush1.msra.mxu0 0.0
    %1031 = vmatprep.subr.mxu0 0.0
    %1032 = vmatpush1.msra.mxu0 0.0
    %1033 = vmatprep.subr.mxu0 0.0
    %1034 = vmatpush1.msra.mxu0 0.0
    %1035 = vmatprep.subr.mxu0 0.0
    %1036 = vmatpush1.msra.mxu0 0.0
    %1037 = vmatprep.subr.mxu0 0.0
    %1038 = vmatpush1.msra.mxu0 0.0
    %1039 = vmatprep.subr.mxu0 0.0
    %1040 = vmatpush1.msra.mxu0 0.0
    %1041 = vmatprep.subr.mxu0 0.0
    %1042 = vmatpush1.msra.mxu0 0.0
    %1043 = vmatprep.subr.mxu0 0.0
    %1044 = vmatpush1.msra.mxu0 0.0
    %1045 = vmatprep.subr.mxu0 0.0
    %1046 = vmatpush1.msra.mxu0 0.0
    %1047 = vmatprep.mubr.f32.mxu0 0.0
    %1048 = vmatmul.mubr.f32.gmra.mrb[0].mxu0 %v978
    %v1049 = vpop.f32.mrb[0].mxu0
    %v1050 = vadd.f32 %v975, %v1049
    %v1051 = vpop.f32.mrb[0].mxu0
    %1052 = vmatprep.mubr.f32.mxu0 0.0
    %1053 = vmatmul.mubr.f32.gmra.mrb[0].mxu0 %v981
    %v1054 = vpop.f32.mrb[0].mxu0
    %v1055 = vadd.f32 %v975, %v1054
    %v1056 = vpop.f32.mrb[0].mxu0
    %1057 = vdwg.mxu0
    %v1058 = vadd.f32 %v870, %v1050
    %v1059 = vadd.f32 %v871, %v1055
    %v1060 = vsel %vm98, %v1058, 0.0
    %1061 = vadd.xlane.f32.xlu0 %v1060
    %v1062 = vpop.xlane.xlu0 %1061
    %v1063 = vsel %vm98, %v1059, 0.0
    %1064 = vadd.xlane.f32.xlu0 %v1063
    %v1065 = vpop.xlane.xlu0 %1064
    %v1066 = vrcp.pop 32.0
    %v1067 = vmul.f32 %v1062, %v1066
    %v1068 = vmul.f32 %v1065, %v1066
    %v1069 = vsub.f32 %v1058, %v1067
    %v1070 = vsub.f32 %v1059, %v1068
    %v1071 = vmul.f32 %v1069, %v1069
    %v1072 = vmul.f32 %v1070, %v1070
    %v1073 = vsel %vm98, %v1071, 0.0
    %1074 = vadd.xlane.f32.xlu0 %v1073
    %v1075 = vpop.xlane.xlu0 %1074
    %v1076 = vsel %vm98, %v1072, 0.0
    %1077 = vadd.xlane.f32.xlu0 %v1076
    %v1078 = vpop.xlane.xlu0 %1077
    %v1079 = vmul.f32 %v1075, %v1066
    %v1080 = vmul.f32 %v1078, %v1066
    %v1081 = vadd.f32 %v1079, 1e-05
    %v1082 = vadd.f32 %v1080, 1e-05
    %v1083 = vrsqrt.pop %v1081
    %v1084 = vrsqrt.pop %v1082
    %v1085 = vmul.f32 %v1069, %v1083
    %v1086 = vmul.f32 %v1070, %v1084
    %v1087 = vld [vmem:[%s8] sm:$0x1]
    %v1089 = vlaneseq
    %v1090 = vshrl.u32 %v1089, 7
    %v1091 = vsub.s32 0, %v1090
    %v1092 = vrot.slane %v1087, %v1091
    %v1094 = vmul.f32 %v1085, %v1092
    %v1095 = vmul.f32 %v1086, %v1092
    %v1096 = vld [vmem:[%s9] sm:$0x1]
    %v1098 = vlaneseq
    %v1099 = vshrl.u32 %v1098, 7
    %v1100 = vsub.s32 0, %v1099
    %v1101 = vrot.slane %v1096, %v1100
    %v1103 = vadd.f32 %v1094, %v1101
    %v1104 = vadd.f32 %v1095, %v1101
    %s1105 = scalar_lea.vmem %s2, 32
    %v1106 = vld [vmem:[%s1105] sm:$0xff]
    %v1107 = vld [vmem:[%s1105 + $0x8] sm:$0xff]
    %v1108 = vld [vmem:[%s1105 + $0x10] sm:$0xff]
    %v1109 = vld [vmem:[%s1105 + $0x18] sm:$0xff]
    %s1110 = scalar_lea.vmem %s3, 1
    %v1111 = vld [vmem:[%s1110] sm:$0x1]
    %v1113 = vlaneseq
    %v1114 = vshrl.u32 %v1113, 7
    %v1115 = vsub.s32 0, %v1114
    %v1116 = vrot.slane %v1111, %v1115
    %v1119 = vsel %vm98, %v1103, 0
    %v1122 = vsel %vm98, %v1104, 0
    %1124 = vmatprep.subr.mxu0 0.0
    %1125 = vmatpush1.msra.mxu0 %v1106
    %1126 = vmatprep.subr.mxu0 0.0
    %1127 = vmatpush1.msra.mxu0 %v1107
    %1128 = vmatprep.subr.mxu0 0.0
    %1129 = vmatpush1.msra.mxu0 %v1108
    %1130 = vmatprep.subr.mxu0 0.0
    %1131 = vmatpush1.msra.mxu0 %v1109
    %1132 = vmatprep.subr.mxu0 0.0
    %1133 = vmatpush1.msra.mxu0 0.0
    %1134 = vmatprep.subr.mxu0 0.0
    %1135 = vmatpush1.msra.mxu0 0.0
    %1136 = vmatprep.subr.mxu0 0.0
    %1137 = vmatpush1.msra.mxu0 0.0
    %1138 = vmatprep.subr.mxu0 0.0
    %1139 = vmatpush1.msra.mxu0 0.0
    %1140 = vmatprep.subr.mxu0 0.0
    %1141 = vmatpush1.msra.mxu0 0.0
    %1142 = vmatprep.subr.mxu0 0.0
    %1143 = vmatpush1.msra.mxu0 0.0
    %1144 = vmatprep.subr.mxu0 0.0
    %1145 = vmatpush1.msra.mxu0 0.0
    %1146 = vmatprep.subr.mxu0 0.0
    %1147 = vmatpush1.msra.mxu0 0.0
    %1148 = vmatprep.subr.mxu0 0.0
    %1149 = vmatpush1.msra.mxu0 0.0
    %1150 = vmatprep.subr.mxu0 0.0
    %1151 = vmatpush1.msra.mxu0 0.0
    %1152 = vmatprep.subr.mxu0 0.0
    %1153 = vmatpush1.msra.mxu0 0.0
    %1154 = vmatprep.subr.mxu0 0.0
    %1155 = vmatpush1.msra.mxu0 0.0
    %1156 = vmatprep.subr.mxu0 0.0
    %1157 = vmatpush1.msra.mxu0 0.0
    %1158 = vmatprep.subr.mxu0 0.0
    %1159 = vmatpush1.msra.mxu0 0.0
    %1160 = vmatprep.subr.mxu0 0.0
    %1161 = vmatpush1.msra.mxu0 0.0
    %1162 = vmatprep.subr.mxu0 0.0
    %1163 = vmatpush1.msra.mxu0 0.0
    %1164 = vmatprep.subr.mxu0 0.0
    %1165 = vmatpush1.msra.mxu0 0.0
    %1166 = vmatprep.subr.mxu0 0.0
    %1167 = vmatpush1.msra.mxu0 0.0
    %1168 = vmatprep.subr.mxu0 0.0
    %1169 = vmatpush1.msra.mxu0 0.0
    %1170 = vmatprep.subr.mxu0 0.0
    %1171 = vmatpush1.msra.mxu0 0.0
    %1172 = vmatprep.subr.mxu0 0.0
    %1173 = vmatpush1.msra.mxu0 0.0
    %1174 = vmatprep.subr.mxu0 0.0
    %1175 = vmatpush1.msra.mxu0 0.0
    %1176 = vmatprep.subr.mxu0 0.0
    %1177 = vmatpush1.msra.mxu0 0.0
    %1178 = vmatprep.subr.mxu0 0.0
    %1179 = vmatpush1.msra.mxu0 0.0
    %1180 = vmatprep.subr.mxu0 0.0
    %1181 = vmatpush1.msra.mxu0 0.0
    %1182 = vmatprep.subr.mxu0 0.0
    %1183 = vmatpush1.msra.mxu0 0.0
    %1184 = vmatprep.subr.mxu0 0.0
    %1185 = vmatpush1.msra.mxu0 0.0
    %1186 = vmatprep.subr.mxu0 0.0
    %1187 = vmatpush1.msra.mxu0 0.0
    %1188 = vmatprep.mubr.f32.mxu0 0.0
    %1189 = vmatmul.mubr.f32.gmra.mrb[0].mxu0 %v1119
    %v1190 = vpop.f32.mrb[0].mxu0
    %v1191 = vadd.f32 %v1116, %v1190
    %v1192 = vpop.f32.mrb[0].mxu0
    %1193 = vmatprep.mubr.f32.mxu0 0.0
    %1194 = vmatmul.mubr.f32.gmra.mrb[0].mxu0 %v1122
    %v1195 = vpop.f32.mrb[0].mxu0
    %v1196 = vadd.f32 %v1116, %v1195
    %v1197 = vpop.f32.mrb[0].mxu0
    %1198 = vdwg.mxu0
    %1201 = vrot.lane.b32.xlu0 %v1191, 112
    %v1202 = vpop.permute.xlu0 %1201
    %1203 = vrot.lane.b32.xlu0 %v1196, 112
    %v1204 = vpop.permute.xlu0 %1203
    %v1207 = vmul.f32 %v1191, 0.17677669
    %v1208 = vmul.f32 %v1196, 0.17677669
    %v1209 = vmul.f32 %v1202, 0.17677669
    %v1210 = vmul.f32 %v1204, 0.17677669
    %1211 = vrot.lane.b32.xlu0 %v1191, 96
    %v1212 = vpop.permute.xlu0 %1211
    %v1214 = vsel %vm204, %v1207, 0
    %v1216 = vsel %vm204, %v1212, 0
    %1218 = vmatprep.subr.mxu0 0.0
    %1219 = vmatpush1.xpose.msra.mxu0 %v1216
    %1220 = vmatprep.subr.mxu0 0.0
    %1221 = vmatpush1.xpose.msra.mxu0 0.0
    %1222 = vmatprep.subr.mxu0 0.0
    %1223 = vmatpush1.xpose.msra.mxu0 0.0
    %1224 = vmatprep.subr.mxu0 0.0
    %1225 = vmatpush1.xpose.msra.mxu0 0.0
    %1226 = vmatprep.subr.mxu0 0.0
    %1227 = vmatpush1.xpose.msra.mxu0 0.0
    %1228 = vmatprep.subr.mxu0 0.0
    %1229 = vmatpush1.xpose.msra.mxu0 0.0
    %1230 = vmatprep.subr.mxu0 0.0
    %1231 = vmatpush1.xpose.msra.mxu0 0.0
    %1232 = vmatprep.subr.mxu0 0.0
    %1233 = vmatpush1.xpose.msra.mxu0 0.0
    %1234 = vmatprep.subr.mxu0 0.0
    %1235 = vmatpush1.xpose.msra.mxu0 0.0
    %1236 = vmatprep.subr.mxu0 0.0
    %1237 = vmatpush1.xpose.msra.mxu0 0.0
    %1238 = vmatprep.subr.mxu0 0.0
    %1239 = vmatpush1.xpose.msra.mxu0 0.0
    %1240 = vmatprep.subr.mxu0 0.0
    %1241 = vmatpush1.xpose.msra.mxu0 0.0
    %1242 = vmatprep.subr.mxu0 0.0
    %1243 = vmatpush1.xpose.msra.mxu0 0.0
    %1244 = vmatprep.subr.mxu0 0.0
    %1245 = vmatpush1.xpose.msra.mxu0 0.0
    %1246 = vmatprep.subr.mxu0 0.0
    %1247 = vmatpush1.xpose.msra.mxu0 0.0
    %1248 = vmatprep.subr.mxu0 0.0
    %1249 = vmatpush1.xpose.msra.mxu0 0.0
    %1250 = vmatprep.subr.mxu0 0.0
    %1251 = vmatpush1.xpose.msra.mxu0 0.0
    %1252 = vmatprep.subr.mxu0 0.0
    %1253 = vmatpush1.xpose.msra.mxu0 0.0
    %1254 = vmatprep.subr.mxu0 0.0
    %1255 = vmatpush1.xpose.msra.mxu0 0.0
    %1256 = vmatprep.subr.mxu0 0.0
    %1257 = vmatpush1.xpose.msra.mxu0 0.0
    %1258 = vmatprep.subr.mxu0 0.0
    %1259 = vmatpush1.xpose.msra.mxu0 0.0
    %1260 = vmatprep.subr.mxu0 0.0
    %1261 = vmatpush1.xpose.msra.mxu0 0.0
    %1262 = vmatprep.subr.mxu0 0.0
    %1263 = vmatpush1.xpose.msra.mxu0 0.0
    %1264 = vmatprep.subr.mxu0 0.0
    %1265 = vmatpush1.xpose.msra.mxu0 0.0
    %1266 = vmatprep.subr.mxu0 0.0
    %1267 = vmatpush1.xpose.msra.mxu0 0.0
    %1268 = vmatprep.subr.mxu0 0.0
    %1269 = vmatpush1.xpose.msra.mxu0 0.0
    %1270 = vmatprep.subr.mxu0 0.0
    %1271 = vmatpush1.xpose.msra.mxu0 0.0
    %1272 = vmatprep.subr.mxu0 0.0
    %1273 = vmatpush1.xpose.msra.mxu0 0.0
    %1274 = vmatprep.subr.mxu0 0.0
    %1275 = vmatpush1.xpose.msra.mxu0 0.0
    %1276 = vmatprep.subr.mxu0 0.0
    %1277 = vmatpush1.xpose.msra.mxu0 0.0
    %1278 = vmatprep.subr.mxu0 0.0
    %1279 = vmatpush1.xpose.msra.mxu0 0.0
    %1280 = vmatprep.subr.mxu0 0.0
    %1281 = vmatpush1.xpose.msra.mxu0 0.0
    %1282 = vmatprep.mubr.f32.mxu0 0.0
    %1283 = vmatmul.mubr.f32.gmra.mrb[0].mxu0 %v1214
    %v1284 = vpop.f32.mrb[0].mxu0
    %v1285 = vadd.f32 %v195, %v1284
    %v1286 = vpop.f32.mrb[0].mxu0
    %1287 = vdwg.mxu0
    %1288 = vrot.lane.b32.xlu0 %v1196, 96
    %v1289 = vpop.permute.xlu0 %1288
    %v1291 = vsel %vm204, %v1208, 0
    %v1293 = vsel %vm204, %v1289, 0
    %1295 = vmatprep.subr.mxu0 0.0
    %1296 = vmatpush1.xpose.msra.mxu0 %v1293
    %1297 = vmatprep.subr.mxu0 0.0
    %1298 = vmatpush1.xpose.msra.mxu0 0.0
    %1299 = vmatprep.subr.mxu0 0.0
    %1300 = vmatpush1.xpose.msra.mxu0 0.0
    %1301 = vmatprep.subr.mxu0 0.0
    %1302 = vmatpush1.xpose.msra.mxu0 0.0
    %1303 = vmatprep.subr.mxu0 0.0
    %1304 = vmatpush1.xpose.msra.mxu0 0.0
    %1305 = vmatprep.subr.mxu0 0.0
    %1306 = vmatpush1.xpose.msra.mxu0 0.0
    %1307 = vmatprep.subr.mxu0 0.0
    %1308 = vmatpush1.xpose.msra.mxu0 0.0
    %1309 = vmatprep.subr.mxu0 0.0
    %1310 = vmatpush1.xpose.msra.mxu0 0.0
    %1311 = vmatprep.subr.mxu0 0.0
    %1312 = vmatpush1.xpose.msra.mxu0 0.0
    %1313 = vmatprep.subr.mxu0 0.0
    %1314 = vmatpush1.xpose.msra.mxu0 0.0
    %1315 = vmatprep.subr.mxu0 0.0
    %1316 = vmatpush1.xpose.msra.mxu0 0.0
    %1317 = vmatprep.subr.mxu0 0.0
    %1318 = vmatpush1.xpose.msra.mxu0 0.0
    %1319 = vmatprep.subr.mxu0 0.0
    %1320 = vmatpush1.xpose.msra.mxu0 0.0
    %1321 = vmatprep.subr.mxu0 0.0
    %1322 = vmatpush1.xpose.msra.mxu0 0.0
    %1323 = vmatprep.subr.mxu0 0.0
    %1324 = vmatpush1.xpose.msra.mxu0 0.0
    %1325 = vmatprep.subr.mxu0 0.0
    %1326 = vmatpush1.xpose.msra.mxu0 0.0
    %1327 = vmatprep.subr.mxu0 0.0
    %1328 = vmatpush1.xpose.msra.mxu0 0.0
    %1329 = vmatprep.subr.mxu0 0.0
    %1330 = vmatpush1.xpose.msra.mxu0 0.0
    %1331 = vmatprep.subr.mxu0 0.0
    %1332 = vmatpush1.xpose.msra.mxu0 0.0
    %1333 = vmatprep.subr.mxu0 0.0
    %1334 = vmatpush1.xpose.msra.mxu0 0.0
    %1335 = vmatprep.subr.mxu0 0.0
    %1336 = vmatpush1.xpose.msra.mxu0 0.0
    %1337 = vmatprep.subr.mxu0 0.0
    %1338 = vmatpush1.xpose.msra.mxu0 0.0
    %1339 = vmatprep.subr.mxu0 0.0
    %1340 = vmatpush1.xpose.msra.mxu0 0.0
    %1341 = vmatprep.subr.mxu0 0.0
    %1342 = vmatpush1.xpose.msra.mxu0 0.0
    %1343 = vmatprep.subr.mxu0 0.0
    %1344 = vmatpush1.xpose.msra.mxu0 0.0
    %1345 = vmatprep.subr.mxu0 0.0
    %1346 = vmatpush1.xpose.msra.mxu0 0.0
    %1347 = vmatprep.subr.mxu0 0.0
    %1348 = vmatpush1.xpose.msra.mxu0 0.0
    %1349 = vmatprep.subr.mxu0 0.0
    %1350 = vmatpush1.xpose.msra.mxu0 0.0
    %1351 = vmatprep.subr.mxu0 0.0
    %1352 = vmatpush1.xpose.msra.mxu0 0.0
    %1353 = vmatprep.subr.mxu0 0.0
    %1354 = vmatpush1.xpose.msra.mxu0 0.0
    %1355 = vmatprep.subr.mxu0 0.0
    %1356 = vmatpush1.xpose.msra.mxu0 0.0
    %1357 = vmatprep.subr.mxu0 0.0
    %1358 = vmatpush1.xpose.msra.mxu0 0.0
    %1359 = vmatprep.mubr.f32.mxu0 0.0
    %1360 = vmatmul.mubr.f32.gmra.mrb[0].mxu0 %v1291
    %v1361 = vpop.f32.mrb[0].mxu0
    %v1362 = vadd.f32 %v199, %v1361
    %v1363 = vpop.f32.mrb[0].mxu0
    %1364 = vdwg.mxu0
    %1365 = vrot.lane.b32.xlu0 %v1202, 96
    %v1366 = vpop.permute.xlu0 %1365
    %v1368 = vsel %vm204, %v1209, 0
    %v1370 = vsel %vm204, %v1366, 0
    %1372 = vmatprep.subr.mxu0 0.0
    %1373 = vmatpush1.xpose.msra.mxu0 %v1370
    %1374 = vmatprep.subr.mxu0 0.0
    %1375 = vmatpush1.xpose.msra.mxu0 0.0
    %1376 = vmatprep.subr.mxu0 0.0
    %1377 = vmatpush1.xpose.msra.mxu0 0.0
    %1378 = vmatprep.subr.mxu0 0.0
    %1379 = vmatpush1.xpose.msra.mxu0 0.0
    %1380 = vmatprep.subr.mxu0 0.0
    %1381 = vmatpush1.xpose.msra.mxu0 0.0
    %1382 = vmatprep.subr.mxu0 0.0
    %1383 = vmatpush1.xpose.msra.mxu0 0.0
    %1384 = vmatprep.subr.mxu0 0.0
    %1385 = vmatpush1.xpose.msra.mxu0 0.0
    %1386 = vmatprep.subr.mxu0 0.0
    %1387 = vmatpush1.xpose.msra.mxu0 0.0
    %1388 = vmatprep.subr.mxu0 0.0
    %1389 = vmatpush1.xpose.msra.mxu0 0.0
    %1390 = vmatprep.subr.mxu0 0.0
    %1391 = vmatpush1.xpose.msra.mxu0 0.0
    %1392 = vmatprep.subr.mxu0 0.0
    %1393 = vmatpush1.xpose.msra.mxu0 0.0
    %1394 = vmatprep.subr.mxu0 0.0
    %1395 = vmatpush1.xpose.msra.mxu0 0.0
    %1396 = vmatprep.subr.mxu0 0.0
    %1397 = vmatpush1.xpose.msra.mxu0 0.0
    %1398 = vmatprep.subr.mxu0 0.0
    %1399 = vmatpush1.xpose.msra.mxu0 0.0
    %1400 = vmatprep.subr.mxu0 0.0
    %1401 = vmatpush1.xpose.msra.mxu0 0.0
    %1402 = vmatprep.subr.mxu0 0.0
    %1403 = vmatpush1.xpose.msra.mxu0 0.0
    %1404 = vmatprep.subr.mxu0 0.0
    %1405 = vmatpush1.xpose.msra.mxu0 0.0
    %1406 = vmatprep.subr.mxu0 0.0
    %1407 = vmatpush1.xpose.msra.mxu0 0.0
    %1408 = vmatprep.subr.mxu0 0.0
    %1409 = vmatpush1.xpose.msra.mxu0 0.0
    %1410 = vmatprep.subr.mxu0 0.0
    %1411 = vmatpush1.xpose.msra.mxu0 0.0
    %1412 = vmatprep.subr.mxu0 0.0
    %1413 = vmatpush1.xpose.msra.mxu0 0.0
    %1414 = vmatprep.subr.mxu0 0.0
    %1415 = vmatpush1.xpose.msra.mxu0 0.0
    %1416 = vmatprep.subr.mxu0 0.0
    %1417 = vmatpush1.xpose.msra.mxu0 0.0
    %1418 = vmatprep.subr.mxu0 0.0
    %1419 = vmatpush1.xpose.msra.mxu0 0.0
    %1420 = vmatprep.subr.mxu0 0.0
    %1421 = vmatpush1.xpose.msra.mxu0 0.0
    %1422 = vmatprep.subr.mxu0 0.0
    %1423 = vmatpush1.xpose.msra.mxu0 0.0
    %1424 = vmatprep.subr.mxu0 0.0
    %1425 = vmatpush1.xpose.msra.mxu0 0.0
    %1426 = vmatprep.subr.mxu0 0.0
    %1427 = vmatpush1.xpose.msra.mxu0 0.0
    %1428 = vmatprep.subr.mxu0 0.0
    %1429 = vmatpush1.xpose.msra.mxu0 0.0
    %1430 = vmatprep.subr.mxu0 0.0
    %1431 = vmatpush1.xpose.msra.mxu0 0.0
    %1432 = vmatprep.subr.mxu0 0.0
    %1433 = vmatpush1.xpose.msra.mxu0 0.0
    %1434 = vmatprep.subr.mxu0 0.0
    %1435 = vmatpush1.xpose.msra.mxu0 0.0
    %1436 = vmatprep.mubr.f32.mxu0 0.0
    %1437 = vmatmul.mubr.f32.gmra.mrb[0].mxu0 %v1368
    %v1438 = vpop.f32.mrb[0].mxu0
    %v1439 = vadd.f32 %v195, %v1438
    %v1440 = vpop.f32.mrb[0].mxu0
    %1441 = vdwg.mxu0
    %1442 = vrot.lane.b32.xlu0 %v1204, 96
    %v1443 = vpop.permute.xlu0 %1442
    %v1445 = vsel %vm204, %v1210, 0
    %v1447 = vsel %vm204, %v1443, 0
    %1449 = vmatprep.subr.mxu0 0.0
    %1450 = vmatpush1.xpose.msra.mxu0 %v1447
    %1451 = vmatprep.subr.mxu0 0.0
    %1452 = vmatpush1.xpose.msra.mxu0 0.0
    %1453 = vmatprep.subr.mxu0 0.0
    %1454 = vmatpush1.xpose.msra.mxu0 0.0
    %1455 = vmatprep.subr.mxu0 0.0
    %1456 = vmatpush1.xpose.msra.mxu0 0.0
    %1457 = vmatprep.subr.mxu0 0.0
    %1458 = vmatpush1.xpose.msra.mxu0 0.0
    %1459 = vmatprep.subr.mxu0 0.0
    %1460 = vmatpush1.xpose.msra.mxu0 0.0
    %1461 = vmatprep.subr.mxu0 0.0
    %1462 = vmatpush1.xpose.msra.mxu0 0.0
    %1463 = vmatprep.subr.mxu0 0.0
    %1464 = vmatpush1.xpose.msra.mxu0 0.0
    %1465 = vmatprep.subr.mxu0 0.0
    %1466 = vmatpush1.xpose.msra.mxu0 0.0
    %1467 = vmatprep.subr.mxu0 0.0
    %1468 = vmatpush1.xpose.msra.mxu0 0.0
    %1469 = vmatprep.subr.mxu0 0.0
    %1470 = vmatpush1.xpose.msra.mxu0 0.0
    %1471 = vmatprep.subr.mxu0 0.0
    %1472 = vmatpush1.xpose.msra.mxu0 0.0
    %1473 = vmatprep.subr.mxu0 0.0
    %1474 = vmatpush1.xpose.msra.mxu0 0.0
    %1475 = vmatprep.subr.mxu0 0.0
    %1476 = vmatpush1.xpose.msra.mxu0 0.0
    %1477 = vmatprep.subr.mxu0 0.0
    %1478 = vmatpush1.xpose.msra.mxu0 0.0
    %1479 = vmatprep.subr.mxu0 0.0
    %1480 = vmatpush1.xpose.msra.mxu0 0.0
    %1481 = vmatprep.subr.mxu0 0.0
    %1482 = vmatpush1.xpose.msra.mxu0 0.0
    %1483 = vmatprep.subr.mxu0 0.0
    %1484 = vmatpush1.xpose.msra.mxu0 0.0
    %1485 = vmatprep.subr.mxu0 0.0
    %1486 = vmatpush1.xpose.msra.mxu0 0.0
    %1487 = vmatprep.subr.mxu0 0.0
    %1488 = vmatpush1.xpose.msra.mxu0 0.0
    %1489 = vmatprep.subr.mxu0 0.0
    %1490 = vmatpush1.xpose.msra.mxu0 0.0
    %1491 = vmatprep.subr.mxu0 0.0
    %1492 = vmatpush1.xpose.msra.mxu0 0.0
    %1493 = vmatprep.subr.mxu0 0.0
    %1494 = vmatpush1.xpose.msra.mxu0 0.0
    %1495 = vmatprep.subr.mxu0 0.0
    %1496 = vmatpush1.xpose.msra.mxu0 0.0
    %1497 = vmatprep.subr.mxu0 0.0
    %1498 = vmatpush1.xpose.msra.mxu0 0.0
    %1499 = vmatprep.subr.mxu0 0.0
    %1500 = vmatpush1.xpose.msra.mxu0 0.0
    %1501 = vmatprep.subr.mxu0 0.0
    %1502 = vmatpush1.xpose.msra.mxu0 0.0
    %1503 = vmatprep.subr.mxu0 0.0
    %1504 = vmatpush1.xpose.msra.mxu0 0.0
    %1505 = vmatprep.subr.mxu0 0.0
    %1506 = vmatpush1.xpose.msra.mxu0 0.0
    %1507 = vmatprep.subr.mxu0 0.0
    %1508 = vmatpush1.xpose.msra.mxu0 0.0
    %1509 = vmatprep.subr.mxu0 0.0
    %1510 = vmatpush1.xpose.msra.mxu0 0.0
    %1511 = vmatprep.subr.mxu0 0.0
    %1512 = vmatpush1.xpose.msra.mxu0 0.0
    %1513 = vmatprep.mubr.f32.mxu0 0.0
    %1514 = vmatmul.mubr.f32.gmra.mrb[0].mxu0 %v1445
    %v1515 = vpop.f32.mrb[0].mxu0
    %v1516 = vadd.f32 %v199, %v1515
    %v1517 = vpop.f32.mrb[0].mxu0
    %1518 = vdwg.mxu0
    %v1519 = vsel %vm511, %v1285, -inf
    %1520 = vmax.xlane.f32.xlu0 %v1519
    %v1521 = vpop.xlane.xlu0 %1520
    %v1522 = vsel %vm511, %v1362, -inf
    %1523 = vmax.xlane.f32.xlu0 %v1522
    %v1524 = vpop.xlane.xlu0 %1523
    %v1525 = vsel %vm511, %v1439, -inf
    %1526 = vmax.xlane.f32.xlu0 %v1525
    %v1527 = vpop.xlane.xlu0 %1526
    %v1528 = vsel %vm511, %v1516, -inf
    %1529 = vmax.xlane.f32.xlu0 %v1528
    %v1530 = vpop.xlane.xlu0 %1529
    %v1531 = vsub.f32 %v1285, %v1521
    %v1532 = vsub.f32 %v1362, %v1524
    %v1533 = vsub.f32 %v1439, %v1527
    %v1534 = vsub.f32 %v1516, %v1530
    %v1535 = vmul.f32 %v1531, 1.442695
    %v1536 = vpow.pop %v1535
    %v1537 = vmul.f32 %v1532, 1.442695
    %v1538 = vpow.pop %v1537
    %v1539 = vmul.f32 %v1533, 1.442695
    %v1540 = vpow.pop %v1539
    %v1541 = vmul.f32 %v1534, 1.442695
    %v1542 = vpow.pop %v1541
    %v1543 = vsel %vm511, %v1536, 0.0
    %1544 = vadd.xlane.f32.xlu0 %v1543
    %v1545 = vpop.xlane.xlu0 %1544
    %v1546 = vsel %vm511, %v1538, 0.0
    %1547 = vadd.xlane.f32.xlu0 %v1546
    %v1548 = vpop.xlane.xlu0 %1547
    %v1549 = vsel %vm511, %v1540, 0.0
    %1550 = vadd.xlane.f32.xlu0 %v1549
    %v1551 = vpop.xlane.xlu0 %1550
    %v1552 = vsel %vm511, %v1542, 0.0
    %1553 = vadd.xlane.f32.xlu0 %v1552
    %v1554 = vpop.xlane.xlu0 %1553
    %v1555 = vrcp.pop %v1545
    %v1556 = vrcp.pop %v1548
    %v1557 = vrcp.pop %v1551
    %v1558 = vrcp.pop %v1554
    %v1559 = vmul.f32 %v1536, %v1555
    %v1560 = vmul.f32 %v1538, %v1556
    %v1561 = vmul.f32 %v1540, %v1557
    %v1562 = vmul.f32 %v1542, %v1558
    %1563 = vrot.lane.b32.xlu0 %v1191, 64
    %v1564 = vpop.permute.xlu0 %1563
    %v1567 = vsel %vm511, %v1559, 0
    %1569 = vmatprep.subr.mxu0 0.0
    %1570 = vmatpush1.msra.mxu0 %v1564
    %1571 = vmatprep.subr.mxu0 0.0
    %1572 = vmatpush1.msra.mxu0 0.0
    %1573 = vmatprep.subr.mxu0 0.0
    %1574 = vmatpush1.msra.mxu0 0.0
    %1575 = vmatprep.subr.mxu0 0.0
    %1576 = vmatpush1.msra.mxu0 0.0
    %1577 = vmatprep.subr.mxu0 0.0
    %1578 = vmatpush1.msra.mxu0 0.0
    %1579 = vmatprep.subr.mxu0 0.0
    %1580 = vmatpush1.msra.mxu0 0.0
    %1581 = vmatprep.subr.mxu0 0.0
    %1582 = vmatpush1.msra.mxu0 0.0
    %1583 = vmatprep.subr.mxu0 0.0
    %1584 = vmatpush1.msra.mxu0 0.0
    %1585 = vmatprep.subr.mxu0 0.0
    %1586 = vmatpush1.msra.mxu0 0.0
    %1587 = vmatprep.subr.mxu0 0.0
    %1588 = vmatpush1.msra.mxu0 0.0
    %1589 = vmatprep.subr.mxu0 0.0
    %1590 = vmatpush1.msra.mxu0 0.0
    %1591 = vmatprep.subr.mxu0 0.0
    %1592 = vmatpush1.msra.mxu0 0.0
    %1593 = vmatprep.subr.mxu0 0.0
    %1594 = vmatpush1.msra.mxu0 0.0
    %1595 = vmatprep.subr.mxu0 0.0
    %1596 = vmatpush1.msra.mxu0 0.0
    %1597 = vmatprep.subr.mxu0 0.0
    %1598 = vmatpush1.msra.mxu0 0.0
    %1599 = vmatprep.subr.mxu0 0.0
    %1600 = vmatpush1.msra.mxu0 0.0
    %1601 = vmatprep.subr.mxu0 0.0
    %1602 = vmatpush1.msra.mxu0 0.0
    %1603 = vmatprep.subr.mxu0 0.0
    %1604 = vmatpush1.msra.mxu0 0.0
    %1605 = vmatprep.subr.mxu0 0.0
    %1606 = vmatpush1.msra.mxu0 0.0
    %1607 = vmatprep.subr.mxu0 0.0
    %1608 = vmatpush1.msra.mxu0 0.0
    %1609 = vmatprep.subr.mxu0 0.0
    %1610 = vmatpush1.msra.mxu0 0.0
    %1611 = vmatprep.subr.mxu0 0.0
    %1612 = vmatpush1.msra.mxu0 0.0
    %1613 = vmatprep.subr.mxu0 0.0
    %1614 = vmatpush1.msra.mxu0 0.0
    %1615 = vmatprep.subr.mxu0 0.0
    %1616 = vmatpush1.msra.mxu0 0.0
    %1617 = vmatprep.subr.mxu0 0.0
    %1618 = vmatpush1.msra.mxu0 0.0
    %1619 = vmatprep.subr.mxu0 0.0
    %1620 = vmatpush1.msra.mxu0 0.0
    %1621 = vmatprep.subr.mxu0 0.0
    %1622 = vmatpush1.msra.mxu0 0.0
    %1623 = vmatprep.subr.mxu0 0.0
    %1624 = vmatpush1.msra.mxu0 0.0
    %1625 = vmatprep.subr.mxu0 0.0
    %1626 = vmatpush1.msra.mxu0 0.0
    %1627 = vmatprep.subr.mxu0 0.0
    %1628 = vmatpush1.msra.mxu0 0.0
    %1629 = vmatprep.subr.mxu0 0.0
    %1630 = vmatpush1.msra.mxu0 0.0
    %1631 = vmatprep.subr.mxu0 0.0
    %1632 = vmatpush1.msra.mxu0 0.0
    %1633 = vmatprep.mubr.f32.mxu0 0.0
    %1634 = vmatmul.mubr.f32.gmra.mrb[0].mxu0 %v1567
    %v1635 = vpop.f32.mrb[0].mxu0
    %v1636 = vadd.f32 0.0, %v1635
    %v1637 = vpop.f32.mrb[0].mxu0
    %1638 = vdwg.mxu0
    %1639 = vrot.lane.b32.xlu0 %v1196, 64
    %v1640 = vpop.permute.xlu0 %1639
    %v1643 = vsel %vm511, %v1560, 0
    %1645 = vmatprep.subr.mxu0 0.0
    %1646 = vmatpush1.msra.mxu0 %v1640
    %1647 = vmatprep.subr.mxu0 0.0
    %1648 = vmatpush1.msra.mxu0 0.0
    %1649 = vmatprep.subr.mxu0 0.0
    %1650 = vmatpush1.msra.mxu0 0.0
    %1651 = vmatprep.subr.mxu0 0.0
    %1652 = vmatpush1.msra.mxu0 0.0
    %1653 = vmatprep.subr.mxu0 0.0
    %1654 = vmatpush1.msra.mxu0 0.0
    %1655 = vmatprep.subr.mxu0 0.0
    %1656 = vmatpush1.msra.mxu0 0.0
    %1657 = vmatprep.subr.mxu0 0.0
    %1658 = vmatpush1.msra.mxu0 0.0
    %1659 = vmatprep.subr.mxu0 0.0
    %1660 = vmatpush1.msra.mxu0 0.0
    %1661 = vmatprep.subr.mxu0 0.0
    %1662 = vmatpush1.msra.mxu0 0.0
    %1663 = vmatprep.subr.mxu0 0.0
    %1664 = vmatpush1.msra.mxu0 0.0
    %1665 = vmatprep.subr.mxu0 0.0
    %1666 = vmatpush1.msra.mxu0 0.0
    %1667 = vmatprep.subr.mxu0 0.0
    %1668 = vmatpush1.msra.mxu0 0.0
    %1669 = vmatprep.subr.mxu0 0.0
    %1670 = vmatpush1.msra.mxu0 0.0
    %1671 = vmatprep.subr.mxu0 0.0
    %1672 = vmatpush1.msra.mxu0 0.0
    %1673 = vmatprep.subr.mxu0 0.0
    %1674 = vmatpush1.msra.mxu0 0.0
    %1675 = vmatprep.subr.mxu0 0.0
    %1676 = vmatpush1.msra.mxu0 0.0
    %1677 = vmatprep.subr.mxu0 0.0
    %1678 = vmatpush1.msra.mxu0 0.0
    %1679 = vmatprep.subr.mxu0 0.0
    %1680 = vmatpush1.msra.mxu0 0.0
    %1681 = vmatprep.subr.mxu0 0.0
    %1682 = vmatpush1.msra.mxu0 0.0
    %1683 = vmatprep.subr.mxu0 0.0
    %1684 = vmatpush1.msra.mxu0 0.0
    %1685 = vmatprep.subr.mxu0 0.0
    %1686 = vmatpush1.msra.mxu0 0.0
    %1687 = vmatprep.subr.mxu0 0.0
    %1688 = vmatpush1.msra.mxu0 0.0
    %1689 = vmatprep.subr.mxu0 0.0
    %1690 = vmatpush1.msra.mxu0 0.0
    %1691 = vmatprep.subr.mxu0 0.0
    %1692 = vmatpush1.msra.mxu0 0.0
    %1693 = vmatprep.subr.mxu0 0.0
    %1694 = vmatpush1.msra.mxu0 0.0
    %1695 = vmatprep.subr.mxu0 0.0
    %1696 = vmatpush1.msra.mxu0 0.0
    %1697 = vmatprep.subr.mxu0 0.0
    %1698 = vmatpush1.msra.mxu0 0.0
    %1699 = vmatprep.subr.mxu0 0.0
    %1700 = vmatpush1.msra.mxu0 0.0
    %1701 = vmatprep.subr.mxu0 0.0
    %1702 = vmatpush1.msra.mxu0 0.0
    %1703 = vmatprep.subr.mxu0 0.0
    %1704 = vmatpush1.msra.mxu0 0.0
    %1705 = vmatprep.subr.mxu0 0.0
    %1706 = vmatpush1.msra.mxu0 0.0
    %1707 = vmatprep.subr.mxu0 0.0
    %1708 = vmatpush1.msra.mxu0 0.0
    %1709 = vmatprep.mubr.f32.mxu0 0.0
    %1710 = vmatmul.mubr.f32.gmra.mrb[0].mxu0 %v1643
    %v1711 = vpop.f32.mrb[0].mxu0
    %v1712 = vadd.f32 0.0, %v1711
    %v1713 = vpop.f32.mrb[0].mxu0
    %1714 = vdwg.mxu0
    %1715 = vrot.lane.b32.xlu0 %v1202, 64
    %v1716 = vpop.permute.xlu0 %1715
    %v1719 = vsel %vm511, %v1561, 0
    %1721 = vmatprep.subr.mxu0 0.0
    %1722 = vmatpush1.msra.mxu0 %v1716
    %1723 = vmatprep.subr.mxu0 0.0
    %1724 = vmatpush1.msra.mxu0 0.0
    %1725 = vmatprep.subr.mxu0 0.0
    %1726 = vmatpush1.msra.mxu0 0.0
    %1727 = vmatprep.subr.mxu0 0.0
    %1728 = vmatpush1.msra.mxu0 0.0
    %1729 = vmatprep.subr.mxu0 0.0
    %1730 = vmatpush1.msra.mxu0 0.0
    %1731 = vmatprep.subr.mxu0 0.0
    %1732 = vmatpush1.msra.mxu0 0.0
    %1733 = vmatprep.subr.mxu0 0.0
    %1734 = vmatpush1.msra.mxu0 0.0
    %1735 = vmatprep.subr.mxu0 0.0
    %1736 = vmatpush1.msra.mxu0 0.0
    %1737 = vmatprep.subr.mxu0 0.0
    %1738 = vmatpush1.msra.mxu0 0.0
    %1739 = vmatprep.subr.mxu0 0.0
    %1740 = vmatpush1.msra.mxu0 0.0
    %1741 = vmatprep.subr.mxu0 0.0
    %1742 = vmatpush1.msra.mxu0 0.0
    %1743 = vmatprep.subr.mxu0 0.0
    %1744 = vmatpush1.msra.mxu0 0.0
    %1745 = vmatprep.subr.mxu0 0.0
    %1746 = vmatpush1.msra.mxu0 0.0
    %1747 = vmatprep.subr.mxu0 0.0
    %1748 = vmatpush1.msra.mxu0 0.0
    %1749 = vmatprep.subr.mxu0 0.0
    %1750 = vmatpush1.msra.mxu0 0.0
    %1751 = vmatprep.subr.mxu0 0.0
    %1752 = vmatpush1.msra.mxu0 0.0
    %1753 = vmatprep.subr.mxu0 0.0
    %1754 = vmatpush1.msra.mxu0 0.0
    %1755 = vmatprep.subr.mxu0 0.0
    %1756 = vmatpush1.msra.mxu0 0.0
    %1757 = vmatprep.subr.mxu0 0.0
    %1758 = vmatpush1.msra.mxu0 0.0
    %1759 = vmatprep.subr.mxu0 0.0
    %1760 = vmatpush1.msra.mxu0 0.0
    %1761 = vmatprep.subr.mxu0 0.0
    %1762 = vmatpush1.msra.mxu0 0.0
    %1763 = vmatprep.subr.mxu0 0.0
    %1764 = vmatpush1.msra.mxu0 0.0
    %1765 = vmatprep.subr.mxu0 0.0
    %1766 = vmatpush1.msra.mxu0 0.0
    %1767 = vmatprep.subr.mxu0 0.0
    %1768 = vmatpush1.msra.mxu0 0.0
    %1769 = vmatprep.subr.mxu0 0.0
    %1770 = vmatpush1.msra.mxu0 0.0
    %1771 = vmatprep.subr.mxu0 0.0
    %1772 = vmatpush1.msra.mxu0 0.0
    %1773 = vmatprep.subr.mxu0 0.0
    %1774 = vmatpush1.msra.mxu0 0.0
    %1775 = vmatprep.subr.mxu0 0.0
    %1776 = vmatpush1.msra.mxu0 0.0
    %1777 = vmatprep.subr.mxu0 0.0
    %1778 = vmatpush1.msra.mxu0 0.0
    %1779 = vmatprep.subr.mxu0 0.0
    %1780 = vmatpush1.msra.mxu0 0.0
    %1781 = vmatprep.subr.mxu0 0.0
    %1782 = vmatpush1.msra.mxu0 0.0
    %1783 = vmatprep.subr.mxu0 0.0
    %1784 = vmatpush1.msra.mxu0 0.0
    %1785 = vmatprep.mubr.f32.mxu0 0.0
    %1786 = vmatmul.mubr.f32.gmra.mrb[0].mxu0 %v1719
    %v1787 = vpop.f32.mrb[0].mxu0
    %v1788 = vadd.f32 0.0, %v1787
    %v1789 = vpop.f32.mrb[0].mxu0
    %1790 = vdwg.mxu0
    %1791 = vrot.lane.b32.xlu0 %v1204, 64
    %v1792 = vpop.permute.xlu0 %1791
    %v1795 = vsel %vm511, %v1562, 0
    %1797 = vmatprep.subr.mxu0 0.0
    %1798 = vmatpush1.msra.mxu0 %v1792
    %1799 = vmatprep.subr.mxu0 0.0
    %1800 = vmatpush1.msra.mxu0 0.0
    %1801 = vmatprep.subr.mxu0 0.0
    %1802 = vmatpush1.msra.mxu0 0.0
    %1803 = vmatprep.subr.mxu0 0.0
    %1804 = vmatpush1.msra.mxu0 0.0
    %1805 = vmatprep.subr.mxu0 0.0
    %1806 = vmatpush1.msra.mxu0 0.0
    %1807 = vmatprep.subr.mxu0 0.0
    %1808 = vmatpush1.msra.mxu0 0.0
    %1809 = vmatprep.subr.mxu0 0.0
    %1810 = vmatpush1.msra.mxu0 0.0
    %1811 = vmatprep.subr.mxu0 0.0
    %1812 = vmatpush1.msra.mxu0 0.0
    %1813 = vmatprep.subr.mxu0 0.0
    %1814 = vmatpush1.msra.mxu0 0.0
    %1815 = vmatprep.subr.mxu0 0.0
    %1816 = vmatpush1.msra.mxu0 0.0
    %1817 = vmatprep.subr.mxu0 0.0
    %1818 = vmatpush1.msra.mxu0 0.0
    %1819 = vmatprep.subr.mxu0 0.0
    %1820 = vmatpush1.msra.mxu0 0.0
    %1821 = vmatprep.subr.mxu0 0.0
    %1822 = vmatpush1.msra.mxu0 0.0
    %1823 = vmatprep.subr.mxu0 0.0
    %1824 = vmatpush1.msra.mxu0 0.0
    %1825 = vmatprep.subr.mxu0 0.0
    %1826 = vmatpush1.msra.mxu0 0.0
    %1827 = vmatprep.subr.mxu0 0.0
    %1828 = vmatpush1.msra.mxu0 0.0
    %1829 = vmatprep.subr.mxu0 0.0
    %1830 = vmatpush1.msra.mxu0 0.0
    %1831 = vmatprep.subr.mxu0 0.0
    %1832 = vmatpush1.msra.mxu0 0.0
    %1833 = vmatprep.subr.mxu0 0.0
    %1834 = vmatpush1.msra.mxu0 0.0
    %1835 = vmatprep.subr.mxu0 0.0
    %1836 = vmatpush1.msra.mxu0 0.0
    %1837 = vmatprep.subr.mxu0 0.0
    %1838 = vmatpush1.msra.mxu0 0.0
    %1839 = vmatprep.subr.mxu0 0.0
    %1840 = vmatpush1.msra.mxu0 0.0
    %1841 = vmatprep.subr.mxu0 0.0
    %1842 = vmatpush1.msra.mxu0 0.0
    %1843 = vmatprep.subr.mxu0 0.0
    %1844 = vmatpush1.msra.mxu0 0.0
    %1845 = vmatprep.subr.mxu0 0.0
    %1846 = vmatpush1.msra.mxu0 0.0
    %1847 = vmatprep.subr.mxu0 0.0
    %1848 = vmatpush1.msra.mxu0 0.0
    %1849 = vmatprep.subr.mxu0 0.0
    %1850 = vmatpush1.msra.mxu0 0.0
    %1851 = vmatprep.subr.mxu0 0.0
    %1852 = vmatpush1.msra.mxu0 0.0
    %1853 = vmatprep.subr.mxu0 0.0
    %1854 = vmatpush1.msra.mxu0 0.0
    %1855 = vmatprep.subr.mxu0 0.0
    %1856 = vmatpush1.msra.mxu0 0.0
    %1857 = vmatprep.subr.mxu0 0.0
    %1858 = vmatpush1.msra.mxu0 0.0
    %1859 = vmatprep.subr.mxu0 0.0
    %1860 = vmatpush1.msra.mxu0 0.0
    %1861 = vmatprep.mubr.f32.mxu0 0.0
    %1862 = vmatmul.mubr.f32.gmra.mrb[0].mxu0 %v1795
    %v1863 = vpop.f32.mrb[0].mxu0
    %v1864 = vadd.f32 0.0, %v1863
    %v1865 = vpop.f32.mrb[0].mxu0
    %1866 = vdwg.mxu0
    %1869 = vrot.lane.b32.xlu0 %v1788, 16
    %v1870 = vpop.permute.xlu0 %1869
    %1871 = vrot.lane.b32.xlu0 %v1864, 16
    %v1872 = vpop.permute.xlu0 %1871
    %v1875 = vsel %vm204, %v1636, %v1870
    %v1876 = vsel %vm204, %v1712, %v1872
    %v1877 = vadd.f32 %v1103, %v1875
    %v1878 = vadd.f32 %v1104, %v1876
    %s1879 = scalar_lea.vmem %s4, 32
    %v1880 = vld [vmem:[%s1879] sm:$0xff]
    %v1881 = vld [vmem:[%s1879 + $0x8] sm:$0xff]
    %v1882 = vld [vmem:[%s1879 + $0x10] sm:$0xff]
    %v1883 = vld [vmem:[%s1879 + $0x18] sm:$0xff]
    %s1884 = scalar_lea.vmem %s5, 1
    %v1885 = vld [vmem:[%s1884] sm:$0x1]
    %v1887 = vlaneseq
    %v1888 = vshrl.u32 %v1887, 7
    %v1889 = vsub.s32 0, %v1888
    %v1890 = vrot.slane %v1885, %v1889
    %v1893 = vsel %vm98, %v1875, 0
    %v1896 = vsel %vm98, %v1876, 0
    %1898 = vmatprep.subr.mxu0 0.0
    %1899 = vmatpush1.msra.mxu0 %v1880
    %1900 = vmatprep.subr.mxu0 0.0
    %1901 = vmatpush1.msra.mxu0 %v1881
    %1902 = vmatprep.subr.mxu0 0.0
    %1903 = vmatpush1.msra.mxu0 %v1882
    %1904 = vmatprep.subr.mxu0 0.0
    %1905 = vmatpush1.msra.mxu0 %v1883
    %1906 = vmatprep.subr.mxu0 0.0
    %1907 = vmatpush1.msra.mxu0 0.0
    %1908 = vmatprep.subr.mxu0 0.0
    %1909 = vmatpush1.msra.mxu0 0.0
    %1910 = vmatprep.subr.mxu0 0.0
    %1911 = vmatpush1.msra.mxu0 0.0
    %1912 = vmatprep.subr.mxu0 0.0
    %1913 = vmatpush1.msra.mxu0 0.0
    %1914 = vmatprep.subr.mxu0 0.0
    %1915 = vmatpush1.msra.mxu0 0.0
    %1916 = vmatprep.subr.mxu0 0.0
    %1917 = vmatpush1.msra.mxu0 0.0
    %1918 = vmatprep.subr.mxu0 0.0
    %1919 = vmatpush1.msra.mxu0 0.0
    %1920 = vmatprep.subr.mxu0 0.0
    %1921 = vmatpush1.msra.mxu0 0.0
    %1922 = vmatprep.subr.mxu0 0.0
    %1923 = vmatpush1.msra.mxu0 0.0
    %1924 = vmatprep.subr.mxu0 0.0
    %1925 = vmatpush1.msra.mxu0 0.0
    %1926 = vmatprep.subr.mxu0 0.0
    %1927 = vmatpush1.msra.mxu0 0.0
    %1928 = vmatprep.subr.mxu0 0.0
    %1929 = vmatpush1.msra.mxu0 0.0
    %1930 = vmatprep.subr.mxu0 0.0
    %1931 = vmatpush1.msra.mxu0 0.0
    %1932 = vmatprep.subr.mxu0 0.0
    %1933 = vmatpush1.msra.mxu0 0.0
    %1934 = vmatprep.subr.mxu0 0.0
    %1935 = vmatpush1.msra.mxu0 0.0
    %1936 = vmatprep.subr.mxu0 0.0
    %1937 = vmatpush1.msra.mxu0 0.0
    %1938 = vmatprep.subr.mxu0 0.0
    %1939 = vmatpush1.msra.mxu0 0.0
    %1940 = vmatprep.subr.mxu0 0.0
    %1941 = vmatpush1.msra.mxu0 0.0
    %1942 = vmatprep.subr.mxu0 0.0
    %1943 = vmatpush1.msra.mxu0 0.0
    %1944 = vmatprep.subr.mxu0 0.0
    %1945 = vmatpush1.msra.mxu0 0.0
    %1946 = vmatprep.subr.mxu0 0.0
    %1947 = vmatpush1.msra.mxu0 0.0
    %1948 = vmatprep.subr.mxu0 0.0
    %1949 = vmatpush1.msra.mxu0 0.0
    %1950 = vmatprep.subr.mxu0 0.0
    %1951 = vmatpush1.msra.mxu0 0.0
    %1952 = vmatprep.subr.mxu0 0.0
    %1953 = vmatpush1.msra.mxu0 0.0
    %1954 = vmatprep.subr.mxu0 0.0
    %1955 = vmatpush1.msra.mxu0 0.0
    %1956 = vmatprep.subr.mxu0 0.0
    %1957 = vmatpush1.msra.mxu0 0.0
    %1958 = vmatprep.subr.mxu0 0.0
    %1959 = vmatpush1.msra.mxu0 0.0
    %1960 = vmatprep.subr.mxu0 0.0
    %1961 = vmatpush1.msra.mxu0 0.0
    %1962 = vmatprep.mubr.f32.mxu0 0.0
    %1963 = vmatmul.mubr.f32.gmra.mrb[0].mxu0 %v1893
    %v1964 = vpop.f32.mrb[0].mxu0
    %v1965 = vadd.f32 %v1890, %v1964
    %v1966 = vpop.f32.mrb[0].mxu0
    %1967 = vmatprep.mubr.f32.mxu0 0.0
    %1968 = vmatmul.mubr.f32.gmra.mrb[0].mxu0 %v1896
    %v1969 = vpop.f32.mrb[0].mxu0
    %v1970 = vadd.f32 %v1890, %v1969
    %v1971 = vpop.f32.mrb[0].mxu0
    %1972 = vdwg.mxu0
    %v1973 = vmax.f32 %v1965, 0.0
    %v1974 = vmax.f32 %v1970, 0.0
    %s1975 = scalar_lea.vmem %s6, 32
    %v1976 = vld [vmem:[%s1975] sm:$0xff]
    %v1977 = vld [vmem:[%s1975 + $0x8] sm:$0xff]
    %v1978 = vld [vmem:[%s1975 + $0x10] sm:$0xff]
    %v1979 = vld [vmem:[%s1975 + $0x18] sm:$0xff]
    %s1980 = scalar_lea.vmem %s7, 1
    %v1981 = vld [vmem:[%s1980] sm:$0x1]
    %v1983 = vlaneseq
    %v1984 = vshrl.u32 %v1983, 7
    %v1985 = vsub.s32 0, %v1984
    %v1986 = vrot.slane %v1981, %v1985
    %v1989 = vsel %vm98, %v1973, 0
    %v1992 = vsel %vm98, %v1974, 0
    %1994 = vmatprep.subr.mxu0 0.0
    %1995 = vmatpush1.msra.mxu0 %v1976
    %1996 = vmatprep.subr.mxu0 0.0
    %1997 = vmatpush1.msra.mxu0 %v1977
    %1998 = vmatprep.subr.mxu0 0.0
    %1999 = vmatpush1.msra.mxu0 %v1978
    %2000 = vmatprep.subr.mxu0 0.0
    %2001 = vmatpush1.msra.mxu0 %v1979
    %2002 = vmatprep.subr.mxu0 0.0
    %2003 = vmatpush1.msra.mxu0 0.0
    %2004 = vmatprep.subr.mxu0 0.0
    %2005 = vmatpush1.msra.mxu0 0.0
    %2006 = vmatprep.subr.mxu0 0.0
    %2007 = vmatpush1.msra.mxu0 0.0
    %2008 = vmatprep.subr.mxu0 0.0
    %2009 = vmatpush1.msra.mxu0 0.0
    %2010 = vmatprep.subr.mxu0 0.0
    %2011 = vmatpush1.msra.mxu0 0.0
    %2012 = vmatprep.subr.mxu0 0.0
    %2013 = vmatpush1.msra.mxu0 0.0
    %2014 = vmatprep.subr.mxu0 0.0
    %2015 = vmatpush1.msra.mxu0 0.0
    %2016 = vmatprep.subr.mxu0 0.0
    %2017 = vmatpush1.msra.mxu0 0.0
    %2018 = vmatprep.subr.mxu0 0.0
    %2019 = vmatpush1.msra.mxu0 0.0
    %2020 = vmatprep.subr.mxu0 0.0
    %2021 = vmatpush1.msra.mxu0 0.0
    %2022 = vmatprep.subr.mxu0 0.0
    %2023 = vmatpush1.msra.mxu0 0.0
    %2024 = vmatprep.subr.mxu0 0.0
    %2025 = vmatpush1.msra.mxu0 0.0
    %2026 = vmatprep.subr.mxu0 0.0
    %2027 = vmatpush1.msra.mxu0 0.0
    %2028 = vmatprep.subr.mxu0 0.0
    %2029 = vmatpush1.msra.mxu0 0.0
    %2030 = vmatprep.subr.mxu0 0.0
    %2031 = vmatpush1.msra.mxu0 0.0
    %2032 = vmatprep.subr.mxu0 0.0
    %2033 = vmatpush1.msra.mxu0 0.0
    %2034 = vmatprep.subr.mxu0 0.0
    %2035 = vmatpush1.msra.mxu0 0.0
    %2036 = vmatprep.subr.mxu0 0.0
    %2037 = vmatpush1.msra.mxu0 0.0
    %2038 = vmatprep.subr.mxu0 0.0
    %2039 = vmatpush1.msra.mxu0 0.0
    %2040 = vmatprep.subr.mxu0 0.0
    %2041 = vmatpush1.msra.mxu0 0.0
    %2042 = vmatprep.subr.mxu0 0.0
    %2043 = vmatpush1.msra.mxu0 0.0
    %2044 = vmatprep.subr.mxu0 0.0
    %2045 = vmatpush1.msra.mxu0 0.0
    %2046 = vmatprep.subr.mxu0 0.0
    %2047 = vmatpush1.msra.mxu0 0.0
    %2048 = vmatprep.subr.mxu0 0.0
    %2049 = vmatpush1.msra.mxu0 0.0
    %2050 = vmatprep.subr.mxu0 0.0
    %2051 = vmatpush1.msra.mxu0 0.0
    %2052 = vmatprep.subr.mxu0 0.0
    %2053 = vmatpush1.msra.mxu0 0.0
    %2054 = vmatprep.subr.mxu0 0.0
    %2055 = vmatpush1.msra.mxu0 0.0
    %2056 = vmatprep.subr.mxu0 0.0
    %2057 = vmatpush1.msra.mxu0 0.0
    %2058 = vmatprep.mubr.f32.mxu0 0.0
    %2059 = vmatmul.mubr.f32.gmra.mrb[0].mxu0 %v1989
    %v2060 = vpop.f32.mrb[0].mxu0
    %v2061 = vadd.f32 %v1986, %v2060
    %v2062 = vpop.f32.mrb[0].mxu0
    %2063 = vmatprep.mubr.f32.mxu0 0.0
    %2064 = vmatmul.mubr.f32.gmra.mrb[0].mxu0 %v1992
    %v2065 = vpop.f32.mrb[0].mxu0
    %v2066 = vadd.f32 %v1986, %v2065
    %v2067 = vpop.f32.mrb[0].mxu0
    %2068 = vdwg.mxu0
    %v2069 = vadd.f32 %v1877, %v2061
    %v2070 = vadd.f32 %v1878, %v2066
    %v2071 = vsel %vm98, %v2069, 0.0
    %2072 = vadd.xlane.f32.xlu0 %v2071
    %v2073 = vpop.xlane.xlu0 %2072
    %v2074 = vsel %vm98, %v2070, 0.0
    %2075 = vadd.xlane.f32.xlu0 %v2074
    %v2076 = vpop.xlane.xlu0 %2075
    %v2077 = vmul.f32 %v2073, %v1066
    %v2078 = vmul.f32 %v2076, %v1066
    %v2079 = vsub.f32 %v2069, %v2077
    %v2080 = vsub.f32 %v2070, %v2078
    %v2081 = vmul.f32 %v2079, %v2079
    %v2082 = vmul.f32 %v2080, %v2080
    %v2083 = vsel %vm98, %v2081, 0.0
    %2084 = vadd.xlane.f32.xlu0 %v2083
    %v2085 = vpop.xlane.xlu0 %2084
    %v2086 = vsel %vm98, %v2082, 0.0
    %2087 = vadd.xlane.f32.xlu0 %v2086
    %v2088 = vpop.xlane.xlu0 %2087
    %v2089 = vmul.f32 %v2085, %v1066
    %v2090 = vmul.f32 %v2088, %v1066
    %v2091 = vadd.f32 %v2089, 1e-05
    %v2092 = vadd.f32 %v2090, 1e-05
    %v2093 = vrsqrt.pop %v2091
    %v2094 = vrsqrt.pop %v2092
    %v2095 = vmul.f32 %v2079, %v2093
    %v2096 = vmul.f32 %v2080, %v2094
    %s2097 = scalar_lea.vmem %s8, 1
    %v2098 = vld [vmem:[%s2097] sm:$0x1]
    %v2100 = vlaneseq
    %v2101 = vshrl.u32 %v2100, 7
    %v2102 = vsub.s32 0, %v2101
    %v2103 = vrot.slane %v2098, %v2102
    %v2105 = vmul.f32 %v2095, %v2103
    %v2106 = vmul.f32 %v2096, %v2103
    %s2107 = scalar_lea.vmem %s9, 1
    %v2108 = vld [vmem:[%s2107] sm:$0x1]
    %v2110 = vlaneseq
    %v2111 = vshrl.u32 %v2110, 7
    %v2112 = vsub.s32 0, %v2111
    %v2113 = vrot.slane %v2108, %v2112
    %v2115 = vadd.f32 %v2105, %v2113
    %v2116 = vadd.f32 %v2106, %v2113
    %v2117 = vld [vmem:[%s13] sm:$0x1]
    %v2119 = vlaneseq
    %v2120 = vshrl.u32 %v2119, 7
    %v2121 = vsub.s32 0, %v2120
    %v2122 = vrot.slane %v2117, %v2121
    %v2124 = vmul.f32 %v2115, %v2122
    %v2125 = vmul.f32 %v2116, %v2122
    %v2128 = vrot.slane %v2125, 7
    %vm2131 = vcmask 261127
    %v2132 = vsel %vm2131, %v2124, 0.0
    %2133 = vadd.xlane.f32.xlu0 %v2132
    %v2134 = vpop.xlane.xlu0 %2133
    %vm2135 = vcmask 253952
    %v2136 = vsel %vm2135, %v2128, 0.0
    %2137 = vadd.xlane.f32.xlu0 %v2136
    %v2138 = vpop.xlane.xlu0 %2137
    %v2139 = vld [vmem:[#allocation2] sm:$0x1]
    %v2141 = vlaneseq
    %v2142 = vshrl.u32 %v2141, 7
    %v2143 = vsub.s32 0, %v2142
    %v2144 = vrot.slane %v2139, %v2143
    %v2146 = vadd.f32 %v2134, %v2144
    %v2147 = vadd.f32 %v2138, %v2144
    %v2148 = vsub.f32 0.0, %v2146
    %v2149 = vsub.f32 0.0, %v2147
    %v2150 = vmul.f32 %v2148, 1.442695
    %v2151 = vpow.pop %v2150
    %v2152 = vmul.f32 %v2149, 1.442695
    %v2153 = vpow.pop %v2152
    %v2154 = vadd.f32 %v2151, 1.0
    %v2155 = vadd.f32 %v2153, 1.0
    %v2156 = vrcp.pop %v2154
    %v2157 = vmul.f32 1.0, %v2156
    %v2158 = vrcp.pop %v2155
    %v2159 = vmul.f32 1.0, %v2158
    %v2160 = vadd.f32 %v2157, 1.0
    %v2161 = vadd.f32 %v2159, 1.0
    %v2162 = vld [vmem:[%s10] sm:$0xff]
    %v2163 = vld [vmem:[%s10 + $0x8] sm:$0xff]
    %v2164 = vld [vmem:[%s10 + $0x10] sm:$0xff]
    %v2165 = vld [vmem:[%s10 + $0x18] sm:$0xff]
    %v2167 = vsel %vm98, %v2115, 0
    %v2170 = vsel %vm98, %v2116, 0
    %2172 = vmatprep.subr.mxu0 0.0
    %2173 = vmatpush1.msra.mxu0 %v2162
    %2174 = vmatprep.subr.mxu0 0.0
    %2175 = vmatpush1.msra.mxu0 %v2163
    %2176 = vmatprep.subr.mxu0 0.0
    %2177 = vmatpush1.msra.mxu0 %v2164
    %2178 = vmatprep.subr.mxu0 0.0
    %2179 = vmatpush1.msra.mxu0 %v2165
    %2180 = vmatprep.subr.mxu0 0.0
    %2181 = vmatpush1.msra.mxu0 0.0
    %2182 = vmatprep.subr.mxu0 0.0
    %2183 = vmatpush1.msra.mxu0 0.0
    %2184 = vmatprep.subr.mxu0 0.0
    %2185 = vmatpush1.msra.mxu0 0.0
    %2186 = vmatprep.subr.mxu0 0.0
    %2187 = vmatpush1.msra.mxu0 0.0
    %2188 = vmatprep.subr.mxu0 0.0
    %2189 = vmatpush1.msra.mxu0 0.0
    %2190 = vmatprep.subr.mxu0 0.0
    %2191 = vmatpush1.msra.mxu0 0.0
    %2192 = vmatprep.subr.mxu0 0.0
    %2193 = vmatpush1.msra.mxu0 0.0
    %2194 = vmatprep.subr.mxu0 0.0
    %2195 = vmatpush1.msra.mxu0 0.0
    %2196 = vmatprep.subr.mxu0 0.0
    %2197 = vmatpush1.msra.mxu0 0.0
    %2198 = vmatprep.subr.mxu0 0.0
    %2199 = vmatpush1.msra.mxu0 0.0
    %2200 = vmatprep.subr.mxu0 0.0
    %2201 = vmatpush1.msra.mxu0 0.0
    %2202 = vmatprep.subr.mxu0 0.0
    %2203 = vmatpush1.msra.mxu0 0.0
    %2204 = vmatprep.subr.mxu0 0.0
    %2205 = vmatpush1.msra.mxu0 0.0
    %2206 = vmatprep.subr.mxu0 0.0
    %2207 = vmatpush1.msra.mxu0 0.0
    %2208 = vmatprep.subr.mxu0 0.0
    %2209 = vmatpush1.msra.mxu0 0.0
    %2210 = vmatprep.subr.mxu0 0.0
    %2211 = vmatpush1.msra.mxu0 0.0
    %2212 = vmatprep.subr.mxu0 0.0
    %2213 = vmatpush1.msra.mxu0 0.0
    %2214 = vmatprep.subr.mxu0 0.0
    %2215 = vmatpush1.msra.mxu0 0.0
    %2216 = vmatprep.subr.mxu0 0.0
    %2217 = vmatpush1.msra.mxu0 0.0
    %2218 = vmatprep.subr.mxu0 0.0
    %2219 = vmatpush1.msra.mxu0 0.0
    %2220 = vmatprep.subr.mxu0 0.0
    %2221 = vmatpush1.msra.mxu0 0.0
    %2222 = vmatprep.subr.mxu0 0.0
    %2223 = vmatpush1.msra.mxu0 0.0
    %2224 = vmatprep.subr.mxu0 0.0
    %2225 = vmatpush1.msra.mxu0 0.0
    %2226 = vmatprep.subr.mxu0 0.0
    %2227 = vmatpush1.msra.mxu0 0.0
    %2228 = vmatprep.subr.mxu0 0.0
    %2229 = vmatpush1.msra.mxu0 0.0
    %2230 = vmatprep.subr.mxu0 0.0
    %2231 = vmatpush1.msra.mxu0 0.0
    %2232 = vmatprep.subr.mxu0 0.0
    %2233 = vmatpush1.msra.mxu0 0.0
    %2234 = vmatprep.subr.mxu0 0.0
    %2235 = vmatpush1.msra.mxu0 0.0
    %2236 = vmatprep.mubr.f32.mxu0 0.0
    %2237 = vmatmul.mubr.f32.gmra.mrb[0].mxu0 %v2167
    %v2238 = vpop.f32.mrb[0].mxu0
    %v2239 = vadd.f32 0.0, %v2238
    %v2240 = vpop.f32.mrb[0].mxu0
    %2241 = vmatprep.mubr.f32.mxu0 0.0
    %2242 = vmatmul.mubr.f32.gmra.mrb[0].mxu0 %v2170
    %v2243 = vpop.f32.mrb[0].mxu0
    %v2244 = vadd.f32 0.0, %v2243
    %v2245 = vpop.f32.mrb[0].mxu0
    %2246 = vdwg.mxu0
    %v2247 = vlaneseq
    %v2248 = vshrl.u32 %v2247, 7
    %v2249 = vsub.s32 7, %v2248
    %v2250 = vrot.slane %v2239, %v2249
    %v2251 = vlaneseq
    %v2252 = vshrl.u32 %v2251, 7
    %v2253 = vsub.s32 7, %v2252
    %v2254 = vrot.slane %v2244, %v2253
    %2257 = vrot.lane.b32.xlu0 %v2239, 32
    %v2258 = vpop.permute.xlu0 %2257
    %2259 = vrot.lane.b32.xlu0 %v2244, 32
    %v2260 = vpop.permute.xlu0 %2259
    %v2263 = vadd.f32 %v2250, %v2258
    %v2264 = vadd.f32 %v2254, %v2260
    %v2265 = vld [vmem:[%s11] sm:$0x1]
    %v2267 = vlaneseq
    %v2268 = vshrl.u32 %v2267, 7
    %v2269 = vsub.s32 0, %v2268
    %v2270 = vrot.slane %v2265, %v2269
    %2271 = vrot.lane.b32.xlu0 %v2270, 32
    %v2272 = vpop.permute.xlu0 %2271
    %v2274 = vadd.f32 %v2263, %v2272
    %v2275 = vadd.f32 %v2264, %v2272
    %v2276 = vmax.f32 %v2274, 0.0
    %v2277 = vmax.f32 %v2275, 0.0
    %v2278 = vld [vmem:[%s12] sm:$0x1]
    %v2280 = vlaneseq
    %v2281 = vshrl.u32 %v2280, 7
    %v2282 = vsub.s32 0, %v2281
    %v2283 = vrot.slane %v2278, %v2282
    %2284 = vrot.lane.b32.xlu0 %v2283, 32
    %v2285 = vpop.permute.xlu0 %2284
    %v2287 = vmul.f32 %v2276, %v2285
    %v2288 = vmul.f32 %v2277, %v2285
    %2291 = vrot.lane.b32.xlu0 %v2287, 96
    %v2292 = vpop.permute.xlu0 %2291
    %2293 = vrot.lane.b32.xlu0 %v2288, 96
    %v2294 = vpop.permute.xlu0 %2293
    %vm2297 = vcmask 260096
    %v2298 = vsel %vm2297, %v2292, 0.0
    %2299 = vadd.xlane.f32.xlu0 %v2298
    %v2300 = vpop.xlane.xlu0 %2299
    %v2301 = vsel %vm2297, %v2294, 0.0
    %2302 = vadd.xlane.f32.xlu0 %v2301
    %v2303 = vpop.xlane.xlu0 %2302
    %v2306 = vlaneseq
    %v2307 = vand.u32 %v2306, 127
    %v2308 = vlaneseq
    %v2309 = vshrl.u32 %v2308, 7
    %v2310 = vsub.s32 %v2307, %v2309
    %v2311 = vrot.slane %v2300, %v2310
    %v2312 = vlaneseq
    %v2313 = vshrl.u32 %v2312, 7
    %v2314 = vsub.s32 %v2307, %v2313
    %v2315 = vrot.slane %v2303, %v2314
    %vm2316 = vcmask 1041409
    %v2317 = vsel %vm2316, %v2315, %v2311
    %v2319 = vsel %vm62, -1e+30, %v2317
    %v2320 = vsub.f32 %v2160, 1.0
    %v2321 = vsub.f32 %v2161, 1.0
    %v2322 = vrcp.pop %v2320
    %v2323 = vmul.f32 1.0, %v2322
    %v2324 = vrcp.pop %v2321
    %v2325 = vmul.f32 1.0, %v2324
    %2327 = vset.pattern.permute.xlu0 0
    %2328 = vperm.xlu0 %2327, %v2320
    %v2329 = vpop.permute.xlu0 %2328
    %2331 = vset.pattern.permute.xlu0 0
    %2332 = vperm.xlu0 %2331, %v2321
    %v2333 = vpop.permute.xlu0 %2332
    %vm2334 = vcmask 1040384
    %v2335 = vrot.slane %v2329, 7
    %v2336 = vrot.slane %v2333, 7
    %v2337 = vsel %vm2334, %v2335, %v2336
    %v2339 = vmul.f32 %v2319, %v2337
    %vm2340 = vcmask 50176
    %v2341 = vsel %vm2340, %v2339, -inf
    %2342 = vmax.xlane.f32.xlu0 %v2341
    %v2343 = vpop.xlane.xlu0 %2342
    %v2344 = vsub.f32 %v2343, 1.0
    %v2345 = vmul.f32 %v2320, -1.9459101
    %v2346 = vmul.f32 %v2321, -1.9459101
    %v2347 = vmul.f32 %v2345, 1.442695
    %v2348 = vpow.pop %v2347
    %v2349 = vmul.f32 %v2346, 1.442695
    %v2350 = vpow.pop %v2349
    %v2353 = vrot.slane %v2348, 7
    %v2354 = vrot.slane %v2350, 7
    %v2355 = vsel %vm2334, %v2353, %v2354
    %v2357 = vsub.f32 %v2343, %v2355
    %v2358 = vsub.f32 %v2339, %v2344
    %v2359 = vmax.f32 %v2358, 0.0
    %vm2360 = vcmp.gt.f32.partialorder %v2359, 0.0
    %v2361 = vsel %vm2360, %v2359, 1.0
    %v2362 = vlog2.pop %v2361
    %v2363 = vmul.f32 %v2362, 0.6931472
    %2365 = vset.pattern.permute.xlu0 0
    %2366 = vperm.xlu0 %2365, %v2323
    %v2367 = vpop.permute.xlu0 %2366
    %2370 = vset.pattern.permute.xlu0 0
    %2371 = vperm.xlu0 %2370, %v2325
    %v2372 = vpop.permute.xlu0 %2371
    %v2375 = vrot.slane %v2363, 1
    %v2377 = vmul.f32 %v2367, %v2375
    %v2378 = vmul.f32 %v2372, %v2375
    %v2379 = vmul.f32 %v2377, 1.442695
    %v2380 = vpow.pop %v2379
    %v2381 = vmul.f32 %v2378, 1.442695
    %v2382 = vpow.pop %v2381
    %v2385 = vrot.slane %v2380, 7
    %v2386 = vrot.slane %v2382, 7
    %v2387 = vsel %vm2334, %v2385, %v2386
    %v2389 = vsel %vm2360, %v2387, 0.0
    %v2390 = vsel %vm2340, %v2389, 0.0
    %2391 = vadd.xlane.f32.xlu0 %v2390
    %v2392 = vpop.xlane.xlu0 %2391
    %v2393 = vsub.f32 %v2392, 1.0
    %v2394 = vsub.f32 %v2357, %v2344
    %v2395 = vmul.f32 %v2394, 0.5
    %v2396 = vadd.f32 %v2344, %v2395
    %2398 = vset.pattern.permute.xlu0 0
    %2399 = vperm.xlu0 %2398, %v2396
    %v2400 = vpop.permute.xlu0 %2399
    %v2402 = vsub.f32 %v2339, %v2400
    %v2403 = vmax.f32 %v2402, 0.0
    %vm2404 = vcmp.gt.f32.partialorder %v2403, 0.0
    %v2405 = vsel %vm2404, %v2403, 1.0
    %v2406 = vlog2.pop %v2405
    %v2407 = vmul.f32 %v2406, 0.6931472
    %v2409 = vrot.slane %v2407, 1
    %v2411 = vmul.f32 %v2367, %v2409
    %v2412 = vmul.f32 %v2372, %v2409
    %v2413 = vmul.f32 %v2411, 1.442695
    %v2414 = vpow.pop %v2413
    %v2415 = vmul.f32 %v2412, 1.442695
    %v2416 = vpow.pop %v2415
    %v2419 = vrot.slane %v2414, 7
    %v2420 = vrot.slane %v2416, 7
    %v2421 = vsel %vm2334, %v2419, %v2420
    %v2423 = vsel %vm2404, %v2421, 0.0
    %v2424 = vsel %vm2340, %v2423, 0.0
    %2425 = vadd.xlane.f32.xlu0 %v2424
    %v2426 = vpop.xlane.xlu0 %2425
    %v2427 = vsub.f32 %v2426, 1.0
    %v2428 = vmul.f32 %v2427, %v2393
    %vm2429 = vcmp.ge.f32.partialorder %v2428, 0.0
    %v2430 = vsel %vm2429, %v2396, %v2344
    %v2431 = vmul.f32 %v2395, 0.5
    %v2432 = vadd.f32 %v2430, %v2431
    %2434 = vset.pattern.permute.xlu0 0
    %2435 = vperm.xlu0 %2434, %v2432
    %v2436 = vpop.permute.xlu0 %2435
    %v2438 = vsub.f32 %v2339, %v2436
    %v2439 = vmax.f32 %v2438, 0.0
    %vm2440 = vcmp.gt.f32.partialorder %v2439, 0.0
    %v2441 = vsel %vm2440, %v2439, 1.0
    %v2442 = vlog2.pop %v2441
    %v2443 = vmul.f32 %v2442, 0.6931472
    %v2445 = vrot.slane %v2443, 1
    %v2447 = vmul.f32 %v2367, %v2445
    %v2448 = vmul.f32 %v2372, %v2445
    %v2449 = vmul.f32 %v2447, 1.442695
    %v2450 = vpow.pop %v2449
    %v2451 = vmul.f32 %v2448, 1.442695
    %v2452 = vpow.pop %v2451
    %v2455 = vrot.slane %v2450, 7
    %v2456 = vrot.slane %v2452, 7
    %v2457 = vsel %vm2334, %v2455, %v2456
    %v2459 = vsel %vm2440, %v2457, 0.0
    %v2460 = vsel %vm2340, %v2459, 0.0
    %2461 = vadd.xlane.f32.xlu0 %v2460
    %v2462 = vpop.xlane.xlu0 %2461
    %v2463 = vsub.f32 %v2462, 1.0
    %v2464 = vmul.f32 %v2463, %v2393
    %vm2465 = vcmp.ge.f32.partialorder %v2464, 0.0
    %v2466 = vsel %vm2465, %v2432, %v2430
    %v2467 = vmul.f32 %v2431, 0.5
    %v2468 = vadd.f32 %v2466, %v2467
    %2470 = vset.pattern.permute.xlu0 0
    %2471 = vperm.xlu0 %2470, %v2468
    %v2472 = vpop.permute.xlu0 %2471
    %v2474 = vsub.f32 %v2339, %v2472
    %v2475 = vmax.f32 %v2474, 0.0
    %vm2476 = vcmp.gt.f32.partialorder %v2475, 0.0
    %v2477 = vsel %vm2476, %v2475, 1.0
    %v2478 = vlog2.pop %v2477
    %v2479 = vmul.f32 %v2478, 0.6931472
    %v2481 = vrot.slane %v2479, 1
    %v2483 = vmul.f32 %v2367, %v2481
    %v2484 = vmul.f32 %v2372, %v2481
    %v2485 = vmul.f32 %v2483, 1.442695
    %v2486 = vpow.pop %v2485
    %v2487 = vmul.f32 %v2484, 1.442695
    %v2488 = vpow.pop %v2487
    %v2491 = vrot.slane %v2486, 7
    %v2492 = vrot.slane %v2488, 7
    %v2493 = vsel %vm2334, %v2491, %v2492
    %v2495 = vsel %vm2476, %v2493, 0.0
    %v2496 = vsel %vm2340, %v2495, 0.0
    %2497 = vadd.xlane.f32.xlu0 %v2496
    %v2498 = vpop.xlane.xlu0 %2497
    %v2499 = vsub.f32 %v2498, 1.0
    %v2500 = vmul.f32 %v2499, %v2393
    %vm2501 = vcmp.ge.f32.partialorder %v2500, 0.0
    %v2502 = vsel %vm2501, %v2468, %v2466
    %v2503 = vmul.f32 %v2467, 0.5
    %v2504 = vadd.f32 %v2502, %v2503
    %2506 = vset.pattern.permute.xlu0 0
    %2507 = vperm.xlu0 %2506, %v2504
    %v2508 = vpop.permute.xlu0 %2507
    %v2510 = vsub.f32 %v2339, %v2508
    %v2511 = vmax.f32 %v2510, 0.0
    %vm2512 = vcmp.gt.f32.partialorder %v2511, 0.0
    %v2513 = vsel %vm2512, %v2511, 1.0
    %v2514 = vlog2.pop %v2513
    %v2515 = vmul.f32 %v2514, 0.6931472
    %v2517 = vrot.slane %v2515, 1
    %v2519 = vmul.f32 %v2367, %v2517
    %v2520 = vmul.f32 %v2372, %v2517
    %v2521 = vmul.f32 %v2519, 1.442695
    %v2522 = vpow.pop %v2521
    %v2523 = vmul.f32 %v2520, 1.442695
    %v2524 = vpow.pop %v2523
    %v2527 = vrot.slane %v2522, 7
    %v2528 = vrot.slane %v2524, 7
    %v2529 = vsel %vm2334, %v2527, %v2528
    %v2531 = vsel %vm2512, %v2529, 0.0
    %v2532 = vsel %vm2340, %v2531, 0.0
    %2533 = vadd.xlane.f32.xlu0 %v2532
    %v2534 = vpop.xlane.xlu0 %2533
    %v2535 = vsub.f32 %v2534, 1.0
    %v2536 = vmul.f32 %v2535, %v2393
    %vm2537 = vcmp.ge.f32.partialorder %v2536, 0.0
    %v2538 = vsel %vm2537, %v2504, %v2502
    %v2539 = vmul.f32 %v2503, 0.5
    %v2540 = vadd.f32 %v2538, %v2539
    %2542 = vset.pattern.permute.xlu0 0
    %2543 = vperm.xlu0 %2542, %v2540
    %v2544 = vpop.permute.xlu0 %2543
    %v2546 = vsub.f32 %v2339, %v2544
    %v2547 = vmax.f32 %v2546, 0.0
    %vm2548 = vcmp.gt.f32.partialorder %v2547, 0.0
    %v2549 = vsel %vm2548, %v2547, 1.0
    %v2550 = vlog2.pop %v2549
    %v2551 = vmul.f32 %v2550, 0.6931472
    %v2553 = vrot.slane %v2551, 1
    %v2555 = vmul.f32 %v2367, %v2553
    %v2556 = vmul.f32 %v2372, %v2553
    %v2557 = vmul.f32 %v2555, 1.442695
    %v2558 = vpow.pop %v2557
    %v2559 = vmul.f32 %v2556, 1.442695
    %v2560 = vpow.pop %v2559
    %v2563 = vrot.slane %v2558, 7
    %v2564 = vrot.slane %v2560, 7
    %v2565 = vsel %vm2334, %v2563, %v2564
    %v2567 = vsel %vm2548, %v2565, 0.0
    %v2568 = vsel %vm2340, %v2567, 0.0
    %2569 = vadd.xlane.f32.xlu0 %v2568
    %v2570 = vpop.xlane.xlu0 %2569
    %v2571 = vsub.f32 %v2570, 1.0
    %v2572 = vmul.f32 %v2571, %v2393
    %vm2573 = vcmp.ge.f32.partialorder %v2572, 0.0
    %v2574 = vsel %vm2573, %v2540, %v2538
    %v2575 = vmul.f32 %v2539, 0.5
    %v2576 = vadd.f32 %v2574, %v2575
    %2578 = vset.pattern.permute.xlu0 0
    %2579 = vperm.xlu0 %2578, %v2576
    %v2580 = vpop.permute.xlu0 %2579
    %v2582 = vsub.f32 %v2339, %v2580
    %v2583 = vmax.f32 %v2582, 0.0
    %vm2584 = vcmp.gt.f32.partialorder %v2583, 0.0
    %v2585 = vsel %vm2584, %v2583, 1.0
    %v2586 = vlog2.pop %v2585
    %v2587 = vmul.f32 %v2586, 0.6931472
    %v2589 = vrot.slane %v2587, 1
    %v2591 = vmul.f32 %v2367, %v2589
    %v2592 = vmul.f32 %v2372, %v2589
    %v2593 = vmul.f32 %v2591, 1.442695
    %v2594 = vpow.pop %v2593
    %v2595 = vmul.f32 %v2592, 1.442695
    %v2596 = vpow.pop %v2595
    %v2599 = vrot.slane %v2594, 7
    %v2600 = vrot.slane %v2596, 7
    %v2601 = vsel %vm2334, %v2599, %v2600
    %v2603 = vsel %vm2584, %v2601, 0.0
    %v2604 = vsel %vm2340, %v2603, 0.0
    %2605 = vadd.xlane.f32.xlu0 %v2604
    %v2606 = vpop.xlane.xlu0 %2605
    %v2607 = vsub.f32 %v2606, 1.0
    %v2608 = vmul.f32 %v2607, %v2393
    %vm2609 = vcmp.ge.f32.partialorder %v2608, 0.0
    %v2610 = vsel %vm2609, %v2576, %v2574
    %v2611 = vmul.f32 %v2575, 0.5
    %v2612 = vadd.f32 %v2610, %v2611
    %2614 = vset.pattern.permute.xlu0 0
    %2615 = vperm.xlu0 %2614, %v2612
    %v2616 = vpop.permute.xlu0 %2615
    %v2618 = vsub.f32 %v2339, %v2616
    %v2619 = vmax.f32 %v2618, 0.0
    %vm2620 = vcmp.gt.f32.partialorder %v2619, 0.0
    %v2621 = vsel %vm2620, %v2619, 1.0
    %v2622 = vlog2.pop %v2621
    %v2623 = vmul.f32 %v2622, 0.6931472
    %v2625 = vrot.slane %v2623, 1
    %v2627 = vmul.f32 %v2367, %v2625
    %v2628 = vmul.f32 %v2372, %v2625
    %v2629 = vmul.f32 %v2627, 1.442695
    %v2630 = vpow.pop %v2629
    %v2631 = vmul.f32 %v2628, 1.442695
    %v2632 = vpow.pop %v2631
    %v2635 = vrot.slane %v2630, 7
    %v2636 = vrot.slane %v2632, 7
    %v2637 = vsel %vm2334, %v2635, %v2636
    %v2639 = vsel %vm2620, %v2637, 0.0
    %v2640 = vsel %vm2340, %v2639, 0.0
    %2641 = vadd.xlane.f32.xlu0 %v2640
    %v2642 = vpop.xlane.xlu0 %2641
    %v2643 = vsub.f32 %v2642, 1.0
    %v2644 = vmul.f32 %v2643, %v2393
    %vm2645 = vcmp.ge.f32.partialorder %v2644, 0.0
    %v2646 = vsel %vm2645, %v2612, %v2610
    %v2647 = vmul.f32 %v2611, 0.5
    %v2648 = vadd.f32 %v2646, %v2647
    %2650 = vset.pattern.permute.xlu0 0
    %2651 = vperm.xlu0 %2650, %v2648
    %v2652 = vpop.permute.xlu0 %2651
    %v2654 = vsub.f32 %v2339, %v2652
    %v2655 = vmax.f32 %v2654, 0.0
    %vm2656 = vcmp.gt.f32.partialorder %v2655, 0.0
    %v2657 = vsel %vm2656, %v2655, 1.0
    %v2658 = vlog2.pop %v2657
    %v2659 = vmul.f32 %v2658, 0.6931472
    %v2661 = vrot.slane %v2659, 1
    %v2663 = vmul.f32 %v2367, %v2661
    %v2664 = vmul.f32 %v2372, %v2661
    %v2665 = vmul.f32 %v2663, 1.442695
    %v2666 = vpow.pop %v2665
    %v2667 = vmul.f32 %v2664, 1.442695
    %v2668 = vpow.pop %v2667
    %v2671 = vrot.slane %v2666, 7
    %v2672 = vrot.slane %v2668, 7
    %v2673 = vsel %vm2334, %v2671, %v2672
    %v2675 = vsel %vm2656, %v2673, 0.0
    %v2676 = vsel %vm2340, %v2675, 0.0
    %2677 = vadd.xlane.f32.xlu0 %v2676
    %v2678 = vpop.xlane.xlu0 %2677
    %v2679 = vsub.f32 %v2678, 1.0
    %v2680 = vmul.f32 %v2679, %v2393
    %vm2681 = vcmp.ge.f32.partialorder %v2680, 0.0
    %v2682 = vsel %vm2681, %v2648, %v2646
    %v2683 = vmul.f32 %v2647, 0.5
    %v2684 = vadd.f32 %v2682, %v2683
    %2686 = vset.pattern.permute.xlu0 0
    %2687 = vperm.xlu0 %2686, %v2684
    %v2688 = vpop.permute.xlu0 %2687
    %v2690 = vsub.f32 %v2339, %v2688
    %v2691 = vmax.f32 %v2690, 0.0
    %vm2692 = vcmp.gt.f32.partialorder %v2691, 0.0
    %v2693 = vsel %vm2692, %v2691, 1.0
    %v2694 = vlog2.pop %v2693
    %v2695 = vmul.f32 %v2694, 0.6931472
    %v2697 = vrot.slane %v2695, 1
    %v2699 = vmul.f32 %v2367, %v2697
    %v2700 = vmul.f32 %v2372, %v2697
    %v2701 = vmul.f32 %v2699, 1.442695
    %v2702 = vpow.pop %v2701
    %v2703 = vmul.f32 %v2700, 1.442695
    %v2704 = vpow.pop %v2703
    %v2707 = vrot.slane %v2702, 7
    %v2708 = vrot.slane %v2704, 7
    %v2709 = vsel %vm2334, %v2707, %v2708
    %v2711 = vsel %vm2692, %v2709, 0.0
    %v2712 = vsel %vm2340, %v2711, 0.0
    %2713 = vadd.xlane.f32.xlu0 %v2712
    %v2714 = vpop.xlane.xlu0 %2713
    %v2715 = vsub.f32 %v2714, 1.0
    %v2716 = vmul.f32 %v2715, %v2393
    %vm2717 = vcmp.ge.f32.partialorder %v2716, 0.0
    %v2718 = vsel %vm2717, %v2684, %v2682
    %v2719 = vmul.f32 %v2683, 0.5
    %v2720 = vadd.f32 %v2718, %v2719
    %2722 = vset.pattern.permute.xlu0 0
    %2723 = vperm.xlu0 %2722, %v2720
    %v2724 = vpop.permute.xlu0 %2723
    %v2726 = vsub.f32 %v2339, %v2724
    %v2727 = vmax.f32 %v2726, 0.0
    %vm2728 = vcmp.gt.f32.partialorder %v2727, 0.0
    %v2729 = vsel %vm2728, %v2727, 1.0
    %v2730 = vlog2.pop %v2729
    %v2731 = vmul.f32 %v2730, 0.6931472
    %v2733 = vrot.slane %v2731, 1
    %v2735 = vmul.f32 %v2367, %v2733
    %v2736 = vmul.f32 %v2372, %v2733
    %v2737 = vmul.f32 %v2735, 1.442695
    %v2738 = vpow.pop %v2737
    %v2739 = vmul.f32 %v2736, 1.442695
    %v2740 = vpow.pop %v2739
    %v2743 = vrot.slane %v2738, 7
    %v2744 = vrot.slane %v2740, 7
    %v2745 = vsel %vm2334, %v2743, %v2744
    %v2747 = vsel %vm2728, %v2745, 0.0
    %v2748 = vsel %vm2340, %v2747, 0.0
    %2749 = vadd.xlane.f32.xlu0 %v2748
    %v2750 = vpop.xlane.xlu0 %2749
    %v2751 = vsub.f32 %v2750, 1.0
    %v2752 = vmul.f32 %v2751, %v2393
    %vm2753 = vcmp.ge.f32.partialorder %v2752, 0.0
    %v2754 = vsel %vm2753, %v2720, %v2718
    %v2755 = vmul.f32 %v2719, 0.5
    %v2756 = vadd.f32 %v2754, %v2755
    %2758 = vset.pattern.permute.xlu0 0
    %2759 = vperm.xlu0 %2758, %v2756
    %v2760 = vpop.permute.xlu0 %2759
    %v2762 = vsub.f32 %v2339, %v2760
    %v2763 = vmax.f32 %v2762, 0.0
    %vm2764 = vcmp.gt.f32.partialorder %v2763, 0.0
    %v2765 = vsel %vm2764, %v2763, 1.0
    %v2766 = vlog2.pop %v2765
    %v2767 = vmul.f32 %v2766, 0.6931472
    %v2769 = vrot.slane %v2767, 1
    %v2771 = vmul.f32 %v2367, %v2769
    %v2772 = vmul.f32 %v2372, %v2769
    %v2773 = vmul.f32 %v2771, 1.442695
    %v2774 = vpow.pop %v2773
    %v2775 = vmul.f32 %v2772, 1.442695
    %v2776 = vpow.pop %v2775
    %v2779 = vrot.slane %v2774, 7
    %v2780 = vrot.slane %v2776, 7
    %v2781 = vsel %vm2334, %v2779, %v2780
    %v2783 = vsel %vm2764, %v2781, 0.0
    %v2784 = vsel %vm2340, %v2783, 0.0
    %2785 = vadd.xlane.f32.xlu0 %v2784
    %v2786 = vpop.xlane.xlu0 %2785
    %v2787 = vsub.f32 %v2786, 1.0
    %v2788 = vmul.f32 %v2787, %v2393
    %vm2789 = vcmp.ge.f32.partialorder %v2788, 0.0
    %v2790 = vsel %vm2789, %v2756, %v2754
    %v2791 = vmul.f32 %v2755, 0.5
    %v2792 = vadd.f32 %v2790, %v2791
    %2794 = vset.pattern.permute.xlu0 0
    %2795 = vperm.xlu0 %2794, %v2792
    %v2796 = vpop.permute.xlu0 %2795
    %v2798 = vsub.f32 %v2339, %v2796
    %v2799 = vmax.f32 %v2798, 0.0
    %vm2800 = vcmp.gt.f32.partialorder %v2799, 0.0
    %v2801 = vsel %vm2800, %v2799, 1.0
    %v2802 = vlog2.pop %v2801
    %v2803 = vmul.f32 %v2802, 0.6931472
    %v2805 = vrot.slane %v2803, 1
    %v2807 = vmul.f32 %v2367, %v2805
    %v2808 = vmul.f32 %v2372, %v2805
    %v2809 = vmul.f32 %v2807, 1.442695
    %v2810 = vpow.pop %v2809
    %v2811 = vmul.f32 %v2808, 1.442695
    %v2812 = vpow.pop %v2811
    %v2815 = vrot.slane %v2810, 7
    %v2816 = vrot.slane %v2812, 7
    %v2817 = vsel %vm2334, %v2815, %v2816
    %v2819 = vsel %vm2800, %v2817, 0.0
    %v2820 = vsel %vm2340, %v2819, 0.0
    %2821 = vadd.xlane.f32.xlu0 %v2820
    %v2822 = vpop.xlane.xlu0 %2821
    %v2823 = vsub.f32 %v2822, 1.0
    %v2824 = vmul.f32 %v2823, %v2393
    %vm2825 = vcmp.ge.f32.partialorder %v2824, 0.0
    %v2826 = vsel %vm2825, %v2792, %v2790
    %v2827 = vmul.f32 %v2791, 0.5
    %v2828 = vadd.f32 %v2826, %v2827
    %2830 = vset.pattern.permute.xlu0 0
    %2831 = vperm.xlu0 %2830, %v2828
    %v2832 = vpop.permute.xlu0 %2831
    %v2834 = vsub.f32 %v2339, %v2832
    %v2835 = vmax.f32 %v2834, 0.0
    %vm2836 = vcmp.gt.f32.partialorder %v2835, 0.0
    %v2837 = vsel %vm2836, %v2835, 1.0
    %v2838 = vlog2.pop %v2837
    %v2839 = vmul.f32 %v2838, 0.6931472
    %v2841 = vrot.slane %v2839, 1
    %v2843 = vmul.f32 %v2367, %v2841
    %v2844 = vmul.f32 %v2372, %v2841
    %v2845 = vmul.f32 %v2843, 1.442695
    %v2846 = vpow.pop %v2845
    %v2847 = vmul.f32 %v2844, 1.442695
    %v2848 = vpow.pop %v2847
    %v2851 = vrot.slane %v2846, 7
    %v2852 = vrot.slane %v2848, 7
    %v2853 = vsel %vm2334, %v2851, %v2852
    %v2855 = vsel %vm2836, %v2853, 0.0
    %v2856 = vsel %vm2340, %v2855, 0.0
    %2857 = vadd.xlane.f32.xlu0 %v2856
    %v2858 = vpop.xlane.xlu0 %2857
    %v2859 = vsub.f32 %v2858, 1.0
    %v2860 = vmul.f32 %v2859, %v2393
    %vm2861 = vcmp.ge.f32.partialorder %v2860, 0.0
    %v2862 = vsel %vm2861, %v2828, %v2826
    %v2863 = vmul.f32 %v2827, 0.5
    %v2864 = vadd.f32 %v2862, %v2863
    %2866 = vset.pattern.permute.xlu0 0
    %2867 = vperm.xlu0 %2866, %v2864
    %v2868 = vpop.permute.xlu0 %2867
    %v2870 = vsub.f32 %v2339, %v2868
    %v2871 = vmax.f32 %v2870, 0.0
    %vm2872 = vcmp.gt.f32.partialorder %v2871, 0.0
    %v2873 = vsel %vm2872, %v2871, 1.0
    %v2874 = vlog2.pop %v2873
    %v2875 = vmul.f32 %v2874, 0.6931472
    %v2877 = vrot.slane %v2875, 1
    %v2879 = vmul.f32 %v2367, %v2877
    %v2880 = vmul.f32 %v2372, %v2877
    %v2881 = vmul.f32 %v2879, 1.442695
    %v2882 = vpow.pop %v2881
    %v2883 = vmul.f32 %v2880, 1.442695
    %v2884 = vpow.pop %v2883
    %v2887 = vrot.slane %v2882, 7
    %v2888 = vrot.slane %v2884, 7
    %v2889 = vsel %vm2334, %v2887, %v2888
    %v2891 = vsel %vm2872, %v2889, 0.0
    %v2892 = vsel %vm2340, %v2891, 0.0
    %2893 = vadd.xlane.f32.xlu0 %v2892
    %v2894 = vpop.xlane.xlu0 %2893
    %v2895 = vsub.f32 %v2894, 1.0
    %v2896 = vmul.f32 %v2895, %v2393
    %vm2897 = vcmp.ge.f32.partialorder %v2896, 0.0
    %v2898 = vsel %vm2897, %v2864, %v2862
    %v2899 = vmul.f32 %v2863, 0.5
    %v2900 = vadd.f32 %v2898, %v2899
    %2902 = vset.pattern.permute.xlu0 0
    %2903 = vperm.xlu0 %2902, %v2900
    %v2904 = vpop.permute.xlu0 %2903
    %v2906 = vsub.f32 %v2339, %v2904
    %v2907 = vmax.f32 %v2906, 0.0
    %vm2908 = vcmp.gt.f32.partialorder %v2907, 0.0
    %v2909 = vsel %vm2908, %v2907, 1.0
    %v2910 = vlog2.pop %v2909
    %v2911 = vmul.f32 %v2910, 0.6931472
    %v2913 = vrot.slane %v2911, 1
    %v2915 = vmul.f32 %v2367, %v2913
    %v2916 = vmul.f32 %v2372, %v2913
    %v2917 = vmul.f32 %v2915, 1.442695
    %v2918 = vpow.pop %v2917
    %v2919 = vmul.f32 %v2916, 1.442695
    %v2920 = vpow.pop %v2919
    %v2923 = vrot.slane %v2918, 7
    %v2924 = vrot.slane %v2920, 7
    %v2925 = vsel %vm2334, %v2923, %v2924
    %v2927 = vsel %vm2908, %v2925, 0.0
    %v2928 = vsel %vm2340, %v2927, 0.0
    %2929 = vadd.xlane.f32.xlu0 %v2928
    %v2930 = vpop.xlane.xlu0 %2929
    %v2931 = vsub.f32 %v2930, 1.0
    %v2932 = vmul.f32 %v2931, %v2393
    %vm2933 = vcmp.ge.f32.partialorder %v2932, 0.0
    %v2934 = vsel %vm2933, %v2900, %v2898
    %v2935 = vmul.f32 %v2899, 0.5
    %v2936 = vadd.f32 %v2934, %v2935
    %2938 = vset.pattern.permute.xlu0 0
    %2939 = vperm.xlu0 %2938, %v2936
    %v2940 = vpop.permute.xlu0 %2939
    %v2942 = vsub.f32 %v2339, %v2940
    %v2943 = vmax.f32 %v2942, 0.0
    %vm2944 = vcmp.gt.f32.partialorder %v2943, 0.0
    %v2945 = vsel %vm2944, %v2943, 1.0
    %v2946 = vlog2.pop %v2945
    %v2947 = vmul.f32 %v2946, 0.6931472
    %v2949 = vrot.slane %v2947, 1
    %v2951 = vmul.f32 %v2367, %v2949
    %v2952 = vmul.f32 %v2372, %v2949
    %v2953 = vmul.f32 %v2951, 1.442695
    %v2954 = vpow.pop %v2953
    %v2955 = vmul.f32 %v2952, 1.442695
    %v2956 = vpow.pop %v2955
    %v2959 = vrot.slane %v2954, 7
    %v2960 = vrot.slane %v2956, 7
    %v2961 = vsel %vm2334, %v2959, %v2960
    %v2963 = vsel %vm2944, %v2961, 0.0
    %v2964 = vsel %vm2340, %v2963, 0.0
    %2965 = vadd.xlane.f32.xlu0 %v2964
    %v2966 = vpop.xlane.xlu0 %2965
    %v2967 = vsub.f32 %v2966, 1.0
    %v2968 = vmul.f32 %v2967, %v2393
    %vm2969 = vcmp.ge.f32.partialorder %v2968, 0.0
    %v2970 = vsel %vm2969, %v2936, %v2934
    %v2971 = vmul.f32 %v2935, 0.5
    %v2972 = vadd.f32 %v2970, %v2971
    %2974 = vset.pattern.permute.xlu0 0
    %2975 = vperm.xlu0 %2974, %v2972
    %v2976 = vpop.permute.xlu0 %2975
    %v2978 = vsub.f32 %v2339, %v2976
    %v2979 = vmax.f32 %v2978, 0.0
    %vm2980 = vcmp.gt.f32.partialorder %v2979, 0.0
    %v2981 = vsel %vm2980, %v2979, 1.0
    %v2982 = vlog2.pop %v2981
    %v2983 = vmul.f32 %v2982, 0.6931472
    %v2985 = vrot.slane %v2983, 1
    %v2987 = vmul.f32 %v2367, %v2985
    %v2988 = vmul.f32 %v2372, %v2985
    %v2989 = vmul.f32 %v2987, 1.442695
    %v2990 = vpow.pop %v2989
    %v2991 = vmul.f32 %v2988, 1.442695
    %v2992 = vpow.pop %v2991
    %v2995 = vrot.slane %v2990, 7
    %v2996 = vrot.slane %v2992, 7
    %v2997 = vsel %vm2334, %v2995, %v2996
    %v2999 = vsel %vm2980, %v2997, 0.0
    %v3000 = vsel %vm2340, %v2999, 0.0
    %3001 = vadd.xlane.f32.xlu0 %v3000
    %v3002 = vpop.xlane.xlu0 %3001
    %v3003 = vsub.f32 %v3002, 1.0
    %v3004 = vmul.f32 %v3003, %v2393
    %vm3005 = vcmp.ge.f32.partialorder %v3004, 0.0
    %v3006 = vsel %vm3005, %v2972, %v2970
    %v3007 = vmul.f32 %v2971, 0.5
    %v3008 = vadd.f32 %v3006, %v3007
    %3010 = vset.pattern.permute.xlu0 0
    %3011 = vperm.xlu0 %3010, %v3008
    %v3012 = vpop.permute.xlu0 %3011
    %v3014 = vsub.f32 %v2339, %v3012
    %v3015 = vmax.f32 %v3014, 0.0
    %vm3016 = vcmp.gt.f32.partialorder %v3015, 0.0
    %v3017 = vsel %vm3016, %v3015, 1.0
    %v3018 = vlog2.pop %v3017
    %v3019 = vmul.f32 %v3018, 0.6931472
    %v3021 = vrot.slane %v3019, 1
    %v3023 = vmul.f32 %v2367, %v3021
    %v3024 = vmul.f32 %v2372, %v3021
    %v3025 = vmul.f32 %v3023, 1.442695
    %v3026 = vpow.pop %v3025
    %v3027 = vmul.f32 %v3024, 1.442695
    %v3028 = vpow.pop %v3027
    %v3031 = vrot.slane %v3026, 7
    %v3032 = vrot.slane %v3028, 7
    %v3033 = vsel %vm2334, %v3031, %v3032
    %v3035 = vsel %vm3016, %v3033, 0.0
    %v3036 = vsel %vm2340, %v3035, 0.0
    %3037 = vadd.xlane.f32.xlu0 %v3036
    %v3038 = vpop.xlane.xlu0 %3037
    %v3039 = vsub.f32 %v3038, 1.0
    %v3040 = vmul.f32 %v3039, %v2393
    %vm3041 = vcmp.ge.f32.partialorder %v3040, 0.0
    %v3042 = vsel %vm3041, %v3008, %v3006
    %v3043 = vmul.f32 %v3007, 0.5
    %v3044 = vadd.f32 %v3042, %v3043
    %3046 = vset.pattern.permute.xlu0 0
    %3047 = vperm.xlu0 %3046, %v3044
    %v3048 = vpop.permute.xlu0 %3047
    %v3050 = vsub.f32 %v2339, %v3048
    %v3051 = vmax.f32 %v3050, 0.0
    %vm3052 = vcmp.gt.f32.partialorder %v3051, 0.0
    %v3053 = vsel %vm3052, %v3051, 1.0
    %v3054 = vlog2.pop %v3053
    %v3055 = vmul.f32 %v3054, 0.6931472
    %v3057 = vrot.slane %v3055, 1
    %v3059 = vmul.f32 %v2367, %v3057
    %v3060 = vmul.f32 %v2372, %v3057
    %v3061 = vmul.f32 %v3059, 1.442695
    %v3062 = vpow.pop %v3061
    %v3063 = vmul.f32 %v3060, 1.442695
    %v3064 = vpow.pop %v3063
    %v3067 = vrot.slane %v3062, 7
    %v3068 = vrot.slane %v3064, 7
    %v3069 = vsel %vm2334, %v3067, %v3068
    %v3071 = vsel %vm3052, %v3069, 0.0
    %v3072 = vsel %vm2340, %v3071, 0.0
    %3073 = vadd.xlane.f32.xlu0 %v3072
    %v3074 = vpop.xlane.xlu0 %3073
    %v3075 = vsub.f32 %v3074, 1.0
    %v3076 = vmul.f32 %v3075, %v2393
    %vm3077 = vcmp.ge.f32.partialorder %v3076, 0.0
    %v3078 = vsel %vm3077, %v3044, %v3042
    %v3079 = vmul.f32 %v3043, 0.5
    %v3080 = vadd.f32 %v3078, %v3079
    %3082 = vset.pattern.permute.xlu0 0
    %3083 = vperm.xlu0 %3082, %v3080
    %v3084 = vpop.permute.xlu0 %3083
    %v3086 = vsub.f32 %v2339, %v3084
    %v3087 = vmax.f32 %v3086, 0.0
    %vm3088 = vcmp.gt.f32.partialorder %v3087, 0.0
    %v3089 = vsel %vm3088, %v3087, 1.0
    %v3090 = vlog2.pop %v3089
    %v3091 = vmul.f32 %v3090, 0.6931472
    %v3093 = vrot.slane %v3091, 1
    %v3095 = vmul.f32 %v2367, %v3093
    %v3096 = vmul.f32 %v2372, %v3093
    %v3097 = vmul.f32 %v3095, 1.442695
    %v3098 = vpow.pop %v3097
    %v3099 = vmul.f32 %v3096, 1.442695
    %v3100 = vpow.pop %v3099
    %v3103 = vrot.slane %v3098, 7
    %v3104 = vrot.slane %v3100, 7
    %v3105 = vsel %vm2334, %v3103, %v3104
    %v3107 = vsel %vm3088, %v3105, 0.0
    %v3108 = vsel %vm2340, %v3107, 0.0
    %3109 = vadd.xlane.f32.xlu0 %v3108
    %v3110 = vpop.xlane.xlu0 %3109
    %v3111 = vsub.f32 %v3110, 1.0
    %v3112 = vmul.f32 %v3111, %v2393
    %vm3113 = vcmp.ge.f32.partialorder %v3112, 0.0
    %v3114 = vsel %vm3113, %v3080, %v3078
    %v3115 = vmul.f32 %v3079, 0.5
    %v3116 = vadd.f32 %v3114, %v3115
    %3118 = vset.pattern.permute.xlu0 0
    %3119 = vperm.xlu0 %3118, %v3116
    %v3120 = vpop.permute.xlu0 %3119
    %v3122 = vsub.f32 %v2339, %v3120
    %v3123 = vmax.f32 %v3122, 0.0
    %vm3124 = vcmp.gt.f32.partialorder %v3123, 0.0
    %v3125 = vsel %vm3124, %v3123, 1.0
    %v3126 = vlog2.pop %v3125
    %v3127 = vmul.f32 %v3126, 0.6931472
    %v3129 = vrot.slane %v3127, 1
    %v3131 = vmul.f32 %v2367, %v3129
    %v3132 = vmul.f32 %v2372, %v3129
    %v3133 = vmul.f32 %v3131, 1.442695
    %v3134 = vpow.pop %v3133
    %v3135 = vmul.f32 %v3132, 1.442695
    %v3136 = vpow.pop %v3135
    %v3139 = vrot.slane %v3134, 7
    %v3140 = vrot.slane %v3136, 7
    %v3141 = vsel %vm2334, %v3139, %v3140
    %v3143 = vsel %vm3124, %v3141, 0.0
    %v3144 = vsel %vm2340, %v3143, 0.0
    %3145 = vadd.xlane.f32.xlu0 %v3144
    %v3146 = vpop.xlane.xlu0 %3145
    %v3147 = vsub.f32 %v3146, 1.0
    %v3148 = vmul.f32 %v3147, %v2393
    %vm3149 = vcmp.ge.f32.partialorder %v3148, 0.0
    %v3150 = vsel %vm3149, %v3116, %v3114
    %v3151 = vmul.f32 %v3115, 0.5
    %v3152 = vadd.f32 %v3150, %v3151
    %3154 = vset.pattern.permute.xlu0 0
    %3155 = vperm.xlu0 %3154, %v3152
    %v3156 = vpop.permute.xlu0 %3155
    %v3158 = vsub.f32 %v2339, %v3156
    %v3159 = vmax.f32 %v3158, 0.0
    %vm3160 = vcmp.gt.f32.partialorder %v3159, 0.0
    %v3161 = vsel %vm3160, %v3159, 1.0
    %v3162 = vlog2.pop %v3161
    %v3163 = vmul.f32 %v3162, 0.6931472
    %v3165 = vrot.slane %v3163, 1
    %v3167 = vmul.f32 %v2367, %v3165
    %v3168 = vmul.f32 %v2372, %v3165
    %v3169 = vmul.f32 %v3167, 1.442695
    %v3170 = vpow.pop %v3169
    %v3171 = vmul.f32 %v3168, 1.442695
    %v3172 = vpow.pop %v3171
    %v3175 = vrot.slane %v3170, 7
    %v3176 = vrot.slane %v3172, 7
    %v3177 = vsel %vm2334, %v3175, %v3176
    %v3179 = vsel %vm3160, %v3177, 0.0
    %v3180 = vsel %vm2340, %v3179, 0.0
    %3181 = vadd.xlane.f32.xlu0 %v3180
    %v3182 = vpop.xlane.xlu0 %3181
    %v3183 = vsub.f32 %v3182, 1.0
    %v3184 = vmul.f32 %v3183, %v2393
    %vm3185 = vcmp.ge.f32.partialorder %v3184, 0.0
    %v3186 = vsel %vm3185, %v3152, %v3150
    %v3187 = vmul.f32 %v3151, 0.5
    %v3188 = vadd.f32 %v3186, %v3187
    %3190 = vset.pattern.permute.xlu0 0
    %3191 = vperm.xlu0 %3190, %v3188
    %v3192 = vpop.permute.xlu0 %3191
    %v3194 = vsub.f32 %v2339, %v3192
    %v3195 = vmax.f32 %v3194, 0.0
    %vm3196 = vcmp.gt.f32.partialorder %v3195, 0.0
    %v3197 = vsel %vm3196, %v3195, 1.0
    %v3198 = vlog2.pop %v3197
    %v3199 = vmul.f32 %v3198, 0.6931472
    %v3201 = vrot.slane %v3199, 1
    %v3203 = vmul.f32 %v2367, %v3201
    %v3204 = vmul.f32 %v2372, %v3201
    %v3205 = vmul.f32 %v3203, 1.442695
    %v3206 = vpow.pop %v3205
    %v3207 = vmul.f32 %v3204, 1.442695
    %v3208 = vpow.pop %v3207
    %v3211 = vrot.slane %v3206, 7
    %v3212 = vrot.slane %v3208, 7
    %v3213 = vsel %vm2334, %v3211, %v3212
    %v3215 = vsel %vm3196, %v3213, 0.0
    %v3216 = vsel %vm2340, %v3215, 0.0
    %3217 = vadd.xlane.f32.xlu0 %v3216
    %v3218 = vpop.xlane.xlu0 %3217
    %v3219 = vsub.f32 %v3218, 1.0
    %v3220 = vmul.f32 %v3219, %v2393
    %vm3221 = vcmp.ge.f32.partialorder %v3220, 0.0
    %v3222 = vsel %vm3221, %v3188, %v3186
    %v3223 = vmul.f32 %v3187, 0.5
    %v3224 = vadd.f32 %v3222, %v3223
    %3226 = vset.pattern.permute.xlu0 0
    %3227 = vperm.xlu0 %3226, %v3224
    %v3228 = vpop.permute.xlu0 %3227
    %v3230 = vsub.f32 %v2339, %v3228
    %v3231 = vmax.f32 %v3230, 0.0
    %vm3232 = vcmp.gt.f32.partialorder %v3231, 0.0
    %v3233 = vsel %vm3232, %v3231, 1.0
    %v3234 = vlog2.pop %v3233
    %v3235 = vmul.f32 %v3234, 0.6931472
    %v3237 = vrot.slane %v3235, 1
    %v3239 = vmul.f32 %v2367, %v3237
    %v3240 = vmul.f32 %v2372, %v3237
    %v3241 = vmul.f32 %v3239, 1.442695
    %v3242 = vpow.pop %v3241
    %v3243 = vmul.f32 %v3240, 1.442695
    %v3244 = vpow.pop %v3243
    %v3247 = vrot.slane %v3242, 7
    %v3248 = vrot.slane %v3244, 7
    %v3249 = vsel %vm2334, %v3247, %v3248
    %v3251 = vsel %vm3232, %v3249, 0.0
    %v3252 = vsel %vm2340, %v3251, 0.0
    %3253 = vadd.xlane.f32.xlu0 %v3252
    %v3254 = vpop.xlane.xlu0 %3253
    %v3255 = vsub.f32 %v3254, 1.0
    %v3256 = vmul.f32 %v3255, %v2393
    %vm3257 = vcmp.ge.f32.partialorder %v3256, 0.0
    %v3258 = vsel %vm3257, %v3224, %v3222
    %v3259 = vmul.f32 %v3223, 0.5
    %v3260 = vadd.f32 %v3258, %v3259
    %3262 = vset.pattern.permute.xlu0 0
    %3263 = vperm.xlu0 %3262, %v3260
    %v3264 = vpop.permute.xlu0 %3263
    %v3266 = vsub.f32 %v2339, %v3264
    %v3267 = vmax.f32 %v3266, 0.0
    %vm3268 = vcmp.gt.f32.partialorder %v3267, 0.0
    %v3269 = vsel %vm3268, %v3267, 1.0
    %v3270 = vlog2.pop %v3269
    %v3271 = vmul.f32 %v3270, 0.6931472
    %v3273 = vrot.slane %v3271, 1
    %v3275 = vmul.f32 %v2367, %v3273
    %v3276 = vmul.f32 %v2372, %v3273
    %v3277 = vmul.f32 %v3275, 1.442695
    %v3278 = vpow.pop %v3277
    %v3279 = vmul.f32 %v3276, 1.442695
    %v3280 = vpow.pop %v3279
    %v3283 = vrot.slane %v3278, 7
    %v3284 = vrot.slane %v3280, 7
    %v3285 = vsel %vm2334, %v3283, %v3284
    %v3287 = vsel %vm3268, %v3285, 0.0
    %v3288 = vsel %vm2340, %v3287, 0.0
    %3289 = vadd.xlane.f32.xlu0 %v3288
    %v3290 = vpop.xlane.xlu0 %3289
    %v3291 = vsub.f32 %v3290, 1.0
    %v3292 = vmul.f32 %v3291, %v2393
    %vm3293 = vcmp.ge.f32.partialorder %v3292, 0.0
    %v3294 = vsel %vm3293, %v3260, %v3258
    %v3295 = vmul.f32 %v3259, 0.5
    %v3296 = vadd.f32 %v3294, %v3295
    %3298 = vset.pattern.permute.xlu0 0
    %3299 = vperm.xlu0 %3298, %v3296
    %v3300 = vpop.permute.xlu0 %3299
    %v3302 = vsub.f32 %v2339, %v3300
    %v3303 = vmax.f32 %v3302, 0.0
    %vm3304 = vcmp.gt.f32.partialorder %v3303, 0.0
    %v3305 = vsel %vm3304, %v3303, 1.0
    %v3306 = vlog2.pop %v3305
    %v3307 = vmul.f32 %v3306, 0.6931472
    %v3309 = vrot.slane %v3307, 1
    %v3311 = vmul.f32 %v2367, %v3309
    %v3312 = vmul.f32 %v2372, %v3309
    %v3313 = vmul.f32 %v3311, 1.442695
    %v3314 = vpow.pop %v3313
    %v3315 = vmul.f32 %v3312, 1.442695
    %v3316 = vpow.pop %v3315
    %v3319 = vrot.slane %v3314, 7
    %v3320 = vrot.slane %v3316, 7
    %v3321 = vsel %vm2334, %v3319, %v3320
    %v3323 = vsel %vm3304, %v3321, 0.0
    %v3324 = vsel %vm2340, %v3323, 0.0
    %3325 = vadd.xlane.f32.xlu0 %v3324
    %v3326 = vpop.xlane.xlu0 %3325
    %v3327 = vsub.f32 %v3326, 1.0
    %v3328 = vmul.f32 %v3327, %v2393
    %vm3329 = vcmp.ge.f32.partialorder %v3328, 0.0
    %v3330 = vsel %vm3329, %v3296, %v3294
    %v3331 = vmul.f32 %v3295, 0.5
    %v3332 = vadd.f32 %v3330, %v3331
    %3334 = vset.pattern.permute.xlu0 0
    %3335 = vperm.xlu0 %3334, %v3332
    %v3336 = vpop.permute.xlu0 %3335
    %v3338 = vsub.f32 %v2339, %v3336
    %v3339 = vmax.f32 %v3338, 0.0
    %vm3340 = vcmp.gt.f32.partialorder %v3339, 0.0
    %v3341 = vsel %vm3340, %v3339, 1.0
    %v3342 = vlog2.pop %v3341
    %v3343 = vmul.f32 %v3342, 0.6931472
    %v3345 = vrot.slane %v3343, 1
    %v3347 = vmul.f32 %v2367, %v3345
    %v3348 = vmul.f32 %v2372, %v3345
    %v3349 = vmul.f32 %v3347, 1.442695
    %v3350 = vpow.pop %v3349
    %v3351 = vmul.f32 %v3348, 1.442695
    %v3352 = vpow.pop %v3351
    %v3355 = vrot.slane %v3350, 7
    %v3356 = vrot.slane %v3352, 7
    %v3357 = vsel %vm2334, %v3355, %v3356
    %v3359 = vsel %vm3340, %v3357, 0.0
    %v3360 = vsel %vm2340, %v3359, 0.0
    %3361 = vadd.xlane.f32.xlu0 %v3360
    %v3362 = vpop.xlane.xlu0 %3361
    %v3363 = vsub.f32 %v3362, 1.0
    %v3364 = vmul.f32 %v3363, %v2393
    %vm3365 = vcmp.ge.f32.partialorder %v3364, 0.0
    %v3366 = vsel %vm3365, %v3332, %v3330
    %v3367 = vmul.f32 %v3331, 0.5
    %v3368 = vadd.f32 %v3366, %v3367
    %3370 = vset.pattern.permute.xlu0 0
    %3371 = vperm.xlu0 %3370, %v3368
    %v3372 = vpop.permute.xlu0 %3371
    %v3374 = vsub.f32 %v2339, %v3372
    %v3375 = vmax.f32 %v3374, 0.0
    %vm3376 = vcmp.gt.f32.partialorder %v3375, 0.0
    %v3377 = vsel %vm3376, %v3375, 1.0
    %v3378 = vlog2.pop %v3377
    %v3379 = vmul.f32 %v3378, 0.6931472
    %v3381 = vrot.slane %v3379, 1
    %v3383 = vmul.f32 %v2367, %v3381
    %v3384 = vmul.f32 %v2372, %v3381
    %v3385 = vmul.f32 %v3383, 1.442695
    %v3386 = vpow.pop %v3385
    %v3387 = vmul.f32 %v3384, 1.442695
    %v3388 = vpow.pop %v3387
    %v3391 = vrot.slane %v3386, 7
    %v3392 = vrot.slane %v3388, 7
    %v3393 = vsel %vm2334, %v3391, %v3392
    %v3395 = vsel %vm3376, %v3393, 0.0
    %v3396 = vsel %vm2340, %v3395, 0.0
    %3397 = vadd.xlane.f32.xlu0 %v3396
    %v3398 = vpop.xlane.xlu0 %3397
    %v3399 = vsub.f32 %v3398, 1.0
    %v3400 = vmul.f32 %v3399, %v2393
    %vm3401 = vcmp.ge.f32.partialorder %v3400, 0.0
    %v3402 = vsel %vm3401, %v3368, %v3366
    %v3403 = vmul.f32 %v3367, 0.5
    %v3404 = vadd.f32 %v3402, %v3403
    %3406 = vset.pattern.permute.xlu0 0
    %3407 = vperm.xlu0 %3406, %v3404
    %v3408 = vpop.permute.xlu0 %3407
    %v3410 = vsub.f32 %v2339, %v3408
    %v3411 = vmax.f32 %v3410, 0.0
    %vm3412 = vcmp.gt.f32.partialorder %v3411, 0.0
    %v3413 = vsel %vm3412, %v3411, 1.0
    %v3414 = vlog2.pop %v3413
    %v3415 = vmul.f32 %v3414, 0.6931472
    %v3417 = vrot.slane %v3415, 1
    %v3419 = vmul.f32 %v2367, %v3417
    %v3420 = vmul.f32 %v2372, %v3417
    %v3421 = vmul.f32 %v3419, 1.442695
    %v3422 = vpow.pop %v3421
    %v3423 = vmul.f32 %v3420, 1.442695
    %v3424 = vpow.pop %v3423
    %v3427 = vrot.slane %v3422, 7
    %v3428 = vrot.slane %v3424, 7
    %v3429 = vsel %vm2334, %v3427, %v3428
    %v3431 = vsel %vm3412, %v3429, 0.0
    %v3432 = vsel %vm2340, %v3431, 0.0
    %3433 = vadd.xlane.f32.xlu0 %v3432
    %v3434 = vpop.xlane.xlu0 %3433
    %v3435 = vsub.f32 %v3434, 1.0
    %v3436 = vmul.f32 %v3435, %v2393
    %vm3437 = vcmp.ge.f32.partialorder %v3436, 0.0
    %v3438 = vsel %vm3437, %v3404, %v3402
    %v3439 = vmul.f32 %v3403, 0.5
    %v3440 = vadd.f32 %v3438, %v3439
    %3442 = vset.pattern.permute.xlu0 0
    %3443 = vperm.xlu0 %3442, %v3440
    %v3444 = vpop.permute.xlu0 %3443
    %v3446 = vsub.f32 %v2339, %v3444
    %v3447 = vmax.f32 %v3446, 0.0
    %vm3448 = vcmp.gt.f32.partialorder %v3447, 0.0
    %v3449 = vsel %vm3448, %v3447, 1.0
    %v3450 = vlog2.pop %v3449
    %v3451 = vmul.f32 %v3450, 0.6931472
    %v3453 = vrot.slane %v3451, 1
    %v3455 = vmul.f32 %v2367, %v3453
    %v3456 = vmul.f32 %v2372, %v3453
    %v3457 = vmul.f32 %v3455, 1.442695
    %v3458 = vpow.pop %v3457
    %v3459 = vmul.f32 %v3456, 1.442695
    %v3460 = vpow.pop %v3459
    %v3463 = vrot.slane %v3458, 7
    %v3464 = vrot.slane %v3460, 7
    %v3465 = vsel %vm2334, %v3463, %v3464
    %v3467 = vsel %vm3448, %v3465, 0.0
    %v3468 = vsel %vm2340, %v3467, 0.0
    %3469 = vadd.xlane.f32.xlu0 %v3468
    %v3470 = vpop.xlane.xlu0 %3469
    %v3471 = vrcp.pop %v3470
    %v3472 = vmul.f32 %v3467, %v3471
    %v3475 = vunpack.c.l.s4 1966171168
    %v3476 = vunpack.c.0.s8 %v3475
    %v3477 = vlaneseq
    %v3478 = vshrl.u32 %v3477, 7
    %v3479 = vsub.s32 %v3476, %v3478
    %v3480 = vrot.slane %v3472, %v3479
    %v3481 = vcombine.high %v3480, %v3480
    %v3483 = vunpack.c.l.s4 1966171168
    %v3484 = vunpack.c.0.s8 %v3483
    %v3485 = vlaneseq
    %v3486 = vshrl.u32 %v3485, 7
    %v3487 = vsub.s32 %v3484, %v3486
    %v3488 = vrot.slane %v3480, %v3487
    %v3490 = vunpack.c.l.s4 1966171168
    %v3491 = vunpack.c.0.s8 %v3490
    %v3492 = vlaneseq
    %v3493 = vshrl.u32 %v3492, 7
    %v3494 = vsub.s32 %v3491, %v3493
    %v3495 = vrot.slane %v3481, %v3494
    %vm3496 = vcmask 56320
    %v3497 = vsel %vm3496, %v3488, 0
    %vm3499 = vcmask 1046528
    %v3500 = vsel %vm3499, %v59, 0
    %3502 = vmatprep.subr.mxu0 0.0
    %3503 = vmatpush1.msra.mxu0 %v3500
    %3504 = vmatprep.subr.mxu0 0.0
    %3505 = vmatpush1.msra.mxu0 0.0
    %3506 = vmatprep.subr.mxu0 0.0
    %3507 = vmatpush1.msra.mxu0 0.0
    %3508 = vmatprep.subr.mxu0 0.0
    %3509 = vmatpush1.msra.mxu0 0.0
    %3510 = vmatprep.subr.mxu0 0.0
    %3511 = vmatpush1.msra.mxu0 0.0
    %3512 = vmatprep.subr.mxu0 0.0
    %3513 = vmatpush1.msra.mxu0 0.0
    %3514 = vmatprep.subr.mxu0 0.0
    %3515 = vmatpush1.msra.mxu0 0.0
    %3516 = vmatprep.subr.mxu0 0.0
    %3517 = vmatpush1.msra.mxu0 0.0
    %3518 = vmatprep.subr.mxu0 0.0
    %3519 = vmatpush1.msra.mxu0 0.0
    %3520 = vmatprep.subr.mxu0 0.0
    %3521 = vmatpush1.msra.mxu0 0.0
    %3522 = vmatprep.subr.mxu0 0.0
    %3523 = vmatpush1.msra.mxu0 0.0
    %3524 = vmatprep.subr.mxu0 0.0
    %3525 = vmatpush1.msra.mxu0 0.0
    %3526 = vmatprep.subr.mxu0 0.0
    %3527 = vmatpush1.msra.mxu0 0.0
    %3528 = vmatprep.subr.mxu0 0.0
    %3529 = vmatpush1.msra.mxu0 0.0
    %3530 = vmatprep.subr.mxu0 0.0
    %3531 = vmatpush1.msra.mxu0 0.0
    %3532 = vmatprep.subr.mxu0 0.0
    %3533 = vmatpush1.msra.mxu0 0.0
    %3534 = vmatprep.subr.mxu0 0.0
    %3535 = vmatpush1.msra.mxu0 0.0
    %3536 = vmatprep.subr.mxu0 0.0
    %3537 = vmatpush1.msra.mxu0 0.0
    %3538 = vmatprep.subr.mxu0 0.0
    %3539 = vmatpush1.msra.mxu0 0.0
    %3540 = vmatprep.subr.mxu0 0.0
    %3541 = vmatpush1.msra.mxu0 0.0
    %3542 = vmatprep.subr.mxu0 0.0
    %3543 = vmatpush1.msra.mxu0 0.0
    %3544 = vmatprep.subr.mxu0 0.0
    %3545 = vmatpush1.msra.mxu0 0.0
    %3546 = vmatprep.subr.mxu0 0.0
    %3547 = vmatpush1.msra.mxu0 0.0
    %3548 = vmatprep.subr.mxu0 0.0
    %3549 = vmatpush1.msra.mxu0 0.0
    %3550 = vmatprep.subr.mxu0 0.0
    %3551 = vmatpush1.msra.mxu0 0.0
    %3552 = vmatprep.subr.mxu0 0.0
    %3553 = vmatpush1.msra.mxu0 0.0
    %3554 = vmatprep.subr.mxu0 0.0
    %3555 = vmatpush1.msra.mxu0 0.0
    %3556 = vmatprep.subr.mxu0 0.0
    %3557 = vmatpush1.msra.mxu0 0.0
    %3558 = vmatprep.subr.mxu0 0.0
    %3559 = vmatpush1.msra.mxu0 0.0
    %3560 = vmatprep.subr.mxu0 0.0
    %3561 = vmatpush1.msra.mxu0 0.0
    %3562 = vmatprep.subr.mxu0 0.0
    %3563 = vmatpush1.msra.mxu0 0.0
    %3564 = vmatprep.subr.mxu0 0.0
    %3565 = vmatpush1.msra.mxu0 0.0
    %3566 = vmatprep.mubr.f32.mxu0 0.0
    %3567 = vmatmul.mubr.f32.gmra.mrb[0].mxu0 %v3497
    %v3568 = vpop.f32.mrb[0].mxu0
    %v3569 = vadd.f32 0.0, %v3568
    %v3570 = vpop.f32.mrb[0].mxu0
    %3571 = vdwg.mxu0
    %v3572 = vsel %vm3496, %v3495, 0
    %v3574 = vsel %vm3499, %v60, 0
    %3576 = vmatprep.subr.mxu0 0.0
    %3577 = vmatpush1.msra.mxu0 %v3574
    %3578 = vmatprep.subr.mxu0 0.0
    %3579 = vmatpush1.msra.mxu0 0.0
    %3580 = vmatprep.subr.mxu0 0.0
    %3581 = vmatpush1.msra.mxu0 0.0
    %3582 = vmatprep.subr.mxu0 0.0
    %3583 = vmatpush1.msra.mxu0 0.0
    %3584 = vmatprep.subr.mxu0 0.0
    %3585 = vmatpush1.msra.mxu0 0.0
    %3586 = vmatprep.subr.mxu0 0.0
    %3587 = vmatpush1.msra.mxu0 0.0
    %3588 = vmatprep.subr.mxu0 0.0
    %3589 = vmatpush1.msra.mxu0 0.0
    %3590 = vmatprep.subr.mxu0 0.0
    %3591 = vmatpush1.msra.mxu0 0.0
    %3592 = vmatprep.subr.mxu0 0.0
    %3593 = vmatpush1.msra.mxu0 0.0
    %3594 = vmatprep.subr.mxu0 0.0
    %3595 = vmatpush1.msra.mxu0 0.0
    %3596 = vmatprep.subr.mxu0 0.0
    %3597 = vmatpush1.msra.mxu0 0.0
    %3598 = vmatprep.subr.mxu0 0.0
    %3599 = vmatpush1.msra.mxu0 0.0
    %3600 = vmatprep.subr.mxu0 0.0
    %3601 = vmatpush1.msra.mxu0 0.0
    %3602 = vmatprep.subr.mxu0 0.0
    %3603 = vmatpush1.msra.mxu0 0.0
    %3604 = vmatprep.subr.mxu0 0.0
    %3605 = vmatpush1.msra.mxu0 0.0
    %3606 = vmatprep.subr.mxu0 0.0
    %3607 = vmatpush1.msra.mxu0 0.0
    %3608 = vmatprep.subr.mxu0 0.0
    %3609 = vmatpush1.msra.mxu0 0.0
    %3610 = vmatprep.subr.mxu0 0.0
    %3611 = vmatpush1.msra.mxu0 0.0
    %3612 = vmatprep.subr.mxu0 0.0
    %3613 = vmatpush1.msra.mxu0 0.0
    %3614 = vmatprep.subr.mxu0 0.0
    %3615 = vmatpush1.msra.mxu0 0.0
    %3616 = vmatprep.subr.mxu0 0.0
    %3617 = vmatpush1.msra.mxu0 0.0
    %3618 = vmatprep.subr.mxu0 0.0
    %3619 = vmatpush1.msra.mxu0 0.0
    %3620 = vmatprep.subr.mxu0 0.0
    %3621 = vmatpush1.msra.mxu0 0.0
    %3622 = vmatprep.subr.mxu0 0.0
    %3623 = vmatpush1.msra.mxu0 0.0
    %3624 = vmatprep.subr.mxu0 0.0
    %3625 = vmatpush1.msra.mxu0 0.0
    %3626 = vmatprep.subr.mxu0 0.0
    %3627 = vmatpush1.msra.mxu0 0.0
    %3628 = vmatprep.subr.mxu0 0.0
    %3629 = vmatpush1.msra.mxu0 0.0
    %3630 = vmatprep.subr.mxu0 0.0
    %3631 = vmatpush1.msra.mxu0 0.0
    %3632 = vmatprep.subr.mxu0 0.0
    %3633 = vmatpush1.msra.mxu0 0.0
    %3634 = vmatprep.subr.mxu0 0.0
    %3635 = vmatpush1.msra.mxu0 0.0
    %3636 = vmatprep.subr.mxu0 0.0
    %3637 = vmatpush1.msra.mxu0 0.0
    %3638 = vmatprep.subr.mxu0 0.0
    %3639 = vmatpush1.msra.mxu0 0.0
    %3640 = vmatprep.mubr.f32.mxu0 0.0
    %3641 = vmatmul.mubr.f32.gmra.mrb[0].mxu0 %v3572
    %v3642 = vpop.f32.mrb[0].mxu0
    %v3643 = vadd.f32 0.0, %v3642
    %v3644 = vpop.f32.mrb[0].mxu0
    %3645 = vdwg.mxu0
    %v3648 = vrot.slane %v3643, 7
    %v3649 = vsel %vm2316, %v3648, %v3569
    %v3651 = vrot.slane %v2115, 7
    %v3652 = vrot.slane %v2116, 6
    %v3653 = vsel %vm2316, %v3652, %v3651
    %3654 = vrot.lane.b32.xlu0 %v3653, 32
    %v3655 = vpop.permute.xlu0 %3654
    %v3657 = vsel %vm98, %v3649, %v3655
    %v3658 = vld [vmem:[%s15] sm:$0xff]
    %v3659 = vld [vmem:[%s15 + $0x8] sm:$0xff]
    %v3660 = vld [vmem:[%s15 + $0x10] sm:$0xff]
    %v3661 = vld [vmem:[%s15 + $0x18] sm:$0xff]
    %v3662 = vld [vmem:[%s15 + $0x20] sm:$0xff]
    %v3663 = vld [vmem:[%s15 + $0x28] sm:$0xff]
    %v3664 = vld [vmem:[%s15 + $0x30] sm:$0xff]
    %v3665 = vld [vmem:[%s15 + $0x38] sm:$0xff]
    %v3666 = vld [vmem:[%s16] sm:$0x1]
    %v3668 = vlaneseq
    %v3669 = vshrl.u32 %v3668, 7
    %v3670 = vsub.s32 0, %v3669
    %v3671 = vrot.slane %v3666, %v3670
    %vm3673 = vcmask 523264
    %v3675 = vsel %vm3673, %v3657, 0
    %3677 = vmatprep.subr.mxu0 0.0
    %3678 = vmatpush1.msra.mxu0 %v3658
    %3679 = vmatprep.subr.mxu0 0.0
    %3680 = vmatpush1.msra.mxu0 %v3659
    %3681 = vmatprep.subr.mxu0 0.0
    %3682 = vmatpush1.msra.mxu0 %v3660
    %3683 = vmatprep.subr.mxu0 0.0
    %3684 = vmatpush1.msra.mxu0 %v3661
    %3685 = vmatprep.subr.mxu0 0.0
    %3686 = vmatpush1.msra.mxu0 %v3662
    %3687 = vmatprep.subr.mxu0 0.0
    %3688 = vmatpush1.msra.mxu0 %v3663
    %3689 = vmatprep.subr.mxu0 0.0
    %3690 = vmatpush1.msra.mxu0 %v3664
    %3691 = vmatprep.subr.mxu0 0.0
    %3692 = vmatpush1.msra.mxu0 %v3665
    %3693 = vmatprep.subr.mxu0 0.0
    %3694 = vmatpush1.msra.mxu0 0.0
    %3695 = vmatprep.subr.mxu0 0.0
    %3696 = vmatpush1.msra.mxu0 0.0
    %3697 = vmatprep.subr.mxu0 0.0
    %3698 = vmatpush1.msra.mxu0 0.0
    %3699 = vmatprep.subr.mxu0 0.0
    %3700 = vmatpush1.msra.mxu0 0.0
    %3701 = vmatprep.subr.mxu0 0.0
    %3702 = vmatpush1.msra.mxu0 0.0
    %3703 = vmatprep.subr.mxu0 0.0
    %3704 = vmatpush1.msra.mxu0 0.0
    %3705 = vmatprep.subr.mxu0 0.0
    %3706 = vmatpush1.msra.mxu0 0.0
    %3707 = vmatprep.subr.mxu0 0.0
    %3708 = vmatpush1.msra.mxu0 0.0
    %3709 = vmatprep.subr.mxu0 0.0
    %3710 = vmatpush1.msra.mxu0 0.0
    %3711 = vmatprep.subr.mxu0 0.0
    %3712 = vmatpush1.msra.mxu0 0.0
    %3713 = vmatprep.subr.mxu0 0.0
    %3714 = vmatpush1.msra.mxu0 0.0
    %3715 = vmatprep.subr.mxu0 0.0
    %3716 = vmatpush1.msra.mxu0 0.0
    %3717 = vmatprep.subr.mxu0 0.0
    %3718 = vmatpush1.msra.mxu0 0.0
    %3719 = vmatprep.subr.mxu0 0.0
    %3720 = vmatpush1.msra.mxu0 0.0
    %3721 = vmatprep.subr.mxu0 0.0
    %3722 = vmatpush1.msra.mxu0 0.0
    %3723 = vmatprep.subr.mxu0 0.0
    %3724 = vmatpush1.msra.mxu0 0.0
    %3725 = vmatprep.subr.mxu0 0.0
    %3726 = vmatpush1.msra.mxu0 0.0
    %3727 = vmatprep.subr.mxu0 0.0
    %3728 = vmatpush1.msra.mxu0 0.0
    %3729 = vmatprep.subr.mxu0 0.0
    %3730 = vmatpush1.msra.mxu0 0.0
    %3731 = vmatprep.subr.mxu0 0.0
    %3732 = vmatpush1.msra.mxu0 0.0
    %3733 = vmatprep.subr.mxu0 0.0
    %3734 = vmatpush1.msra.mxu0 0.0
    %3735 = vmatprep.subr.mxu0 0.0
    %3736 = vmatpush1.msra.mxu0 0.0
    %3737 = vmatprep.subr.mxu0 0.0
    %3738 = vmatpush1.msra.mxu0 0.0
    %3739 = vmatprep.subr.mxu0 0.0
    %3740 = vmatpush1.msra.mxu0 0.0
    %3741 = vmatprep.mubr.f32.mxu0 0.0
    %3742 = vmatmul.mubr.f32.gmra.mrb[0].mxu0 %v3675
    %v3743 = vpop.f32.mrb[0].mxu0
    %v3744 = vadd.f32 %v3671, %v3743
    %v3745 = vpop.f32.mrb[0].mxu0
    %3746 = vdwg.mxu0
    %vm3747 = vcmp.gt.f32.partialorder %v3744, 0.0
    %v3748 = vmul.f32 %v3744, 1.442695
    %v3749 = vpow.pop %v3748
    %v3750 = vsub.f32 %v3749, 1.0
    %v3751 = vmul.f32 %v3750, 1.6732632
    %v3752 = vsel %vm3747, %v3744, %v3751
    %v3753 = vmul.f32 %v3752, 1.050701
    %v3754 = vmul.f32 %v3753, %v3753
    %vm3755 = vcmask 189440
    %v3756 = vsel %vm3755, %v3754, 0.0
    %3757 = vadd.xlane.f32.xlu0 %v3756
    %v3758 = vpop.xlane.xlu0 %3757
    %v3759 = vrsqrt.pop %v3758
    %v3760 = vmul.f32 %v3753, %v3759
    %3761 = vst.msk [vmem:[#allocation3] sm:$0x3] %vm3755, %v3760
    // Predicated region
    $region70: #{mh_sparse_transformer_forward.1} parent=1 // pred_check
      _
    $region71: #{mh_sparse_transformer_forward.1} parent=1 // pred_check_branch
      %3763 = sbr.rel (0) target = $region73
    $region72: #{mh_sparse_transformer_forward.1} parent=1 // pred_region
      %s3765 = ssub.s32 32, 32
      %3766 = vsyncadd [#allocation4], %s3765
      %s3768 = sshll.u32 [#allocation3], 4
      %s3769 = int_to_ptr.vmem [resolvable:$true] %s3768
      %3771 = dma.vmem_to_hbm [thread:$0]  %s3769, 32, %s17, [#allocation4]
    $region73: #{mh_sparse_transformer_forward.1} parent=1 // pred_fallthru
      _
    // Predicated region
    $region74: #{mh_sparse_transformer_forward.1} parent=1 // pred_check
      _
    $region75: #{mh_sparse_transformer_forward.1} parent=1 // pred_check_branch
      %3773 = sbr.rel (0) target = $region77
    $region76: #{mh_sparse_transformer_forward.1} parent=1 // pred_region
      %3774 = dma.done [#allocation4], 32
    $region77: #{mh_sparse_transformer_forward.1} parent=1 // pred_fallthru
      _
    %3775 = vsyncpa [#allocation4], 1

</llo_original>
